<compile_context>
chip_gen: v5e
topology: v5e:2x2
jax: 0.10.0
libtpu: 0.0.40
codegen_flags: <defaults>
</compile_context>

<pallas_src>
import math
import functools

import jax
import jax.numpy as jnp
from jax.experimental import pallas as pl
from jax.experimental.pallas import tpu as pltpu


# ----------------------------- Pallas kernel --------------------------------
def encoder_block_kernel(x_ref,
                         wqkv_ref, bqkv_ref,
                         wo_ref, bo_ref,
                         gamma_ref, beta_ref,
                         w1_ref, b1_ref, w2_ref, b2_ref,
                         o_ref, *, n_heads):
    """One full EncoderBlock for a single example.

    x_ref : (S, D) bf16 activations (leading batch dim squeezed by the BlockSpec).
    wqkv  : (3, H, D, dk) bf16, bqkv: (3, H, 1, dk) f32 (per-head projections).
    wo    : (H, dk, D) bf16 (per-head output projection), bo/(gamma/beta)/b1/b2: f32.
    o_ref : (S, D) bf16 output tile.
    """
    S, D = x_ref.shape
    H = n_heads
    dk = D // H

    x_bf = x_ref[...]                                     # (S, D) bf16 residual

    # ---- per-head QKV projection: batched (H,S,D)@(H,D,dk), no lane slicing ----
    xh = jnp.broadcast_to(x_bf[None], (H, S, D))          # replicate over heads (major dim)

    def proj(idx):                                        # bias-add + bf16 cast per segment
        y = jnp.einsum('hsd,hdk->hsk', xh, wqkv_ref[idx],
                       preferred_element_type=jnp.float32)
        return (y + bqkv_ref[idx]).astype(jnp.bfloat16)   # (H, S, dk) bf16

    q3 = proj(0)          # 1/sqrt(dk) already folded into Wq/bq at init
    k3 = proj(1)
    v3 = proj(2)

    # ---- head-batched attention (per-example scores, no cross-example mask) ----
    s = jnp.einsum('hqd,hkd->hqk', q3, k3,
                   preferred_element_type=jnp.float32)    # (H, S, S) f32
    s = s - jnp.max(s, axis=-1, keepdims=True)
    e = jnp.exp(s)
    p = e * pl.reciprocal(jnp.sum(e, axis=-1, keepdims=True), approx=True)
    ctx = jnp.einsum('hqk,hkd->hqd', p.astype(jnp.bfloat16), v3,
                     preferred_element_type=jnp.float32)  # (H, S, dk) f32
    ctx_bf = ctx.astype(jnp.bfloat16)

    # ---- output projection with head-concat fused: attn = sum_h ctx_h @ Wo_h ----
    # (relayout-free equivalent of concat(ctx_h) @ Wo; leading-dim indexing is free)
    attn = jnp.dot(ctx_bf[0], wo_ref[0], preferred_element_type=jnp.float32)
    for h in range(1, H):
        attn = attn + jnp.dot(ctx_bf[h], wo_ref[h],
                              preferred_element_type=jnp.float32)
    attn = attn + bo_ref[...]                             # (S, D) f32

    # ---- shared LayerNorm (same gamma/beta for both sub-layers, as in module) ----
    gamma = gamma_ref[...]
    beta = beta_ref[...]

    def layer_norm(u):
        mu = jnp.mean(u, axis=-1, keepdims=True)
        var = jnp.mean(jnp.square(u - mu), axis=-1, keepdims=True)
        return (u - mu) * jax.lax.rsqrt(var + 1e-5) * gamma + beta

    z1 = layer_norm(x_bf.astype(jnp.float32) + attn)      # upcast residual only at the add

    # ---- position-wise FFN -----------------------------------------------------
    h1 = jnp.dot(z1.astype(jnp.bfloat16), w1_ref[...],
                 preferred_element_type=jnp.float32) + b1_ref[...]
    h1 = jnp.maximum(h1, 0.0)                             # ReLU (f32)
    ffn = jnp.dot(h1.astype(jnp.bfloat16), w2_ref[...],
                  preferred_element_type=jnp.float32) + b2_ref[...]
    z2 = layer_norm(z1 + ffn)                             # post-norm residual 2

    o_ref[...] = z2.astype(o_ref.dtype)


# ----------------------------- wrapper / glue --------------------------------
def _physical_vmem_bytes():
    try:
        return int(pltpu.get_tpu_info().vmem_capacity_bytes)
    except Exception:                                     # info query unavailable
        return 64 << 20                                   # conservative (v7x per-TC)


def _vmem_limit_bytes(S, D, h_dim, n_heads):
    """Scoped-VMEM request: activations + weights + attention temporaries + headroom,
    capped generation-aware (~100 MiB on 128 MiB parts, ~56 MiB on 64 MiB v7x)."""
    dk = D // n_heads
    act = 4 * S * D * 2                                   # x/out tiles, double-buffered bf16
    wts = 2 * (4 * D * D + 2 * D * h_dim) * 2             # bf16 weights (x2 safety margin)
    qkv = 3 * n_heads * S * dk * (2 + 4)                  # q/k/v bf16 + f32 temporaries
    sco = 3 * n_heads * S * S * 4                         # scores / exp / probs (f32)
    ffn = S * h_dim * (4 + 2)                             # FFN hidden f32 + bf16
    est = act + wts + qkv + sco + ffn + (8 << 20)
    phys = _physical_vmem_bytes()
    cap = (100 << 20) if phys >= (100 << 20) else (56 << 20)
    return int(min(max(est, 32 << 20), cap, phys))


def _const_spec(shape, single_buffer):
    """Full-array block with a constant index map (weights loaded once)."""
    if single_buffer:
        # Constant block index -> no need for revolving double buffers.
        return pl.BlockSpec(shape, lambda b: (0,) * len(shape),
                            pipeline_mode=pl.Buffered(1))
    return pl.BlockSpec(shape, lambda b: (0,) * len(shape))


def encoder_block(z, p, n_heads):
    B, S, D = z.shape
    h_dim = p["w1"].shape[1]
    weights = [p["wqkv"], p["bqkv"], p["wo"], p["bo"], p["gamma"], p["beta"],
               p["w1"], p["b1"], p["w2"], p["b2"]]

    kernel = functools.partial(encoder_block_kernel, n_heads=n_heads)
    act_spec = pl.BlockSpec((None, S, D), lambda b: (b, 0, 0))   # one example per step
    # TODO(synk): if B == 1, add a second 'parallel' grid axis (head groups) so the
    # second v7x TensorCore is not idle; with B >= 2 the example axis already shards.

    def call(single_buffer):
        in_specs = [act_spec] + [_const_spec(w.shape, single_buffer) for w in weights]
        return pl.pallas_call(
            kernel,
            out_shape=jax.ShapeDtypeStruct((B, S, D), jnp.bfloat16),
            grid=(B,),
            in_specs=in_specs,
            out_specs=pl.BlockSpec((None, S, D), lambda b: (b, 0, 0)),
            compiler_params=pltpu.CompilerParams(
                dimension_semantics=("parallel",),
                vmem_limit_bytes=_vmem_limit_bytes(S, D, h_dim, n_heads)),
        )(z, *weights)

    try:
        return call(single_buffer=True)       # single-buffer the constant weights
    except Exception:                         # fallback for jax w/o pipeline_mode support
        return call(single_buffer=False)


def positional_encoding(seq_len, d_model):
    pos = jnp.arange(seq_len, dtype=jnp.float32)[:, None]
    i = jnp.arange(0, d_model, 2, dtype=jnp.float32)
    div = jnp.exp(-math.log(10000.0) * i / d_model)
    pe = jnp.zeros((seq_len, d_model), dtype=jnp.float32)
    pe = pe.at[:, 0::2].set(jnp.sin(pos * div))
    pe = pe.at[:, 1::2].set(jnp.cos(pos * div))
    return pe


def init_params(key, n_encoders, d_model, vocab_size, h_dim, seq_len, n_heads):
    assert d_model % n_heads == 0
    dk = d_model // n_heads

    def dense(k, fan_in, fan_out):
        return jax.random.normal(k, (fan_in, fan_out), jnp.float32) * 0.02

    def heads_first(w):        # (D, D) -> (H, D, dk); head h uses columns [h*dk:(h+1)*dk]
        return w.reshape(d_model, n_heads, dk).transpose(1, 0, 2)

    keys = iter(jax.random.split(key, 1 + 6 * n_encoders))
    params = {
        "embed": jax.random.normal(next(keys), (vocab_size, d_model), jnp.float32) * 0.02,
        "pe": positional_encoding(seq_len, d_model),
        "layers": [],
    }
    scale = 1.0 / math.sqrt(dk)
    for _ in range(n_encoders):
        wq = dense(next(keys), d_model, d_model) * scale   # fold 1/sqrt(dk) into Wq
        wk = dense(next(keys), d_model, d_model)
        wv = dense(next(keys), d_model, d_model)
        wo = dense(next(keys), d_model, d_model)
        layer = {
            # (3, H, D, dk): per-head QKV weights -> no in-kernel lane slicing.
            "wqkv": jnp.stack([heads_first(wq), heads_first(wk), heads_first(wv)],
                              axis=0).astype(jnp.bfloat16),
            "bqkv": jnp.zeros((3, n_heads, 1, dk), jnp.float32),   # q-part scale-folded too
            # (H, dk, D): per-head output projection (head-concat fused into the matmul).
            "wo": wo.reshape(n_heads, dk, d_model).astype(jnp.bfloat16),
            "bo": jnp.zeros((1, d_model), jnp.float32),
            "gamma": jnp.ones((1, d_model), jnp.float32),
            "beta": jnp.zeros((1, d_model), jnp.float32),
            "w1": dense(next(keys), d_model, h_dim).astype(jnp.bfloat16),
            "b1": jnp.zeros((1, h_dim), jnp.float32),
            "w2": dense(next(keys), h_dim, d_model).astype(jnp.bfloat16),
            "b2": jnp.zeros((1, d_model), jnp.float32),
        }
        params["layers"].append(layer)
    return params


def encoder_forward(tokens, params, d_model, n_heads):
    # Embedding lookup (glue) scaled by sqrt(d_model), plus sinusoidal PE.
    # TODO(synk): cross-pallas_call prefetch of the next layer's weights (P10) and
    # flash-style KV tiling inside the kernel for very long S are not implemented.
    z = params["embed"][tokens] * math.sqrt(d_model)           # (B, S, D) f32
    z = z + params["pe"][None, :tokens.shape[1], :]
    z = z.astype(jnp.bfloat16)                                 # bf16 inter-layer acts
    for layer_p in params["layers"]:
        z = encoder_block(z, layer_p, n_heads)                 # fused Pallas block
    return z.astype(jnp.float32)


# ----------------------------- demo ------------------------------------------
if __name__ == "__main__":
    N_encoders, d_model, vocab_size = 2, 32, 50
    h_dim, seq_len, n_heads = 64, 8, 4
    batch = 2

    key = jax.random.PRNGKey(0)
    k_tok, k_par = jax.random.split(key)
    tokens = jax.random.randint(k_tok, (batch, seq_len), 0, vocab_size, dtype=jnp.int32)
    params = init_params(k_par, N_encoders, d_model, vocab_size, h_dim, seq_len, n_heads)

    out = encoder_forward(tokens, params, d_model, n_heads)
    jax.block_until_ready(out)
    assert out.shape == (batch, seq_len, d_model)
    print("KERNEL_OK")
</pallas_src>

<mosaic_0001>
module attributes {stable_mosaic.version = 11 : i64} {
  func.func @encoder_block_kernel(%arg0: i32, %arg1: memref<1x8x32xbf16, #tpu.memory_space<vmem>>, %arg2: memref<3x4x32x8xbf16, #tpu.memory_space<vmem>>, %arg3: memref<3x4x1x8xf32, #tpu.memory_space<vmem>>, %arg4: memref<4x8x32xbf16, #tpu.memory_space<vmem>>, %arg5: memref<1x32xf32, #tpu.memory_space<vmem>>, %arg6: memref<1x32xf32, #tpu.memory_space<vmem>>, %arg7: memref<1x32xf32, #tpu.memory_space<vmem>>, %arg8: memref<32x64xbf16, #tpu.memory_space<vmem>>, %arg9: memref<1x64xf32, #tpu.memory_space<vmem>>, %arg10: memref<64x32xbf16, #tpu.memory_space<vmem>>, %arg11: memref<1x32xf32, #tpu.memory_space<vmem>>, %arg12: memref<1x8x32xbf16, #tpu.memory_space<vmem>>) attributes {dimension_semantics = [#tpu.dimension_semantics<parallel>], iteration_bounds = array<i64: 2>, scalar_prefetch = 0 : i64, scratch_operands = 0 : i64, tpu.core_type = #tpu.core_type<tc>, window_params = [{transform_indices = @transform_0, window_bounds = array<i64: 1, 8, 32>}, {pipeline_mode = #tpu.pipeline_mode<synchronous>, transform_indices = @transform_1, window_bounds = array<i64: 3, 4, 32, 8>}, {pipeline_mode = #tpu.pipeline_mode<synchronous>, transform_indices = @transform_2, window_bounds = array<i64: 3, 4, 1, 8>}, {pipeline_mode = #tpu.pipeline_mode<synchronous>, transform_indices = @transform_3, window_bounds = array<i64: 4, 8, 32>}, {pipeline_mode = #tpu.pipeline_mode<synchronous>, transform_indices = @transform_4, window_bounds = array<i64: 1, 32>}, {pipeline_mode = #tpu.pipeline_mode<synchronous>, transform_indices = @transform_5, window_bounds = array<i64: 1, 32>}, {pipeline_mode = #tpu.pipeline_mode<synchronous>, transform_indices = @transform_6, window_bounds = array<i64: 1, 32>}, {pipeline_mode = #tpu.pipeline_mode<synchronous>, transform_indices = @transform_7, window_bounds = array<i64: 32, 64>}, {pipeline_mode = #tpu.pipeline_mode<synchronous>, transform_indices = @transform_8, window_bounds = array<i64: 1, 64>}, {pipeline_mode = #tpu.pipeline_mode<synchronous>, transform_indices = @transform_9, window_bounds = array<i64: 64, 32>}, {pipeline_mode = #tpu.pipeline_mode<synchronous>, transform_indices = @transform_10, window_bounds = array<i64: 1, 32>}, {transform_indices = @transform_11, window_bounds = array<i64: 1, 8, 32>}]} {
    %c0 = arith.constant 0 : index
    %c0_0 = arith.constant 0 : index
    %c0_1 = arith.constant 0 : index
    %0 = vector.load %arg1[%c0, %c0_0, %c0_1] : memref<1x8x32xbf16, #tpu.memory_space<vmem>>, vector<1x8x32xbf16>
    %1 = vector.shape_cast %0 : vector<1x8x32xbf16> to vector<8x32xbf16>
    %2 = vector.shape_cast %1 : vector<8x32xbf16> to vector<1x8x32xbf16>
    %3 = vector.shape_cast %2 : vector<1x8x32xbf16> to vector<1x8x32xbf16>
    %4 = vector.broadcast %3 : vector<1x8x32xbf16> to vector<4x8x32xbf16>
    %c0_2 = arith.constant 0 : index
    %c0_3 = arith.constant 0 : index
    %c0_4 = arith.constant 0 : index
    %c0_5 = arith.constant 0 : index
    %5 = vector.load %arg2[%c0_2, %c0_3, %c0_4, %c0_5] : memref<3x4x32x8xbf16, #tpu.memory_space<vmem>>, vector<1x4x32x8xbf16>
    %6 = vector.shape_cast %5 : vector<1x4x32x8xbf16> to vector<4x32x8xbf16>
    "tpu.trace_start"() <{level = 10 : i32, message = "hsd,hdk->hsk"}> : () -> ()
    %cst = arith.constant dense<0.000000e+00> : vector<4x8x8xf32>
    %7 = tpu.matmul %4, %6, %cst {dimension_numbers = #tpu.dot_dimension_numbers<[2], [1], [1], [2], [0, 0, 0, 1, 1, 2], [0], [0]>} : vector<4x8x32xbf16>, vector<4x32x8xbf16>, vector<4x8x8xf32> -> vector<4x8x8xf32>
    "tpu.trace_stop"() : () -> ()
    %c0_6 = arith.constant 0 : index
    %c0_7 = arith.constant 0 : index
    %c0_8 = arith.constant 0 : index
    %c0_9 = arith.constant 0 : index
    %8 = vector.load %arg3[%c0_6, %c0_7, %c0_8, %c0_9] : memref<3x4x1x8xf32, #tpu.memory_space<vmem>>, vector<1x4x1x8xf32>
    %9 = vector.shape_cast %8 : vector<1x4x1x8xf32> to vector<4x1x8xf32>
    %10 = vector.broadcast %9 : vector<4x1x8xf32> to vector<4x8x8xf32>
    %11 = arith.addf %7, %10 : vector<4x8x8xf32>
    %12 = arith.truncf %11 : vector<4x8x8xf32> to vector<4x8x8xbf16>
    %c1 = arith.constant 1 : index
    %c0_10 = arith.constant 0 : index
    %c0_11 = arith.constant 0 : index
    %c0_12 = arith.constant 0 : index
    %13 = vector.load %arg2[%c1, %c0_10, %c0_11, %c0_12] : memref<3x4x32x8xbf16, #tpu.memory_space<vmem>>, vector<1x4x32x8xbf16>
    %14 = vector.shape_cast %13 : vector<1x4x32x8xbf16> to vector<4x32x8xbf16>
    "tpu.trace_start"() <{level = 10 : i32, message = "hsd,hdk->hsk"}> : () -> ()
    %cst_13 = arith.constant dense<0.000000e+00> : vector<4x8x8xf32>
    %15 = tpu.matmul %4, %14, %cst_13 {dimension_numbers = #tpu.dot_dimension_numbers<[2], [1], [1], [2], [0, 0, 0, 1, 1, 2], [0], [0]>} : vector<4x8x32xbf16>, vector<4x32x8xbf16>, vector<4x8x8xf32> -> vector<4x8x8xf32>
    "tpu.trace_stop"() : () -> ()
    %c1_14 = arith.constant 1 : index
    %c0_15 = arith.constant 0 : index
    %c0_16 = arith.constant 0 : index
    %c0_17 = arith.constant 0 : index
    %16 = vector.load %arg3[%c1_14, %c0_15, %c0_16, %c0_17] : memref<3x4x1x8xf32, #tpu.memory_space<vmem>>, vector<1x4x1x8xf32>
    %17 = vector.shape_cast %16 : vector<1x4x1x8xf32> to vector<4x1x8xf32>
    %18 = vector.broadcast %17 : vector<4x1x8xf32> to vector<4x8x8xf32>
    %19 = arith.addf %15, %18 : vector<4x8x8xf32>
    %20 = arith.truncf %19 : vector<4x8x8xf32> to vector<4x8x8xbf16>
    %c2 = arith.constant 2 : index
    %c0_18 = arith.constant 0 : index
    %c0_19 = arith.constant 0 : index
    %c0_20 = arith.constant 0 : index
    %21 = vector.load %arg2[%c2, %c0_18, %c0_19, %c0_20] : memref<3x4x32x8xbf16, #tpu.memory_space<vmem>>, vector<1x4x32x8xbf16>
    %22 = vector.shape_cast %21 : vector<1x4x32x8xbf16> to vector<4x32x8xbf16>
    "tpu.trace_start"() <{level = 10 : i32, message = "hsd,hdk->hsk"}> : () -> ()
    %cst_21 = arith.constant dense<0.000000e+00> : vector<4x8x8xf32>
    %23 = tpu.matmul %4, %22, %cst_21 {dimension_numbers = #tpu.dot_dimension_numbers<[2], [1], [1], [2], [0, 0, 0, 1, 1, 2], [0], [0]>} : vector<4x8x32xbf16>, vector<4x32x8xbf16>, vector<4x8x8xf32> -> vector<4x8x8xf32>
    "tpu.trace_stop"() : () -> ()
    %c2_22 = arith.constant 2 : index
    %c0_23 = arith.constant 0 : index
    %c0_24 = arith.constant 0 : index
    %c0_25 = arith.constant 0 : index
    %24 = vector.load %arg3[%c2_22, %c0_23, %c0_24, %c0_25] : memref<3x4x1x8xf32, #tpu.memory_space<vmem>>, vector<1x4x1x8xf32>
    %25 = vector.shape_cast %24 : vector<1x4x1x8xf32> to vector<4x1x8xf32>
    %26 = vector.broadcast %25 : vector<4x1x8xf32> to vector<4x8x8xf32>
    %27 = arith.addf %23, %26 : vector<4x8x8xf32>
    %28 = arith.truncf %27 : vector<4x8x8xf32> to vector<4x8x8xbf16>
    "tpu.trace_start"() <{level = 10 : i32, message = "hqd,hkd->hqk"}> : () -> ()
    %cst_26 = arith.constant dense<0.000000e+00> : vector<4x8x8xf32>
    %29 = tpu.matmul %12, %20, %cst_26 {dimension_numbers = #tpu.dot_dimension_numbers<[2], [2], [1], [1], [0, 0, 0, 1, 1, 1], [0], [0]>} : vector<4x8x8xbf16>, vector<4x8x8xbf16>, vector<4x8x8xf32> -> vector<4x8x8xf32>
    "tpu.trace_stop"() : () -> ()
    %cst_27 = arith.constant dense<0xFF800000> : vector<4x8xf32>
    %30 = vector.multi_reduction <maximumf>, %29, %cst_27 [2] : vector<4x8x8xf32> to vector<4x8xf32>
    %31 = vector.shape_cast %30 : vector<4x8xf32> to vector<4x8x1xf32>
    %32 = vector.broadcast %31 : vector<4x8x1xf32> to vector<4x8x8xf32>
    %33 = arith.subf %29, %32 : vector<4x8x8xf32>
    %34 = math.exp %33 : vector<4x8x8xf32>
    %cst_28 = arith.constant dense<0.000000e+00> : vector<4x8xf32>
    %35 = vector.multi_reduction <add>, %34, %cst_28 [2] : vector<4x8x8xf32> to vector<4x8xf32>
    %36 = vector.shape_cast %35 : vector<4x8xf32> to vector<4x8x1xf32>
    %37 = tpu.reciprocal %36 {approx = true} : vector<4x8x1xf32> -> vector<4x8x1xf32>
    %38 = vector.broadcast %37 : vector<4x8x1xf32> to vector<4x8x8xf32>
    %39 = arith.mulf %34, %38 : vector<4x8x8xf32>
    %40 = arith.truncf %39 : vector<4x8x8xf32> to vector<4x8x8xbf16>
    "tpu.trace_start"() <{level = 10 : i32, message = "hqk,hkd->hqd"}> : () -> ()
    %cst_29 = arith.constant dense<0.000000e+00> : vector<4x8x8xf32>
    %41 = tpu.matmul %40, %28, %cst_29 {dimension_numbers = #tpu.dot_dimension_numbers<[2], [1], [1], [2], [0, 0, 0, 1, 1, 2], [0], [0]>} : vector<4x8x8xbf16>, vector<4x8x8xbf16>, vector<4x8x8xf32> -> vector<4x8x8xf32>
    "tpu.trace_stop"() : () -> ()
    %42 = arith.truncf %41 : vector<4x8x8xf32> to vector<4x8x8xbf16>
    %43 = vector.extract_strided_slice %42 {offsets = [0, 0, 0], sizes = [1, 8, 8], strides = [1, 1, 1]} : vector<4x8x8xbf16> to vector<1x8x8xbf16>
    %44 = vector.shape_cast %43 : vector<1x8x8xbf16> to vector<8x8xbf16>
    %c0_30 = arith.constant 0 : index
    %c0_31 = arith.constant 0 : index
    %c0_32 = arith.constant 0 : index
    %45 = vector.load %arg4[%c0_30, %c0_31, %c0_32] : memref<4x8x32xbf16, #tpu.memory_space<vmem>>, vector<1x8x32xbf16>
    %46 = vector.shape_cast %45 : vector<1x8x32xbf16> to vector<8x32xbf16>
    %cst_33 = arith.constant dense<0.000000e+00> : vector<8x32xf32>
    %47 = tpu.matmul %44, %46, %cst_33 {dimension_numbers = #tpu.dot_dimension_numbers<[1], [0], [0], [1], [0, 0, 1, 1], [], []>} : vector<8x8xbf16>, vector<8x32xbf16>, vector<8x32xf32> -> vector<8x32xf32>
    %48 = vector.extract_strided_slice %42 {offsets = [1, 0, 0], sizes = [1, 8, 8], strides = [1, 1, 1]} : vector<4x8x8xbf16> to vector<1x8x8xbf16>
    %49 = vector.shape_cast %48 : vector<1x8x8xbf16> to vector<8x8xbf16>
    %c1_34 = arith.constant 1 : index
    %c0_35 = arith.constant 0 : index
    %c0_36 = arith.constant 0 : index
    %50 = vector.load %arg4[%c1_34, %c0_35, %c0_36] : memref<4x8x32xbf16, #tpu.memory_space<vmem>>, vector<1x8x32xbf16>
    %51 = vector.shape_cast %50 : vector<1x8x32xbf16> to vector<8x32xbf16>
    %cst_37 = arith.constant dense<0.000000e+00> : vector<8x32xf32>
    %52 = tpu.matmul %49, %51, %cst_37 {dimension_numbers = #tpu.dot_dimension_numbers<[1], [0], [0], [1], [0, 0, 1, 1], [], []>} : vector<8x8xbf16>, vector<8x32xbf16>, vector<8x32xf32> -> vector<8x32xf32>
    %53 = arith.addf %47, %52 : vector<8x32xf32>
    %54 = vector.extract_strided_slice %42 {offsets = [2, 0, 0], sizes = [1, 8, 8], strides = [1, 1, 1]} : vector<4x8x8xbf16> to vector<1x8x8xbf16>
    %55 = vector.shape_cast %54 : vector<1x8x8xbf16> to vector<8x8xbf16>
    %c2_38 = arith.constant 2 : index
    %c0_39 = arith.constant 0 : index
    %c0_40 = arith.constant 0 : index
    %56 = vector.load %arg4[%c2_38, %c0_39, %c0_40] : memref<4x8x32xbf16, #tpu.memory_space<vmem>>, vector<1x8x32xbf16>
    %57 = vector.shape_cast %56 : vector<1x8x32xbf16> to vector<8x32xbf16>
    %cst_41 = arith.constant dense<0.000000e+00> : vector<8x32xf32>
    %58 = tpu.matmul %55, %57, %cst_41 {dimension_numbers = #tpu.dot_dimension_numbers<[1], [0], [0], [1], [0, 0, 1, 1], [], []>} : vector<8x8xbf16>, vector<8x32xbf16>, vector<8x32xf32> -> vector<8x32xf32>
    %59 = arith.addf %53, %58 : vector<8x32xf32>
    %60 = vector.extract_strided_slice %42 {offsets = [3, 0, 0], sizes = [1, 8, 8], strides = [1, 1, 1]} : vector<4x8x8xbf16> to vector<1x8x8xbf16>
    %61 = vector.shape_cast %60 : vector<1x8x8xbf16> to vector<8x8xbf16>
    %c3 = arith.constant 3 : index
    %c0_42 = arith.constant 0 : index
    %c0_43 = arith.constant 0 : index
    %62 = vector.load %arg4[%c3, %c0_42, %c0_43] : memref<4x8x32xbf16, #tpu.memory_space<vmem>>, vector<1x8x32xbf16>
    %63 = vector.shape_cast %62 : vector<1x8x32xbf16> to vector<8x32xbf16>
    %cst_44 = arith.constant dense<0.000000e+00> : vector<8x32xf32>
    %64 = tpu.matmul %61, %63, %cst_44 {dimension_numbers = #tpu.dot_dimension_numbers<[1], [0], [0], [1], [0, 0, 1, 1], [], []>} : vector<8x8xbf16>, vector<8x32xbf16>, vector<8x32xf32> -> vector<8x32xf32>
    %65 = arith.addf %59, %64 : vector<8x32xf32>
    %c0_45 = arith.constant 0 : index
    %c0_46 = arith.constant 0 : index
    %66 = vector.load %arg5[%c0_45, %c0_46] : memref<1x32xf32, #tpu.memory_space<vmem>>, vector<1x32xf32>
    %67 = vector.broadcast %66 : vector<1x32xf32> to vector<8x32xf32>
    %68 = arith.addf %65, %67 : vector<8x32xf32>
    %c0_47 = arith.constant 0 : index
    %c0_48 = arith.constant 0 : index
    %69 = vector.load %arg6[%c0_47, %c0_48] : memref<1x32xf32, #tpu.memory_space<vmem>>, vector<1x32xf32>
    %c0_49 = arith.constant 0 : index
    %c0_50 = arith.constant 0 : index
    %70 = vector.load %arg7[%c0_49, %c0_50] : memref<1x32xf32, #tpu.memory_space<vmem>>, vector<1x32xf32>
    %71 = arith.extf %1 : vector<8x32xbf16> to vector<8x32xf32>
    %72 = arith.addf %71, %68 : vector<8x32xf32>
    %cst_51 = arith.constant dense<0.000000e+00> : vector<8xf32>
    %73 = vector.multi_reduction <add>, %72, %cst_51 [1] : vector<8x32xf32> to vector<8xf32>
    %74 = vector.shape_cast %73 : vector<8xf32> to vector<8x1xf32>
    %cst_52 = arith.constant 3.200000e+01 : f32
    %75 = vector.broadcast %cst_52 : f32 to vector<8x1xf32>
    %76 = arith.divf %74, %75 : vector<8x1xf32>
    %77 = vector.broadcast %76 : vector<8x1xf32> to vector<8x32xf32>
    %78 = arith.subf %72, %77 : vector<8x32xf32>
    %79 = arith.mulf %78, %78 : vector<8x32xf32>
    %cst_53 = arith.constant dense<0.000000e+00> : vector<8xf32>
    %80 = vector.multi_reduction <add>, %79, %cst_53 [1] : vector<8x32xf32> to vector<8xf32>
    %81 = vector.shape_cast %80 : vector<8xf32> to vector<8x1xf32>
    %cst_54 = arith.constant 3.200000e+01 : f32
    %82 = vector.broadcast %cst_54 : f32 to vector<8x1xf32>
    %83 = arith.divf %81, %82 : vector<8x1xf32>
    %84 = vector.broadcast %76 : vector<8x1xf32> to vector<8x32xf32>
    %85 = arith.subf %72, %84 : vector<8x32xf32>
    %cst_55 = arith.constant 9.99999974E-6 : f32
    %86 = vector.broadcast %cst_55 : f32 to vector<8x1xf32>
    %87 = arith.addf %83, %86 : vector<8x1xf32>
    %88 = math.rsqrt %87 : vector<8x1xf32>
    %89 = vector.broadcast %88 : vector<8x1xf32> to vector<8x32xf32>
    %90 = arith.mulf %85, %89 : vector<8x32xf32>
    %91 = vector.broadcast %69 : vector<1x32xf32> to vector<8x32xf32>
    %92 = arith.mulf %90, %91 : vector<8x32xf32>
    %93 = vector.broadcast %70 : vector<1x32xf32> to vector<8x32xf32>
    %94 = arith.addf %92, %93 : vector<8x32xf32>
    %95 = arith.truncf %94 : vector<8x32xf32> to vector<8x32xbf16>
    %c0_56 = arith.constant 0 : index
    %c0_57 = arith.constant 0 : index
    %96 = vector.load %arg8[%c0_56, %c0_57] : memref<32x64xbf16, #tpu.memory_space<vmem>>, vector<32x64xbf16>
    %cst_58 = arith.constant dense<0.000000e+00> : vector<8x64xf32>
    %97 = tpu.matmul %95, %96, %cst_58 {dimension_numbers = #tpu.dot_dimension_numbers<[1], [0], [0], [1], [0, 0, 1, 1], [], []>} : vector<8x32xbf16>, vector<32x64xbf16>, vector<8x64xf32> -> vector<8x64xf32>
    %c0_59 = arith.constant 0 : index
    %c0_60 = arith.constant 0 : index
    %98 = vector.load %arg9[%c0_59, %c0_60] : memref<1x64xf32, #tpu.memory_space<vmem>>, vector<1x64xf32>
    %99 = vector.broadcast %98 : vector<1x64xf32> to vector<8x64xf32>
    %100 = arith.addf %97, %99 : vector<8x64xf32>
    %cst_61 = arith.constant 0.000000e+00 : f32
    %101 = vector.broadcast %cst_61 : f32 to vector<8x64xf32>
    %102 = arith.maximumf %100, %101 : vector<8x64xf32>
    %103 = arith.truncf %102 : vector<8x64xf32> to vector<8x64xbf16>
    %c0_62 = arith.constant 0 : index
    %c0_63 = arith.constant 0 : index
    %104 = vector.load %arg10[%c0_62, %c0_63] : memref<64x32xbf16, #tpu.memory_space<vmem>>, vector<64x32xbf16>
    %cst_64 = arith.constant dense<0.000000e+00> : vector<8x32xf32>
    %105 = tpu.matmul %103, %104, %cst_64 {dimension_numbers = #tpu.dot_dimension_numbers<[1], [0], [0], [1], [0, 0, 1, 1], [], []>} : vector<8x64xbf16>, vector<64x32xbf16>, vector<8x32xf32> -> vector<8x32xf32>
    %c0_65 = arith.constant 0 : index
    %c0_66 = arith.constant 0 : index
    %106 = vector.load %arg11[%c0_65, %c0_66] : memref<1x32xf32, #tpu.memory_space<vmem>>, vector<1x32xf32>
    %107 = vector.broadcast %106 : vector<1x32xf32> to vector<8x32xf32>
    %108 = arith.addf %105, %107 : vector<8x32xf32>
    %109 = arith.addf %94, %108 : vector<8x32xf32>
    %cst_67 = arith.constant dense<0.000000e+00> : vector<8xf32>
    %110 = vector.multi_reduction <add>, %109, %cst_67 [1] : vector<8x32xf32> to vector<8xf32>
    %111 = vector.shape_cast %110 : vector<8xf32> to vector<8x1xf32>
    %cst_68 = arith.constant 3.200000e+01 : f32
    %112 = vector.broadcast %cst_68 : f32 to vector<8x1xf32>
    %113 = arith.divf %111, %112 : vector<8x1xf32>
    %114 = vector.broadcast %113 : vector<8x1xf32> to vector<8x32xf32>
    %115 = arith.subf %109, %114 : vector<8x32xf32>
    %116 = arith.mulf %115, %115 : vector<8x32xf32>
    %cst_69 = arith.constant dense<0.000000e+00> : vector<8xf32>
    %117 = vector.multi_reduction <add>, %116, %cst_69 [1] : vector<8x32xf32> to vector<8xf32>
    %118 = vector.shape_cast %117 : vector<8xf32> to vector<8x1xf32>
    %cst_70 = arith.constant 3.200000e+01 : f32
    %119 = vector.broadcast %cst_70 : f32 to vector<8x1xf32>
    %120 = arith.divf %118, %119 : vector<8x1xf32>
    %121 = vector.broadcast %113 : vector<8x1xf32> to vector<8x32xf32>
    %122 = arith.subf %109, %121 : vector<8x32xf32>
    %cst_71 = arith.constant 9.99999974E-6 : f32
    %123 = vector.broadcast %cst_71 : f32 to vector<8x1xf32>
    %124 = arith.addf %120, %123 : vector<8x1xf32>
    %125 = math.rsqrt %124 : vector<8x1xf32>
    %126 = vector.broadcast %125 : vector<8x1xf32> to vector<8x32xf32>
    %127 = arith.mulf %122, %126 : vector<8x32xf32>
    %128 = vector.broadcast %69 : vector<1x32xf32> to vector<8x32xf32>
    %129 = arith.mulf %127, %128 : vector<8x32xf32>
    %130 = vector.broadcast %70 : vector<1x32xf32> to vector<8x32xf32>
    %131 = arith.addf %129, %130 : vector<8x32xf32>
    %132 = arith.truncf %131 : vector<8x32xf32> to vector<8x32xbf16>
    %c0_72 = arith.constant 0 : index
    %c0_73 = arith.constant 0 : index
    %c0_74 = arith.constant 0 : index
    %133 = vector.load %arg12[%c0_72, %c0_73, %c0_74] : memref<1x8x32xbf16, #tpu.memory_space<vmem>>, vector<1x8x32xbf16>
    %134 = vector.shape_cast %133 : vector<1x8x32xbf16> to vector<8x32xbf16>
    %135 = vector.shape_cast %132 : vector<8x32xbf16> to vector<1x8x32xbf16>
    tpu.vector_store %arg12[%c0_72, %c0_73, %c0_74], %135 {strides = array<i32>} : memref<1x8x32xbf16, #tpu.memory_space<vmem>>, vector<1x8x32xbf16>,
    return
  }
  func.func @transform_0(%arg0: i32) -> (i32, i32, i32) {
    %c0_i32 = arith.constant 0 : i32
    %c0_i32_0 = arith.constant 0 : i32
    %c0_i32_1 = arith.constant 0 : i32
    return %arg0, %c0_i32, %c0_i32_0 : i32, i32, i32
  }
  func.func @transform_1(%arg0: i32) -> (i32, i32, i32, i32) {
    %c0_i32 = arith.constant 0 : i32
    %c0_i32_0 = arith.constant 0 : i32
    %c0_i32_1 = arith.constant 0 : i32
    %c0_i32_2 = arith.constant 0 : i32
    %c0_i32_3 = arith.constant 0 : i32
    return %c0_i32, %c0_i32_0, %c0_i32_1, %c0_i32_2 : i32, i32, i32, i32
  }
  func.func @transform_2(%arg0: i32) -> (i32, i32, i32, i32) {
    %c0_i32 = arith.constant 0 : i32
    %c0_i32_0 = arith.constant 0 : i32
    %c0_i32_1 = arith.constant 0 : i32
    %c0_i32_2 = arith.constant 0 : i32
    %c0_i32_3 = arith.constant 0 : i32
    return %c0_i32, %c0_i32_0, %c0_i32_1, %c0_i32_2 : i32, i32, i32, i32
  }
  func.func @transform_3(%arg0: i32) -> (i32, i32, i32) {
    %c0_i32 = arith.constant 0 : i32
    %c0_i32_0 = arith.constant 0 : i32
    %c0_i32_1 = arith.constant 0 : i32
    %c0_i32_2 = arith.constant 0 : i32
    return %c0_i32, %c0_i32_0, %c0_i32_1 : i32, i32, i32
  }
  func.func @transform_4(%arg0: i32) -> (i32, i32) {
    %c0_i32 = arith.constant 0 : i32
    %c0_i32_0 = arith.constant 0 : i32
    %c0_i32_1 = arith.constant 0 : i32
    return %c0_i32, %c0_i32_0 : i32, i32
  }
  func.func @transform_5(%arg0: i32) -> (i32, i32) {
    %c0_i32 = arith.constant 0 : i32
    %c0_i32_0 = arith.constant 0 : i32
    %c0_i32_1 = arith.constant 0 : i32
    return %c0_i32, %c0_i32_0 : i32, i32
  }
  func.func @transform_6(%arg0: i32) -> (i32, i32) {
    %c0_i32 = arith.constant 0 : i32
    %c0_i32_0 = arith.constant 0 : i32
    %c0_i32_1 = arith.constant 0 : i32
    return %c0_i32, %c0_i32_0 : i32, i32
  }
  func.func @transform_7(%arg0: i32) -> (i32, i32) {
    %c0_i32 = arith.constant 0 : i32
    %c0_i32_0 = arith.constant 0 : i32
    %c0_i32_1 = arith.constant 0 : i32
    return %c0_i32, %c0_i32_0 : i32, i32
  }
  func.func @transform_8(%arg0: i32) -> (i32, i32) {
    %c0_i32 = arith.constant 0 : i32
    %c0_i32_0 = arith.constant 0 : i32
    %c0_i32_1 = arith.constant 0 : i32
    return %c0_i32, %c0_i32_0 : i32, i32
  }
  func.func @transform_9(%arg0: i32) -> (i32, i32) {
    %c0_i32 = arith.constant 0 : i32
    %c0_i32_0 = arith.constant 0 : i32
    %c0_i32_1 = arith.constant 0 : i32
    return %c0_i32, %c0_i32_0 : i32, i32
  }
  func.func @transform_10(%arg0: i32) -> (i32, i32) {
    %c0_i32 = arith.constant 0 : i32
    %c0_i32_0 = arith.constant 0 : i32
    %c0_i32_1 = arith.constant 0 : i32
    return %c0_i32, %c0_i32_0 : i32, i32
  }
  func.func @transform_11(%arg0: i32) -> (i32, i32, i32) {
    %c0_i32 = arith.constant 0 : i32
    %c0_i32_0 = arith.constant 0 : i32
    %c0_i32_1 = arith.constant 0 : i32
    return %arg0, %c0_i32, %c0_i32_0 : i32, i32, i32
  }
}

module attributes {stable_mosaic.version = 11 : i64} {
  func.func @encoder_block_kernel(%arg0: i32, %arg1: memref<1x8x32xbf16, #tpu.memory_space<vmem>>, %arg2: memref<3x4x32x8xbf16, #tpu.memory_space<vmem>>, %arg3: memref<3x4x1x8xf32, #tpu.memory_space<vmem>>, %arg4: memref<4x8x32xbf16, #tpu.memory_space<vmem>>, %arg5: memref<1x32xf32, #tpu.memory_space<vmem>>, %arg6: memref<1x32xf32, #tpu.memory_space<vmem>>, %arg7: memref<1x32xf32, #tpu.memory_space<vmem>>, %arg8: memref<32x64xbf16, #tpu.memory_space<vmem>>, %arg9: memref<1x64xf32, #tpu.memory_space<vmem>>, %arg10: memref<64x32xbf16, #tpu.memory_space<vmem>>, %arg11: memref<1x32xf32, #tpu.memory_space<vmem>>, %arg12: memref<1x8x32xbf16, #tpu.memory_space<vmem>>) attributes {dimension_semantics = [#tpu.dimension_semantics<parallel>], iteration_bounds = array<i64: 2>, scalar_prefetch = 0 : i64, scratch_operands = 0 : i64, tpu.core_type = #tpu.core_type<tc>, window_params = [{transform_indices = @transform_0, window_bounds = array<i64: 1, 8, 32>}, {pipeline_mode = #tpu.pipeline_mode<synchronous>, transform_indices = @transform_1, window_bounds = array<i64: 3, 4, 32, 8>}, {pipeline_mode = #tpu.pipeline_mode<synchronous>, transform_indices = @transform_2, window_bounds = array<i64: 3, 4, 1, 8>}, {pipeline_mode = #tpu.pipeline_mode<synchronous>, transform_indices = @transform_3, window_bounds = array<i64: 4, 8, 32>}, {pipeline_mode = #tpu.pipeline_mode<synchronous>, transform_indices = @transform_4, window_bounds = array<i64: 1, 32>}, {pipeline_mode = #tpu.pipeline_mode<synchronous>, transform_indices = @transform_5, window_bounds = array<i64: 1, 32>}, {pipeline_mode = #tpu.pipeline_mode<synchronous>, transform_indices = @transform_6, window_bounds = array<i64: 1, 32>}, {pipeline_mode = #tpu.pipeline_mode<synchronous>, transform_indices = @transform_7, window_bounds = array<i64: 32, 64>}, {pipeline_mode = #tpu.pipeline_mode<synchronous>, transform_indices = @transform_8, window_bounds = array<i64: 1, 64>}, {pipeline_mode = #tpu.pipeline_mode<synchronous>, transform_indices = @transform_9, window_bounds = array<i64: 64, 32>}, {pipeline_mode = #tpu.pipeline_mode<synchronous>, transform_indices = @transform_10, window_bounds = array<i64: 1, 32>}, {transform_indices = @transform_11, window_bounds = array<i64: 1, 8, 32>}]} {
    %c0 = arith.constant 0 : index
    %c0_0 = arith.constant 0 : index
    %c0_1 = arith.constant 0 : index
    %0 = vector.load %arg1[%c0, %c0_0, %c0_1] : memref<1x8x32xbf16, #tpu.memory_space<vmem>>, vector<1x8x32xbf16>
    %1 = vector.shape_cast %0 : vector<1x8x32xbf16> to vector<8x32xbf16>
    %2 = vector.shape_cast %1 : vector<8x32xbf16> to vector<1x8x32xbf16>
    %3 = vector.shape_cast %2 : vector<1x8x32xbf16> to vector<1x8x32xbf16>
    %4 = vector.broadcast %3 : vector<1x8x32xbf16> to vector<4x8x32xbf16>
    %c0_2 = arith.constant 0 : index
    %c0_3 = arith.constant 0 : index
    %c0_4 = arith.constant 0 : index
    %c0_5 = arith.constant 0 : index
    %5 = vector.load %arg2[%c0_2, %c0_3, %c0_4, %c0_5] : memref<3x4x32x8xbf16, #tpu.memory_space<vmem>>, vector<1x4x32x8xbf16>
    %6 = vector.shape_cast %5 : vector<1x4x32x8xbf16> to vector<4x32x8xbf16>
    "tpu.trace_start"() <{level = 10 : i32, message = "hsd,hdk->hsk"}> : () -> ()
    %cst = arith.constant dense<0.000000e+00> : vector<4x8x8xf32>
    %7 = tpu.matmul %4, %6, %cst {dimension_numbers = #tpu.dot_dimension_numbers<[2], [1], [1], [2], [0, 0, 0, 1, 1, 2], [0], [0]>} : vector<4x8x32xbf16>, vector<4x32x8xbf16>, vector<4x8x8xf32> -> vector<4x8x8xf32>
    "tpu.trace_stop"() : () -> ()
    %c0_6 = arith.constant 0 : index
    %c0_7 = arith.constant 0 : index
    %c0_8 = arith.constant 0 : index
    %c0_9 = arith.constant 0 : index
    %8 = vector.load %arg3[%c0_6, %c0_7, %c0_8, %c0_9] : memref<3x4x1x8xf32, #tpu.memory_space<vmem>>, vector<1x4x1x8xf32>
    %9 = vector.shape_cast %8 : vector<1x4x1x8xf32> to vector<4x1x8xf32>
    %10 = vector.broadcast %9 : vector<4x1x8xf32> to vector<4x8x8xf32>
    %11 = arith.addf %7, %10 : vector<4x8x8xf32>
    %12 = arith.truncf %11 : vector<4x8x8xf32> to vector<4x8x8xbf16>
    %c1 = arith.constant 1 : index
    %c0_10 = arith.constant 0 : index
    %c0_11 = arith.constant 0 : index
    %c0_12 = arith.constant 0 : index
    %13 = vector.load %arg2[%c1, %c0_10, %c0_11, %c0_12] : memref<3x4x32x8xbf16, #tpu.memory_space<vmem>>, vector<1x4x32x8xbf16>
    %14 = vector.shape_cast %13 : vector<1x4x32x8xbf16> to vector<4x32x8xbf16>
    "tpu.trace_start"() <{level = 10 : i32, message = "hsd,hdk->hsk"}> : () -> ()
    %cst_13 = arith.constant dense<0.000000e+00> : vector<4x8x8xf32>
    %15 = tpu.matmul %4, %14, %cst_13 {dimension_numbers = #tpu.dot_dimension_numbers<[2], [1], [1], [2], [0, 0, 0, 1, 1, 2], [0], [0]>} : vector<4x8x32xbf16>, vector<4x32x8xbf16>, vector<4x8x8xf32> -> vector<4x8x8xf32>
    "tpu.trace_stop"() : () -> ()
    %c1_14 = arith.constant 1 : index
    %c0_15 = arith.constant 0 : index
    %c0_16 = arith.constant 0 : index
    %c0_17 = arith.constant 0 : index
    %16 = vector.load %arg3[%c1_14, %c0_15, %c0_16, %c0_17] : memref<3x4x1x8xf32, #tpu.memory_space<vmem>>, vector<1x4x1x8xf32>
    %17 = vector.shape_cast %16 : vector<1x4x1x8xf32> to vector<4x1x8xf32>
    %18 = vector.broadcast %17 : vector<4x1x8xf32> to vector<4x8x8xf32>
    %19 = arith.addf %15, %18 : vector<4x8x8xf32>
    %20 = arith.truncf %19 : vector<4x8x8xf32> to vector<4x8x8xbf16>
    %c2 = arith.constant 2 : index
    %c0_18 = arith.constant 0 : index
    %c0_19 = arith.constant 0 : index
    %c0_20 = arith.constant 0 : index
    %21 = vector.load %arg2[%c2, %c0_18, %c0_19, %c0_20] : memref<3x4x32x8xbf16, #tpu.memory_space<vmem>>, vector<1x4x32x8xbf16>
    %22 = vector.shape_cast %21 : vector<1x4x32x8xbf16> to vector<4x32x8xbf16>
    "tpu.trace_start"() <{level = 10 : i32, message = "hsd,hdk->hsk"}> : () -> ()
    %cst_21 = arith.constant dense<0.000000e+00> : vector<4x8x8xf32>
    %23 = tpu.matmul %4, %22, %cst_21 {dimension_numbers = #tpu.dot_dimension_numbers<[2], [1], [1], [2], [0, 0, 0, 1, 1, 2], [0], [0]>} : vector<4x8x32xbf16>, vector<4x32x8xbf16>, vector<4x8x8xf32> -> vector<4x8x8xf32>
    "tpu.trace_stop"() : () -> ()
    %c2_22 = arith.constant 2 : index
    %c0_23 = arith.constant 0 : index
    %c0_24 = arith.constant 0 : index
    %c0_25 = arith.constant 0 : index
    %24 = vector.load %arg3[%c2_22, %c0_23, %c0_24, %c0_25] : memref<3x4x1x8xf32, #tpu.memory_space<vmem>>, vector<1x4x1x8xf32>
    %25 = vector.shape_cast %24 : vector<1x4x1x8xf32> to vector<4x1x8xf32>
    %26 = vector.broadcast %25 : vector<4x1x8xf32> to vector<4x8x8xf32>
    %27 = arith.addf %23, %26 : vector<4x8x8xf32>
    %28 = arith.truncf %27 : vector<4x8x8xf32> to vector<4x8x8xbf16>
    "tpu.trace_start"() <{level = 10 : i32, message = "hqd,hkd->hqk"}> : () -> ()
    %cst_26 = arith.constant dense<0.000000e+00> : vector<4x8x8xf32>
    %29 = tpu.matmul %12, %20, %cst_26 {dimension_numbers = #tpu.dot_dimension_numbers<[2], [2], [1], [1], [0, 0, 0, 1, 1, 1], [0], [0]>} : vector<4x8x8xbf16>, vector<4x8x8xbf16>, vector<4x8x8xf32> -> vector<4x8x8xf32>
    "tpu.trace_stop"() : () -> ()
    %cst_27 = arith.constant dense<0xFF800000> : vector<4x8xf32>
    %30 = vector.multi_reduction <maximumf>, %29, %cst_27 [2] : vector<4x8x8xf32> to vector<4x8xf32>
    %31 = vector.shape_cast %30 : vector<4x8xf32> to vector<4x8x1xf32>
    %32 = vector.broadcast %31 : vector<4x8x1xf32> to vector<4x8x8xf32>
    %33 = arith.subf %29, %32 : vector<4x8x8xf32>
    %34 = math.exp %33 : vector<4x8x8xf32>
    %cst_28 = arith.constant dense<0.000000e+00> : vector<4x8xf32>
    %35 = vector.multi_reduction <add>, %34, %cst_28 [2] : vector<4x8x8xf32> to vector<4x8xf32>
    %36 = vector.shape_cast %35 : vector<4x8xf32> to vector<4x8x1xf32>
    %37 = tpu.reciprocal %36 {approx = true} : vector<4x8x1xf32> -> vector<4x8x1xf32>
    %38 = vector.broadcast %37 : vector<4x8x1xf32> to vector<4x8x8xf32>
    %39 = arith.mulf %34, %38 : vector<4x8x8xf32>
    %40 = arith.truncf %39 : vector<4x8x8xf32> to vector<4x8x8xbf16>
    "tpu.trace_start"() <{level = 10 : i32, message = "hqk,hkd->hqd"}> : () -> ()
    %cst_29 = arith.constant dense<0.000000e+00> : vector<4x8x8xf32>
    %41 = tpu.matmul %40, %28, %cst_29 {dimension_numbers = #tpu.dot_dimension_numbers<[2], [1], [1], [2], [0, 0, 0, 1, 1, 2], [0], [0]>} : vector<4x8x8xbf16>, vector<4x8x8xbf16>, vector<4x8x8xf32> -> vector<4x8x8xf32>
    "tpu.trace_stop"() : () -> ()
    %42 = arith.truncf %41 : vector<4x8x8xf32> to vector<4x8x8xbf16>
    %43 = vector.extract_strided_slice %42 {offsets = [0, 0, 0], sizes = [1, 8, 8], strides = [1, 1, 1]} : vector<4x8x8xbf16> to vector<1x8x8xbf16>
    %44 = vector.shape_cast %43 : vector<1x8x8xbf16> to vector<8x8xbf16>
    %c0_30 = arith.constant 0 : index
    %c0_31 = arith.constant 0 : index
    %c0_32 = arith.constant 0 : index
    %45 = vector.load %arg4[%c0_30, %c0_31, %c0_32] : memref<4x8x32xbf16, #tpu.memory_space<vmem>>, vector<1x8x32xbf16>
    %46 = vector.shape_cast %45 : vector<1x8x32xbf16> to vector<8x32xbf16>
    %cst_33 = arith.constant dense<0.000000e+00> : vector<8x32xf32>
    %47 = tpu.matmul %44, %46, %cst_33 {dimension_numbers = #tpu.dot_dimension_numbers<[1], [0], [0], [1], [0, 0, 1, 1], [], []>} : vector<8x8xbf16>, vector<8x32xbf16>, vector<8x32xf32> -> vector<8x32xf32>
    %48 = vector.extract_strided_slice %42 {offsets = [1, 0, 0], sizes = [1, 8, 8], strides = [1, 1, 1]} : vector<4x8x8xbf16> to vector<1x8x8xbf16>
    %49 = vector.shape_cast %48 : vector<1x8x8xbf16> to vector<8x8xbf16>
    %c1_34 = arith.constant 1 : index
    %c0_35 = arith.constant 0 : index
    %c0_36 = arith.constant 0 : index
    %50 = vector.load %arg4[%c1_34, %c0_35, %c0_36] : memref<4x8x32xbf16, #tpu.memory_space<vmem>>, vector<1x8x32xbf16>
    %51 = vector.shape_cast %50 : vector<1x8x32xbf16> to vector<8x32xbf16>
    %cst_37 = arith.constant dense<0.000000e+00> : vector<8x32xf32>
    %52 = tpu.matmul %49, %51, %cst_37 {dimension_numbers = #tpu.dot_dimension_numbers<[1], [0], [0], [1], [0, 0, 1, 1], [], []>} : vector<8x8xbf16>, vector<8x32xbf16>, vector<8x32xf32> -> vector<8x32xf32>
    %53 = arith.addf %47, %52 : vector<8x32xf32>
    %54 = vector.extract_strided_slice %42 {offsets = [2, 0, 0], sizes = [1, 8, 8], strides = [1, 1, 1]} : vector<4x8x8xbf16> to vector<1x8x8xbf16>
    %55 = vector.shape_cast %54 : vector<1x8x8xbf16> to vector<8x8xbf16>
    %c2_38 = arith.constant 2 : index
    %c0_39 = arith.constant 0 : index
    %c0_40 = arith.constant 0 : index
    %56 = vector.load %arg4[%c2_38, %c0_39, %c0_40] : memref<4x8x32xbf16, #tpu.memory_space<vmem>>, vector<1x8x32xbf16>
    %57 = vector.shape_cast %56 : vector<1x8x32xbf16> to vector<8x32xbf16>
    %cst_41 = arith.constant dense<0.000000e+00> : vector<8x32xf32>
    %58 = tpu.matmul %55, %57, %cst_41 {dimension_numbers = #tpu.dot_dimension_numbers<[1], [0], [0], [1], [0, 0, 1, 1], [], []>} : vector<8x8xbf16>, vector<8x32xbf16>, vector<8x32xf32> -> vector<8x32xf32>
    %59 = arith.addf %53, %58 : vector<8x32xf32>
    %60 = vector.extract_strided_slice %42 {offsets = [3, 0, 0], sizes = [1, 8, 8], strides = [1, 1, 1]} : vector<4x8x8xbf16> to vector<1x8x8xbf16>
    %61 = vector.shape_cast %60 : vector<1x8x8xbf16> to vector<8x8xbf16>
    %c3 = arith.constant 3 : index
    %c0_42 = arith.constant 0 : index
    %c0_43 = arith.constant 0 : index
    %62 = vector.load %arg4[%c3, %c0_42, %c0_43] : memref<4x8x32xbf16, #tpu.memory_space<vmem>>, vector<1x8x32xbf16>
    %63 = vector.shape_cast %62 : vector<1x8x32xbf16> to vector<8x32xbf16>
    %cst_44 = arith.constant dense<0.000000e+00> : vector<8x32xf32>
    %64 = tpu.matmul %61, %63, %cst_44 {dimension_numbers = #tpu.dot_dimension_numbers<[1], [0], [0], [1], [0, 0, 1, 1], [], []>} : vector<8x8xbf16>, vector<8x32xbf16>, vector<8x32xf32> -> vector<8x32xf32>
    %65 = arith.addf %59, %64 : vector<8x32xf32>
    %c0_45 = arith.constant 0 : index
    %c0_46 = arith.constant 0 : index
    %66 = vector.load %arg5[%c0_45, %c0_46] : memref<1x32xf32, #tpu.memory_space<vmem>>, vector<1x32xf32>
    %67 = vector.broadcast %66 : vector<1x32xf32> to vector<8x32xf32>
    %68 = arith.addf %65, %67 : vector<8x32xf32>
    %c0_47 = arith.constant 0 : index
    %c0_48 = arith.constant 0 : index
    %69 = vector.load %arg6[%c0_47, %c0_48] : memref<1x32xf32, #tpu.memory_space<vmem>>, vector<1x32xf32>
    %c0_49 = arith.constant 0 : index
    %c0_50 = arith.constant 0 : index
    %70 = vector.load %arg7[%c0_49, %c0_50] : memref<1x32xf32, #tpu.memory_space<vmem>>, vector<1x32xf32>
    %71 = arith.extf %1 : vector<8x32xbf16> to vector<8x32xf32>
    %72 = arith.addf %71, %68 : vector<8x32xf32>
    %cst_51 = arith.constant dense<0.000000e+00> : vector<8xf32>
    %73 = vector.multi_reduction <add>, %72, %cst_51 [1] : vector<8x32xf32> to vector<8xf32>
    %74 = vector.shape_cast %73 : vector<8xf32> to vector<8x1xf32>
    %cst_52 = arith.constant 3.200000e+01 : f32
    %75 = vector.broadcast %cst_52 : f32 to vector<8x1xf32>
    %76 = arith.divf %74, %75 : vector<8x1xf32>
    %77 = vector.broadcast %76 : vector<8x1xf32> to vector<8x32xf32>
    %78 = arith.subf %72, %77 : vector<8x32xf32>
    %79 = arith.mulf %78, %78 : vector<8x32xf32>
    %cst_53 = arith.constant dense<0.000000e+00> : vector<8xf32>
    %80 = vector.multi_reduction <add>, %79, %cst_53 [1] : vector<8x32xf32> to vector<8xf32>
    %81 = vector.shape_cast %80 : vector<8xf32> to vector<8x1xf32>
    %cst_54 = arith.constant 3.200000e+01 : f32
    %82 = vector.broadcast %cst_54 : f32 to vector<8x1xf32>
    %83 = arith.divf %81, %82 : vector<8x1xf32>
    %84 = vector.broadcast %76 : vector<8x1xf32> to vector<8x32xf32>
    %85 = arith.subf %72, %84 : vector<8x32xf32>
    %cst_55 = arith.constant 9.99999974E-6 : f32
    %86 = vector.broadcast %cst_55 : f32 to vector<8x1xf32>
    %87 = arith.addf %83, %86 : vector<8x1xf32>
    %88 = math.rsqrt %87 : vector<8x1xf32>
    %89 = vector.broadcast %88 : vector<8x1xf32> to vector<8x32xf32>
    %90 = arith.mulf %85, %89 : vector<8x32xf32>
    %91 = vector.broadcast %69 : vector<1x32xf32> to vector<8x32xf32>
    %92 = arith.mulf %90, %91 : vector<8x32xf32>
    %93 = vector.broadcast %70 : vector<1x32xf32> to vector<8x32xf32>
    %94 = arith.addf %92, %93 : vector<8x32xf32>
    %95 = arith.truncf %94 : vector<8x32xf32> to vector<8x32xbf16>
    %c0_56 = arith.constant 0 : index
    %c0_57 = arith.constant 0 : index
    %96 = vector.load %arg8[%c0_56, %c0_57] : memref<32x64xbf16, #tpu.memory_space<vmem>>, vector<32x64xbf16>
    %cst_58 = arith.constant dense<0.000000e+00> : vector<8x64xf32>
    %97 = tpu.matmul %95, %96, %cst_58 {dimension_numbers = #tpu.dot_dimension_numbers<[1], [0], [0], [1], [0, 0, 1, 1], [], []>} : vector<8x32xbf16>, vector<32x64xbf16>, vector<8x64xf32> -> vector<8x64xf32>
    %c0_59 = arith.constant 0 : index
    %c0_60 = arith.constant 0 : index
    %98 = vector.load %arg9[%c0_59, %c0_60] : memref<1x64xf32, #tpu.memory_space<vmem>>, vector<1x64xf32>
    %99 = vector.broadcast %98 : vector<1x64xf32> to vector<8x64xf32>
    %100 = arith.addf %97, %99 : vector<8x64xf32>
    %cst_61 = arith.constant 0.000000e+00 : f32
    %101 = vector.broadcast %cst_61 : f32 to vector<8x64xf32>
    %102 = arith.maximumf %100, %101 : vector<8x64xf32>
    %103 = arith.truncf %102 : vector<8x64xf32> to vector<8x64xbf16>
    %c0_62 = arith.constant 0 : index
    %c0_63 = arith.constant 0 : index
    %104 = vector.load %arg10[%c0_62, %c0_63] : memref<64x32xbf16, #tpu.memory_space<vmem>>, vector<64x32xbf16>
    %cst_64 = arith.constant dense<0.000000e+00> : vector<8x32xf32>
    %105 = tpu.matmul %103, %104, %cst_64 {dimension_numbers = #tpu.dot_dimension_numbers<[1], [0], [0], [1], [0, 0, 1, 1], [], []>} : vector<8x64xbf16>, vector<64x32xbf16>, vector<8x32xf32> -> vector<8x32xf32>
    %c0_65 = arith.constant 0 : index
    %c0_66 = arith.constant 0 : index
    %106 = vector.load %arg11[%c0_65, %c0_66] : memref<1x32xf32, #tpu.memory_space<vmem>>, vector<1x32xf32>
    %107 = vector.broadcast %106 : vector<1x32xf32> to vector<8x32xf32>
    %108 = arith.addf %105, %107 : vector<8x32xf32>
    %109 = arith.addf %94, %108 : vector<8x32xf32>
    %cst_67 = arith.constant dense<0.000000e+00> : vector<8xf32>
    %110 = vector.multi_reduction <add>, %109, %cst_67 [1] : vector<8x32xf32> to vector<8xf32>
    %111 = vector.shape_cast %110 : vector<8xf32> to vector<8x1xf32>
    %cst_68 = arith.constant 3.200000e+01 : f32
    %112 = vector.broadcast %cst_68 : f32 to vector<8x1xf32>
    %113 = arith.divf %111, %112 : vector<8x1xf32>
    %114 = vector.broadcast %113 : vector<8x1xf32> to vector<8x32xf32>
    %115 = arith.subf %109, %114 : vector<8x32xf32>
    %116 = arith.mulf %115, %115 : vector<8x32xf32>
    %cst_69 = arith.constant dense<0.000000e+00> : vector<8xf32>
    %117 = vector.multi_reduction <add>, %116, %cst_69 [1] : vector<8x32xf32> to vector<8xf32>
    %118 = vector.shape_cast %117 : vector<8xf32> to vector<8x1xf32>
    %cst_70 = arith.constant 3.200000e+01 : f32
    %119 = vector.broadcast %cst_70 : f32 to vector<8x1xf32>
    %120 = arith.divf %118, %119 : vector<8x1xf32>
    %121 = vector.broadcast %113 : vector<8x1xf32> to vector<8x32xf32>
    %122 = arith.subf %109, %121 : vector<8x32xf32>
    %cst_71 = arith.constant 9.99999974E-6 : f32
    %123 = vector.broadcast %cst_71 : f32 to vector<8x1xf32>
    %124 = arith.addf %120, %123 : vector<8x1xf32>
    %125 = math.rsqrt %124 : vector<8x1xf32>
    %126 = vector.broadcast %125 : vector<8x1xf32> to vector<8x32xf32>
    %127 = arith.mulf %122, %126 : vector<8x32xf32>
    %128 = vector.broadcast %69 : vector<1x32xf32> to vector<8x32xf32>
    %129 = arith.mulf %127, %128 : vector<8x32xf32>
    %130 = vector.broadcast %70 : vector<1x32xf32> to vector<8x32xf32>
    %131 = arith.addf %129, %130 : vector<8x32xf32>
    %132 = arith.truncf %131 : vector<8x32xf32> to vector<8x32xbf16>
    %c0_72 = arith.constant 0 : index
    %c0_73 = arith.constant 0 : index
    %c0_74 = arith.constant 0 : index
    %133 = vector.load %arg12[%c0_72, %c0_73, %c0_74] : memref<1x8x32xbf16, #tpu.memory_space<vmem>>, vector<1x8x32xbf16>
    %134 = vector.shape_cast %133 : vector<1x8x32xbf16> to vector<8x32xbf16>
    %135 = vector.shape_cast %132 : vector<8x32xbf16> to vector<1x8x32xbf16>
    tpu.vector_store %arg12[%c0_72, %c0_73, %c0_74], %135 {strides = array<i32>} : memref<1x8x32xbf16, #tpu.memory_space<vmem>>, vector<1x8x32xbf16>,
    return
  }
  func.func @transform_0(%arg0: i32) -> (i32, i32, i32) {
    %c0_i32 = arith.constant 0 : i32
    %c0_i32_0 = arith.constant 0 : i32
    %c0_i32_1 = arith.constant 0 : i32
    return %arg0, %c0_i32, %c0_i32_0 : i32, i32, i32
  }
  func.func @transform_1(%arg0: i32) -> (i32, i32, i32, i32) {
    %c0_i32 = arith.constant 0 : i32
    %c0_i32_0 = arith.constant 0 : i32
    %c0_i32_1 = arith.constant 0 : i32
    %c0_i32_2 = arith.constant 0 : i32
    %c0_i32_3 = arith.constant 0 : i32
    return %c0_i32, %c0_i32_0, %c0_i32_1, %c0_i32_2 : i32, i32, i32, i32
  }
  func.func @transform_2(%arg0: i32) -> (i32, i32, i32, i32) {
    %c0_i32 = arith.constant 0 : i32
    %c0_i32_0 = arith.constant 0 : i32
    %c0_i32_1 = arith.constant 0 : i32
    %c0_i32_2 = arith.constant 0 : i32
    %c0_i32_3 = arith.constant 0 : i32
    return %c0_i32, %c0_i32_0, %c0_i32_1, %c0_i32_2 : i32, i32, i32, i32
  }
  func.func @transform_3(%arg0: i32) -> (i32, i32, i32) {
    %c0_i32 = arith.constant 0 : i32
    %c0_i32_0 = arith.constant 0 : i32
    %c0_i32_1 = arith.constant 0 : i32
    %c0_i32_2 = arith.constant 0 : i32
    return %c0_i32, %c0_i32_0, %c0_i32_1 : i32, i32, i32
  }
  func.func @transform_4(%arg0: i32) -> (i32, i32) {
    %c0_i32 = arith.constant 0 : i32
    %c0_i32_0 = arith.constant 0 : i32
    %c0_i32_1 = arith.constant 0 : i32
    return %c0_i32, %c0_i32_0 : i32, i32
  }
  func.func @transform_5(%arg0: i32) -> (i32, i32) {
    %c0_i32 = arith.constant 0 : i32
    %c0_i32_0 = arith.constant 0 : i32
    %c0_i32_1 = arith.constant 0 : i32
    return %c0_i32, %c0_i32_0 : i32, i32
  }
  func.func @transform_6(%arg0: i32) -> (i32, i32) {
    %c0_i32 = arith.constant 0 : i32
    %c0_i32_0 = arith.constant 0 : i32
    %c0_i32_1 = arith.constant 0 : i32
    return %c0_i32, %c0_i32_0 : i32, i32
  }
  func.func @transform_7(%arg0: i32) -> (i32, i32) {
    %c0_i32 = arith.constant 0 : i32
    %c0_i32_0 = arith.constant 0 : i32
    %c0_i32_1 = arith.constant 0 : i32
    return %c0_i32, %c0_i32_0 : i32, i32
  }
  func.func @transform_8(%arg0: i32) -> (i32, i32) {
    %c0_i32 = arith.constant 0 : i32
    %c0_i32_0 = arith.constant 0 : i32
    %c0_i32_1 = arith.constant 0 : i32
    return %c0_i32, %c0_i32_0 : i32, i32
  }
  func.func @transform_9(%arg0: i32) -> (i32, i32) {
    %c0_i32 = arith.constant 0 : i32
    %c0_i32_0 = arith.constant 0 : i32
    %c0_i32_1 = arith.constant 0 : i32
    return %c0_i32, %c0_i32_0 : i32, i32
  }
  func.func @transform_10(%arg0: i32) -> (i32, i32) {
    %c0_i32 = arith.constant 0 : i32
    %c0_i32_0 = arith.constant 0 : i32
    %c0_i32_1 = arith.constant 0 : i32
    return %c0_i32, %c0_i32_0 : i32, i32
  }
  func.func @transform_11(%arg0: i32) -> (i32, i32, i32) {
    %c0_i32 = arith.constant 0 : i32
    %c0_i32_0 = arith.constant 0 : i32
    %c0_i32_1 = arith.constant 0 : i32
    return %arg0, %c0_i32, %c0_i32_0 : i32, i32, i32
  }
}

</mosaic_0001>

<llo_original>
// kernel: tpu_custom_call.1
$region0: #{tpu_custom_call.1}
  #allocation0 [shape = 'u32[]', space=smem, size = 0x4, offset = 0x4, fixed_abs, tag = 'smem constant byte address 0x4 - core index']
  #allocation1 [shape = 'u32[72,128]{1,0:T(1,128)}', space=vmem, size = 0x9000, scoped, tag = 'internal scratch']
  %s0 = inlined_call_operand.vmem [shape: bf16[2,8,32], index: 0, kind: input, shape index: {}]
  %s1 = inlined_call_operand.vmem [shape: bf16[3,4,32,8], index: 1, kind: input, shape index: {}]
  %s2 = inlined_call_operand.vmem [shape: f32[3,4,1,8], index: 2, kind: input, shape index: {}]
  %s3 = inlined_call_operand.vmem [shape: bf16[4,8,32], index: 3, kind: input, shape index: {}]
  %s4 = inlined_call_operand.vmem [shape: f32[1,32], index: 4, kind: input, shape index: {}]
  %s5 = inlined_call_operand.vmem [shape: f32[1,32], index: 5, kind: input, shape index: {}]
  %s6 = inlined_call_operand.vmem [shape: f32[1,32], index: 6, kind: input, shape index: {}]
  %s7 = inlined_call_operand.vmem [shape: bf16[32,64], index: 7, kind: input, shape index: {}]
  %s8 = inlined_call_operand.vmem [shape: f32[1,64], index: 8, kind: input, shape index: {}]
  %s9 = inlined_call_operand.vmem [shape: bf16[64,32], index: 9, kind: input, shape index: {}]
  %s10 = inlined_call_operand.vmem [shape: f32[1,32], index: 10, kind: input, shape index: {}]
  %s11 = inlined_call_operand.hbm [shape: bf16[2,8,32], index: 11, kind: output, shape index: {}]
  %s12 = sld [smem:[#allocation0]]
  $region77: #{tpu_custom_call.1} parent=0
    _
  %s14 = ssub.s32 1, %s12
  %s15 = scalar_select 0, %s14, %s12
  $region1: #{tpu_custom_call.1} parent=0
    #allocation2 [shape = 'u8[4096]{0}', space=vmem, size = 0x1000, scoped, tag = 'output window, operand 0']
    #allocation3 [shape = 's32[2]{0}', space=sflag, size = 0x8, scoped, tag = 'scoped memory for tpu_custom_call.1']
    %16 = vsyncpa [#allocation3], 0
    %s17 = scalar_lea.sflag [#allocation3], 1
    %18 = vsyncpa %s17, 0
    loop: start=0, step=1, limit=4
    $region2: #{tpu_custom_call.1} parent=1 // loop_pre_header
      _
    $region3: #{tpu_custom_call.1} parent=1 // loop_header
      %s20 = sphi 0, %s24
      %p21 = scmp.ge.s32.totalorder %s20, 4
      %s30 = sphi 0, %s32
      %s33 = sphi 0, %s30
      %s34 = sphi 0, %s33
      %s50 = sphi 0, %s34
      %s54 = sphi 0, %s54
      %s56 = sphi 0, %s54
      %s57 = sphi 0, %s56
      %s71 = sphi 0, %s57
      %s75 = sphi 0, %s75
      %s77 = sphi 0, %s75
      %s78 = sphi 0, %s77
      %s92 = sphi 0, %s78
      %s96 = sphi 0, %s96
      %s98 = sphi 0, %s96
      %s99 = sphi 0, %s98
      %s113 = sphi 0, %s99
      %s117 = sphi 0, %s117
      %s119 = sphi 0, %s117
      %s120 = sphi 0, %s119
      %s134 = sphi 0, %s120
      %s138 = sphi 0, %s138
      %s140 = sphi 0, %s138
      %s141 = sphi 0, %s140
      %s155 = sphi 0, %s141
      %s159 = sphi 0, %s159
      %s161 = sphi 0, %s159
      %s162 = sphi 0, %s161
      %s176 = sphi 0, %s162
      %s180 = sphi 0, %s180
      %s182 = sphi 0, %s180
      %s183 = sphi 0, %s182
      %s197 = sphi 0, %s183
      %s201 = sphi 0, %s201
      %s203 = sphi 0, %s201
      %s204 = sphi 0, %s203
      %s218 = sphi 0, %s204
      %s222 = sphi 0, %s222
      %s224 = sphi 0, %s222
      %s225 = sphi 0, %s224
      %s239 = sphi 0, %s225
      %s243 = sphi 0, %s243
      %s245 = sphi 0, %s243
      %s246 = sphi 0, %s245
      %s260 = sphi 0, %s246
      %s266 = sphi 0, %s268
      %s269 = sphi 0, %s266
      %s270 = sphi 0, %s269
      %s286 = sphi 0, %s270
    $region4: #{tpu_custom_call.1} parent=1 // loop_header_branch
      %23 = sbr.rel (%p21) target = $region8
    $region5: #{tpu_custom_call.1} parent=1 // loop_body
      %s25 = ssub.s32 %s20, 1
      %s26 = ssub.s32 %s20, 2
      %s27 = sadd.s32 %s20, 1
      %s28 = ssub.s32 %s20, %s27
      %p29 = scmp.eq.s32.totalorder %s28, 0
      %s31 = sadd.s32 %s30, 1
      %s32 = scalar_select %p29, %s30, %s31
      %p35 = pneg %p29
      %p36 = scmp.eq.s32.totalorder %s20, 1
      %p37 = por %p35, %p36
      %p38 = scmp.ne.s32.totalorder %s30, %s33
      %p39 = scmp.eq.s32.totalorder %s20, 0
      %p40 = por %p38, %p39
      %p41 = scmp.ne.s32.totalorder %s30, %s33
      %p42 = scmp.eq.s32.totalorder %s25, 1
      %p43 = por %p41, %p42
      %p44 = scmp.ne.s32.totalorder %s33, %s34
      %p45 = scmp.eq.s32.totalorder %s25, 0
      %p46 = por %p44, %p45
      %p47 = scmp.ne.s32.totalorder %s33, %s34
      %p48 = scmp.eq.s32.totalorder %s26, 1
      %p49 = por %p47, %p48
      %p51 = scmp.ne.s32.totalorder %s34, %s50
      %p52 = scmp.eq.s32.totalorder %s26, 0
      %p53 = por %p51, %p52
      %s55 = sadd.s32 %s54, 1
      %p58 = scmp.eq.s32.totalorder %s20, 1
      %p59 = scmp.ne.s32.totalorder %s54, %s56
      %p60 = scmp.eq.s32.totalorder %s20, 0
      %p61 = por %p59, %p60
      %p62 = scmp.ne.s32.totalorder %s54, %s56
      %p63 = scmp.eq.s32.totalorder %s25, 1
      %p64 = por %p62, %p63
      %p65 = scmp.ne.s32.totalorder %s56, %s57
      %p66 = scmp.eq.s32.totalorder %s25, 0
      %p67 = por %p65, %p66
      %p68 = scmp.ne.s32.totalorder %s56, %s57
      %p69 = scmp.eq.s32.totalorder %s26, 1
      %p70 = por %p68, %p69
      %p72 = scmp.ne.s32.totalorder %s57, %s71
      %p73 = scmp.eq.s32.totalorder %s26, 0
      %p74 = por %p72, %p73
      %s76 = sadd.s32 %s75, 1
      %p79 = scmp.eq.s32.totalorder %s20, 1
      %p80 = scmp.ne.s32.totalorder %s75, %s77
      %p81 = scmp.eq.s32.totalorder %s20, 0
      %p82 = por %p80, %p81
      %p83 = scmp.ne.s32.totalorder %s75, %s77
      %p84 = scmp.eq.s32.totalorder %s25, 1
      %p85 = por %p83, %p84
      %p86 = scmp.ne.s32.totalorder %s77, %s78
      %p87 = scmp.eq.s32.totalorder %s25, 0
      %p88 = por %p86, %p87
      %p89 = scmp.ne.s32.totalorder %s77, %s78
      %p90 = scmp.eq.s32.totalorder %s26, 1
      %p91 = por %p89, %p90
      %p93 = scmp.ne.s32.totalorder %s78, %s92
      %p94 = scmp.eq.s32.totalorder %s26, 0
      %p95 = por %p93, %p94
      %s97 = sadd.s32 %s96, 1
      %p100 = scmp.eq.s32.totalorder %s20, 1
      %p101 = scmp.ne.s32.totalorder %s96, %s98
      %p102 = scmp.eq.s32.totalorder %s20, 0
      %p103 = por %p101, %p102
      %p104 = scmp.ne.s32.totalorder %s96, %s98
      %p105 = scmp.eq.s32.totalorder %s25, 1
      %p106 = por %p104, %p105
      %p107 = scmp.ne.s32.totalorder %s98, %s99
      %p108 = scmp.eq.s32.totalorder %s25, 0
      %p109 = por %p107, %p108
      %p110 = scmp.ne.s32.totalorder %s98, %s99
      %p111 = scmp.eq.s32.totalorder %s26, 1
      %p112 = por %p110, %p111
      %p114 = scmp.ne.s32.totalorder %s99, %s113
      %p115 = scmp.eq.s32.totalorder %s26, 0
      %p116 = por %p114, %p115
      %s118 = sadd.s32 %s117, 1
      %p121 = scmp.eq.s32.totalorder %s20, 1
      %p122 = scmp.ne.s32.totalorder %s117, %s119
      %p123 = scmp.eq.s32.totalorder %s20, 0
      %p124 = por %p122, %p123
      %p125 = scmp.ne.s32.totalorder %s117, %s119
      %p126 = scmp.eq.s32.totalorder %s25, 1
      %p127 = por %p125, %p126
      %p128 = scmp.ne.s32.totalorder %s119, %s120
      %p129 = scmp.eq.s32.totalorder %s25, 0
      %p130 = por %p128, %p129
      %p131 = scmp.ne.s32.totalorder %s119, %s120
      %p132 = scmp.eq.s32.totalorder %s26, 1
      %p133 = por %p131, %p132
      %p135 = scmp.ne.s32.totalorder %s120, %s134
      %p136 = scmp.eq.s32.totalorder %s26, 0
      %p137 = por %p135, %p136
      %s139 = sadd.s32 %s138, 1
      %p142 = scmp.eq.s32.totalorder %s20, 1
      %p143 = scmp.ne.s32.totalorder %s138, %s140
      %p144 = scmp.eq.s32.totalorder %s20, 0
      %p145 = por %p143, %p144
      %p146 = scmp.ne.s32.totalorder %s138, %s140
      %p147 = scmp.eq.s32.totalorder %s25, 1
      %p148 = por %p146, %p147
      %p149 = scmp.ne.s32.totalorder %s140, %s141
      %p150 = scmp.eq.s32.totalorder %s25, 0
      %p151 = por %p149, %p150
      %p152 = scmp.ne.s32.totalorder %s140, %s141
      %p153 = scmp.eq.s32.totalorder %s26, 1
      %p154 = por %p152, %p153
      %p156 = scmp.ne.s32.totalorder %s141, %s155
      %p157 = scmp.eq.s32.totalorder %s26, 0
      %p158 = por %p156, %p157
      %s160 = sadd.s32 %s159, 1
      %p163 = scmp.eq.s32.totalorder %s20, 1
      %p164 = scmp.ne.s32.totalorder %s159, %s161
      %p165 = scmp.eq.s32.totalorder %s20, 0
      %p166 = por %p164, %p165
      %p167 = scmp.ne.s32.totalorder %s159, %s161
      %p168 = scmp.eq.s32.totalorder %s25, 1
      %p169 = por %p167, %p168
      %p170 = scmp.ne.s32.totalorder %s161, %s162
      %p171 = scmp.eq.s32.totalorder %s25, 0
      %p172 = por %p170, %p171
      %p173 = scmp.ne.s32.totalorder %s161, %s162
      %p174 = scmp.eq.s32.totalorder %s26, 1
      %p175 = por %p173, %p174
      %p177 = scmp.ne.s32.totalorder %s162, %s176
      %p178 = scmp.eq.s32.totalorder %s26, 0
      %p179 = por %p177, %p178
      %s181 = sadd.s32 %s180, 1
      %p184 = scmp.eq.s32.totalorder %s20, 1
      %p185 = scmp.ne.s32.totalorder %s180, %s182
      %p186 = scmp.eq.s32.totalorder %s20, 0
      %p187 = por %p185, %p186
      %p188 = scmp.ne.s32.totalorder %s180, %s182
      %p189 = scmp.eq.s32.totalorder %s25, 1
      %p190 = por %p188, %p189
      %p191 = scmp.ne.s32.totalorder %s182, %s183
      %p192 = scmp.eq.s32.totalorder %s25, 0
      %p193 = por %p191, %p192
      %p194 = scmp.ne.s32.totalorder %s182, %s183
      %p195 = scmp.eq.s32.totalorder %s26, 1
      %p196 = por %p194, %p195
      %p198 = scmp.ne.s32.totalorder %s183, %s197
      %p199 = scmp.eq.s32.totalorder %s26, 0
      %p200 = por %p198, %p199
      %s202 = sadd.s32 %s201, 1
      %p205 = scmp.eq.s32.totalorder %s20, 1
      %p206 = scmp.ne.s32.totalorder %s201, %s203
      %p207 = scmp.eq.s32.totalorder %s20, 0
      %p208 = por %p206, %p207
      %p209 = scmp.ne.s32.totalorder %s201, %s203
      %p210 = scmp.eq.s32.totalorder %s25, 1
      %p211 = por %p209, %p210
      %p212 = scmp.ne.s32.totalorder %s203, %s204
      %p213 = scmp.eq.s32.totalorder %s25, 0
      %p214 = por %p212, %p213
      %p215 = scmp.ne.s32.totalorder %s203, %s204
      %p216 = scmp.eq.s32.totalorder %s26, 1
      %p217 = por %p215, %p216
      %p219 = scmp.ne.s32.totalorder %s204, %s218
      %p220 = scmp.eq.s32.totalorder %s26, 0
      %p221 = por %p219, %p220
      %s223 = sadd.s32 %s222, 1
      %p226 = scmp.eq.s32.totalorder %s20, 1
      %p227 = scmp.ne.s32.totalorder %s222, %s224
      %p228 = scmp.eq.s32.totalorder %s20, 0
      %p229 = por %p227, %p228
      %p230 = scmp.ne.s32.totalorder %s222, %s224
      %p231 = scmp.eq.s32.totalorder %s25, 1
      %p232 = por %p230, %p231
      %p233 = scmp.ne.s32.totalorder %s224, %s225
      %p234 = scmp.eq.s32.totalorder %s25, 0
      %p235 = por %p233, %p234
      %p236 = scmp.ne.s32.totalorder %s224, %s225
      %p237 = scmp.eq.s32.totalorder %s26, 1
      %p238 = por %p236, %p237
      %p240 = scmp.ne.s32.totalorder %s225, %s239
      %p241 = scmp.eq.s32.totalorder %s26, 0
      %p242 = por %p240, %p241
      %s244 = sadd.s32 %s243, 1
      %p247 = scmp.eq.s32.totalorder %s20, 1
      %p248 = scmp.ne.s32.totalorder %s243, %s245
      %p249 = scmp.eq.s32.totalorder %s20, 0
      %p250 = por %p248, %p249
      %p251 = scmp.ne.s32.totalorder %s243, %s245
      %p252 = scmp.eq.s32.totalorder %s25, 1
      %p253 = por %p251, %p252
      %p254 = scmp.ne.s32.totalorder %s245, %s246
      %p255 = scmp.eq.s32.totalorder %s25, 0
      %p256 = por %p254, %p255
      %p257 = scmp.ne.s32.totalorder %s245, %s246
      %p258 = scmp.eq.s32.totalorder %s26, 1
      %p259 = por %p257, %p258
      %p261 = scmp.ne.s32.totalorder %s246, %s260
      %p262 = scmp.eq.s32.totalorder %s26, 0
      %p263 = por %p261, %p262
      %s264 = ssub.s32 %s20, %s27
      %p265 = scmp.eq.s32.totalorder %s264, 0
      %s267 = sadd.s32 %s266, 1
      %s268 = scalar_select %p265, %s266, %s267
      %p271 = pneg %p265
      %p272 = scmp.eq.s32.totalorder %s20, 1
      %p273 = por %p271, %p272
      %p274 = scmp.ne.s32.totalorder %s266, %s269
      %p275 = scmp.eq.s32.totalorder %s20, 0
      %p276 = por %p274, %p275
      %p277 = scmp.ne.s32.totalorder %s266, %s269
      %p278 = scmp.eq.s32.totalorder %s25, 1
      %p279 = por %p277, %p278
      %p280 = scmp.ne.s32.totalorder %s269, %s270
      %p281 = scmp.eq.s32.totalorder %s25, 0
      %p282 = por %p280, %p281
      %p283 = scmp.ne.s32.totalorder %s269, %s270
      %p284 = scmp.eq.s32.totalorder %s26, 1
      %p285 = por %p283, %p284
      %p287 = scmp.ne.s32.totalorder %s270, %s286
      %p288 = scmp.eq.s32.totalorder %s26, 0
      %p289 = por %p287, %p288
      %p290 = scmp.le.s32.totalorder 1, %s20
      %p291 = scmp.lt.s32.totalorder %s20, 3
      %p292 = pnand %p290, %p291
      %p293 = pneg %p292
      // Predicated region
      $region9: #{tpu_custom_call.1} parent=5 // pred_check
        _
      $region10: #{tpu_custom_call.1} parent=5 // pred_check_branch
        %295 = sbr.rel (%p292) target = $region12
      $region11: #{tpu_custom_call.1} parent=5 // pred_region
        %s296 = ssub.s32 %s20, 1
        // Predicated region
        $region13: #{tpu_custom_call.1} parent=11 // pred_check
          %p297 = pneg %p67
        $region14: #{tpu_custom_call.1} parent=11 // pred_check_branch
          %299 = sbr.rel (%p297) target = $region16
        $region15: #{tpu_custom_call.1} parent=11 // pred_region
          _
        $region16: #{tpu_custom_call.1} parent=11 // pred_fallthru
          _
        // Predicated region
        $region17: #{tpu_custom_call.1} parent=11 // pred_check
          %p300 = pneg %p88
        $region18: #{tpu_custom_call.1} parent=11 // pred_check_branch
          %302 = sbr.rel (%p300) target = $region20
        $region19: #{tpu_custom_call.1} parent=11 // pred_region
          _
        $region20: #{tpu_custom_call.1} parent=11 // pred_fallthru
          _
        // Predicated region
        $region21: #{tpu_custom_call.1} parent=11 // pred_check
          %p303 = pneg %p109
        $region22: #{tpu_custom_call.1} parent=11 // pred_check_branch
          %305 = sbr.rel (%p303) target = $region24
        $region23: #{tpu_custom_call.1} parent=11 // pred_region
          _
        $region24: #{tpu_custom_call.1} parent=11 // pred_fallthru
          _
        // Predicated region
        $region25: #{tpu_custom_call.1} parent=11 // pred_check
          %p306 = pneg %p130
        $region26: #{tpu_custom_call.1} parent=11 // pred_check_branch
          %308 = sbr.rel (%p306) target = $region28
        $region27: #{tpu_custom_call.1} parent=11 // pred_region
          _
        $region28: #{tpu_custom_call.1} parent=11 // pred_fallthru
          _
        // Predicated region
        $region29: #{tpu_custom_call.1} parent=11 // pred_check
          %p309 = pneg %p151
        $region30: #{tpu_custom_call.1} parent=11 // pred_check_branch
          %311 = sbr.rel (%p309) target = $region32
        $region31: #{tpu_custom_call.1} parent=11 // pred_region
          _
        $region32: #{tpu_custom_call.1} parent=11 // pred_fallthru
          _
        // Predicated region
        $region33: #{tpu_custom_call.1} parent=11 // pred_check
          %p312 = pneg %p172
        $region34: #{tpu_custom_call.1} parent=11 // pred_check_branch
          %314 = sbr.rel (%p312) target = $region36
        $region35: #{tpu_custom_call.1} parent=11 // pred_region
          _
        $region36: #{tpu_custom_call.1} parent=11 // pred_fallthru
          _
        // Predicated region
        $region37: #{tpu_custom_call.1} parent=11 // pred_check
          %p315 = pneg %p193
        $region38: #{tpu_custom_call.1} parent=11 // pred_check_branch
          %317 = sbr.rel (%p315) target = $region40
        $region39: #{tpu_custom_call.1} parent=11 // pred_region
          _
        $region40: #{tpu_custom_call.1} parent=11 // pred_fallthru
          _
        // Predicated region
        $region41: #{tpu_custom_call.1} parent=11 // pred_check
          %p318 = pneg %p214
        $region42: #{tpu_custom_call.1} parent=11 // pred_check_branch
          %320 = sbr.rel (%p318) target = $region44
        $region43: #{tpu_custom_call.1} parent=11 // pred_region
          _
        $region44: #{tpu_custom_call.1} parent=11 // pred_fallthru
          _
        // Predicated region
        $region45: #{tpu_custom_call.1} parent=11 // pred_check
          %p321 = pneg %p235
        $region46: #{tpu_custom_call.1} parent=11 // pred_check_branch
          %323 = sbr.rel (%p321) target = $region48
        $region47: #{tpu_custom_call.1} parent=11 // pred_region
          _
        $region48: #{tpu_custom_call.1} parent=11 // pred_fallthru
          _
        // Predicated region
        $region49: #{tpu_custom_call.1} parent=11 // pred_check
          %p324 = pneg %p256
        $region50: #{tpu_custom_call.1} parent=11 // pred_check_branch
          %326 = sbr.rel (%p324) target = $region52
        $region51: #{tpu_custom_call.1} parent=11 // pred_region
          _
        $region52: #{tpu_custom_call.1} parent=11 // pred_fallthru
          _
      $region12: #{tpu_custom_call.1} parent=5 // pred_fallthru
        _
      %p327 = scmp.lt.s32.totalorder %s20, 2
      // Predicated region
      $region53: #{tpu_custom_call.1} parent=5 // pred_check
        %p328 = pneg %p327
      $region54: #{tpu_custom_call.1} parent=5 // pred_check_branch
        %330 = sbr.rel (%p328) target = $region56
      $region55: #{tpu_custom_call.1} parent=5 // pred_region
        // Predicated region
        $region57: #{tpu_custom_call.1} parent=55 // pred_check
          %p331 = pneg %p40
        $region58: #{tpu_custom_call.1} parent=55 // pred_check_branch
          %333 = sbr.rel (%p331) target = $region60
        $region59: #{tpu_custom_call.1} parent=55 // pred_region
          %p334 = scmp.lt.s32.totalorder %s20, 1
          %s335 = scalar_select %p334, %s20, 1
          %s336 = smul.addr %s335, 4
          %s337 = scalar_lea.vmem %s0, %s336
        $region60: #{tpu_custom_call.1} parent=55 // pred_fallthru
          _
      $region56: #{tpu_custom_call.1} parent=5 // pred_fallthru
        _
      %p338 = scmp.le.s32.totalorder 1, %s20
      %p339 = scmp.lt.s32.totalorder %s20, 3
      %p340 = pnand %p338, %p339
      %p341 = pneg %p340
      // Predicated region
      $region61: #{tpu_custom_call.1} parent=5 // pred_check
        _
      $region62: #{tpu_custom_call.1} parent=5 // pred_check_branch
        %343 = sbr.rel (%p340) target = $region64
      $region63: #{tpu_custom_call.1} parent=5 // pred_region
        %s344 = ssub.s32 %s20, 1
        %p345 = scmp.lt.s32.totalorder %s25, 1
        %s346 = scalar_select %p345, %s25, 1
        %s347 = smul.addr %s346, 4
        %s348 = scalar_lea.vmem %s0, %s347
        %p349 = pneg %p46
        %p350 = pneg %p43
        %p351 = pneg %p67
        %p352 = pneg %p64
        %p353 = pneg %p88
        %p354 = pneg %p85
        %p355 = pneg %p109
        %p356 = pneg %p106
        %p357 = pneg %p130
        %p358 = pneg %p127
        %p359 = pneg %p151
        %p360 = pneg %p148
        %p361 = pneg %p172
        %p362 = pneg %p169
        %p363 = pneg %p193
        %p364 = pneg %p190
        %p365 = pneg %p214
        %p366 = pneg %p211
        %p367 = pneg %p235
        %p368 = pneg %p232
        %p369 = pneg %p256
        %p370 = pneg %p253
        %p371 = pneg %p282
        %p372 = pneg %p279
        %s373 = sand.u32 %s269, 1
        %s374 = scalar_lea.sflag [#allocation3], %s373
        %s375 = sand.u32 %s269, 1
        %s376 = smul.addr %s375, 4
        %s377 = scalar_lea.vmem [#allocation2], %s376
        %p378 = scmp.lt.s32.totalorder %s25, 1
        %s379 = scalar_select %p378, %s25, 1
        %s380 = smul.addr %s379, 4
        %s381 = scalar_lea.vmem %s0, %s380
        %v383 = vld [vmem:[%s381] sm:$0xf]
        %v384 = vld [vmem:[%s1] sm:$0xf]
        %v385 = vld [vmem:[%s1 + $0x4] sm:$0xf]
        %v386 = vld [vmem:[%s1 + $0x8] sm:$0xf]
        %v387 = vld [vmem:[%s1 + $0xc] sm:$0xf]
        %v388 = vld [vmem:[%s1 + $0x10] sm:$0xf]
        %v389 = vld [vmem:[%s1 + $0x14] sm:$0xf]
        %v390 = vld [vmem:[%s1 + $0x18] sm:$0xf]
        %v391 = vld [vmem:[%s1 + $0x1c] sm:$0xf]
        %v392 = vld [vmem:[%s1 + $0x20] sm:$0xf]
        %v393 = vld [vmem:[%s1 + $0x24] sm:$0xf]
        %v394 = vld [vmem:[%s1 + $0x28] sm:$0xf]
        %v395 = vld [vmem:[%s1 + $0x2c] sm:$0xf]
        %v396 = vld [vmem:[%s1 + $0x30] sm:$0xf]
        %v397 = vld [vmem:[%s1 + $0x34] sm:$0xf]
        %v398 = vld [vmem:[%s1 + $0x38] sm:$0xf]
        %v399 = vld [vmem:[%s1 + $0x3c] sm:$0xf]
        %v400 = vld [vmem:[%s2] sm:$0x1]
        %v401 = vld [vmem:[%s2 + $0x1] sm:$0x1]
        %v402 = vld [vmem:[%s2 + $0x2] sm:$0x1]
        %v403 = vld [vmem:[%s2 + $0x3] sm:$0x1]
        %v408 = vperm.slane %v400, 0
        %v409 = vperm.slane %v401, 0
        %v410 = vperm.slane %v402, 0
        %v411 = vperm.slane %v403, 0
        %v420 = vunpack.c.l.b16 %v384
        %v421 = vunpack.c.l.b16 %v385
        %v422 = vunpack.c.l.b16 %v386
        %v423 = vunpack.c.l.b16 %v387
        %v424 = vpack.c.b16 %v421, %v420
        %v425 = vpack.c.b16 %v423, %v422
        %vm428 = vcmask 261120
        %v430 = vsel %vm428, %v383, 0
        %432 = vmatpush.bf16.msra.mxu0 0
        %433 = vmatpush.bf16.msra.mxu0 0
        %434 = vmatpush.bf16.msra.mxu0 0
        %435 = vmatpush.bf16.msra.mxu0 0
        %436 = vmatpush.bf16.msra.mxu0 0
        %437 = vmatpush.bf16.msra.mxu0 0
        %438 = vmatpush.bf16.msra.mxu0 %v425
        %439 = vmatpush.bf16.msra.mxu0 %v424
        %440 = vmatmul.bf16.gmra.mxu0 %v430
        %v441 = vpop.f32.mrf.mxu0
        %v442 = vadd.f32 %v408, %v441
        %v443 = vpop.f32.mrf.mxu0
        %444 = vdwg.mxu0
        %v449 = vunpack.c.l.b16 %v388
        %v450 = vunpack.c.l.b16 %v389
        %v451 = vunpack.c.l.b16 %v390
        %v452 = vunpack.c.l.b16 %v391
        %v453 = vpack.c.b16 %v450, %v449
        %v454 = vpack.c.b16 %v452, %v451
        %457 = vmatpush.bf16.msra.mxu0 0
        %458 = vmatpush.bf16.msra.mxu0 0
        %459 = vmatpush.bf16.msra.mxu0 0
        %460 = vmatpush.bf16.msra.mxu0 0
        %461 = vmatpush.bf16.msra.mxu0 0
        %462 = vmatpush.bf16.msra.mxu0 0
        %463 = vmatpush.bf16.msra.mxu0 %v454
        %464 = vmatpush.bf16.msra.mxu0 %v453
        %465 = vmatmul.bf16.gmra.mxu0 %v430
        %v466 = vpop.f32.mrf.mxu0
        %v467 = vadd.f32 %v409, %v466
        %v468 = vpop.f32.mrf.mxu0
        %469 = vdwg.mxu0
        %v474 = vunpack.c.l.b16 %v392
        %v475 = vunpack.c.l.b16 %v393
        %v476 = vunpack.c.l.b16 %v394
        %v477 = vunpack.c.l.b16 %v395
        %v478 = vpack.c.b16 %v475, %v474
        %v479 = vpack.c.b16 %v477, %v476
        %482 = vmatpush.bf16.msra.mxu0 0
        %483 = vmatpush.bf16.msra.mxu0 0
        %484 = vmatpush.bf16.msra.mxu0 0
        %485 = vmatpush.bf16.msra.mxu0 0
        %486 = vmatpush.bf16.msra.mxu0 0
        %487 = vmatpush.bf16.msra.mxu0 0
        %488 = vmatpush.bf16.msra.mxu0 %v479
        %489 = vmatpush.bf16.msra.mxu0 %v478
        %490 = vmatmul.bf16.gmra.mxu0 %v430
        %v491 = vpop.f32.mrf.mxu0
        %v492 = vadd.f32 %v410, %v491
        %v493 = vpop.f32.mrf.mxu0
        %494 = vdwg.mxu0
        %v499 = vunpack.c.l.b16 %v396
        %v500 = vunpack.c.l.b16 %v397
        %v501 = vunpack.c.l.b16 %v398
        %v502 = vunpack.c.l.b16 %v399
        %v503 = vpack.c.b16 %v500, %v499
        %v504 = vpack.c.b16 %v502, %v501
        %507 = vmatpush.bf16.msra.mxu0 0
        %508 = vmatpush.bf16.msra.mxu0 0
        %509 = vmatpush.bf16.msra.mxu0 0
        %510 = vmatpush.bf16.msra.mxu0 0
        %511 = vmatpush.bf16.msra.mxu0 0
        %512 = vmatpush.bf16.msra.mxu0 0
        %513 = vmatpush.bf16.msra.mxu0 %v504
        %514 = vmatpush.bf16.msra.mxu0 %v503
        %515 = vmatmul.bf16.gmra.mxu0 %v430
        %v516 = vpop.f32.mrf.mxu0
        %v517 = vadd.f32 %v411, %v516
        %v518 = vpop.f32.mrf.mxu0
        %519 = vdwg.mxu0
        %v520 = vpack.c.bf16 %v442, %v442
        %v521 = vpack.c.bf16 %v467, %v467
        %v522 = vpack.c.bf16 %v492, %v492
        %v523 = vpack.c.bf16 %v517, %v517
        %s524 = scalar_lea.vmem %s1, 64
        %v525 = vld [vmem:[%s524] sm:$0xf]
        %v526 = vld [vmem:[%s524 + $0x4] sm:$0xf]
        %v527 = vld [vmem:[%s524 + $0x8] sm:$0xf]
        %v528 = vld [vmem:[%s524 + $0xc] sm:$0xf]
        %v529 = vld [vmem:[%s524 + $0x10] sm:$0xf]
        %v530 = vld [vmem:[%s524 + $0x14] sm:$0xf]
        %v531 = vld [vmem:[%s524 + $0x18] sm:$0xf]
        %v532 = vld [vmem:[%s524 + $0x1c] sm:$0xf]
        %v533 = vld [vmem:[%s524 + $0x20] sm:$0xf]
        %v534 = vld [vmem:[%s524 + $0x24] sm:$0xf]
        %v535 = vld [vmem:[%s524 + $0x28] sm:$0xf]
        %v536 = vld [vmem:[%s524 + $0x2c] sm:$0xf]
        %v537 = vld [vmem:[%s524 + $0x30] sm:$0xf]
        %v538 = vld [vmem:[%s524 + $0x34] sm:$0xf]
        %v539 = vld [vmem:[%s524 + $0x38] sm:$0xf]
        %v540 = vld [vmem:[%s524 + $0x3c] sm:$0xf]
        %s541 = scalar_lea.vmem %s2, 4
        %v542 = vld [vmem:[%s541] sm:$0x1]
        %v543 = vld [vmem:[%s541 + $0x1] sm:$0x1]
        %v544 = vld [vmem:[%s541 + $0x2] sm:$0x1]
        %v545 = vld [vmem:[%s541 + $0x3] sm:$0x1]
        %v550 = vperm.slane %v542, 0
        %v551 = vperm.slane %v543, 0
        %v552 = vperm.slane %v544, 0
        %v553 = vperm.slane %v545, 0
        %v562 = vunpack.c.l.b16 %v525
        %v563 = vunpack.c.l.b16 %v526
        %v564 = vunpack.c.l.b16 %v527
        %v565 = vunpack.c.l.b16 %v528
        %v566 = vpack.c.b16 %v563, %v562
        %v567 = vpack.c.b16 %v565, %v564
        %570 = vmatpush.bf16.msra.mxu0 0
        %571 = vmatpush.bf16.msra.mxu0 0
        %572 = vmatpush.bf16.msra.mxu0 0
        %573 = vmatpush.bf16.msra.mxu0 0
        %574 = vmatpush.bf16.msra.mxu0 0
        %575 = vmatpush.bf16.msra.mxu0 0
        %576 = vmatpush.bf16.msra.mxu0 %v567
        %577 = vmatpush.bf16.msra.mxu0 %v566
        %578 = vmatmul.bf16.gmra.mxu0 %v430
        %v579 = vpop.f32.mrf.mxu0
        %v580 = vadd.f32 %v550, %v579
        %v581 = vpop.f32.mrf.mxu0
        %582 = vdwg.mxu0
        %v587 = vunpack.c.l.b16 %v529
        %v588 = vunpack.c.l.b16 %v530
        %v589 = vunpack.c.l.b16 %v531
        %v590 = vunpack.c.l.b16 %v532
        %v591 = vpack.c.b16 %v588, %v587
        %v592 = vpack.c.b16 %v590, %v589
        %595 = vmatpush.bf16.msra.mxu0 0
        %596 = vmatpush.bf16.msra.mxu0 0
        %597 = vmatpush.bf16.msra.mxu0 0
        %598 = vmatpush.bf16.msra.mxu0 0
        %599 = vmatpush.bf16.msra.mxu0 0
        %600 = vmatpush.bf16.msra.mxu0 0
        %601 = vmatpush.bf16.msra.mxu0 %v592
        %602 = vmatpush.bf16.msra.mxu0 %v591
        %603 = vmatmul.bf16.gmra.mxu0 %v430
        %v604 = vpop.f32.mrf.mxu0
        %v605 = vadd.f32 %v551, %v604
        %v606 = vpop.f32.mrf.mxu0
        %607 = vdwg.mxu0
        %v612 = vunpack.c.l.b16 %v533
        %v613 = vunpack.c.l.b16 %v534
        %v614 = vunpack.c.l.b16 %v535
        %v615 = vunpack.c.l.b16 %v536
        %v616 = vpack.c.b16 %v613, %v612
        %v617 = vpack.c.b16 %v615, %v614
        %620 = vmatpush.bf16.msra.mxu0 0
        %621 = vmatpush.bf16.msra.mxu0 0
        %622 = vmatpush.bf16.msra.mxu0 0
        %623 = vmatpush.bf16.msra.mxu0 0
        %624 = vmatpush.bf16.msra.mxu0 0
        %625 = vmatpush.bf16.msra.mxu0 0
        %626 = vmatpush.bf16.msra.mxu0 %v617
        %627 = vmatpush.bf16.msra.mxu0 %v616
        %628 = vmatmul.bf16.gmra.mxu0 %v430
        %v629 = vpop.f32.mrf.mxu0
        %v630 = vadd.f32 %v552, %v629
        %v631 = vpop.f32.mrf.mxu0
        %632 = vdwg.mxu0
        %v637 = vunpack.c.l.b16 %v537
        %v638 = vunpack.c.l.b16 %v538
        %v639 = vunpack.c.l.b16 %v539
        %v640 = vunpack.c.l.b16 %v540
        %v641 = vpack.c.b16 %v638, %v637
        %v642 = vpack.c.b16 %v640, %v639
        %645 = vmatpush.bf16.msra.mxu0 0
        %646 = vmatpush.bf16.msra.mxu0 0
        %647 = vmatpush.bf16.msra.mxu0 0
        %648 = vmatpush.bf16.msra.mxu0 0
        %649 = vmatpush.bf16.msra.mxu0 0
        %650 = vmatpush.bf16.msra.mxu0 0
        %651 = vmatpush.bf16.msra.mxu0 %v642
        %652 = vmatpush.bf16.msra.mxu0 %v641
        %653 = vmatmul.bf16.gmra.mxu0 %v430
        %v654 = vpop.f32.mrf.mxu0
        %v655 = vadd.f32 %v553, %v654
        %v656 = vpop.f32.mrf.mxu0
        %657 = vdwg.mxu0
        %v658 = vpack.c.bf16 %v580, %v580
        %v659 = vpack.c.bf16 %v605, %v605
        %v660 = vpack.c.bf16 %v630, %v630
        %v661 = vpack.c.bf16 %v655, %v655
        %s662 = scalar_lea.vmem %s1, 128
        %v663 = vld [vmem:[%s662] sm:$0xf]
        %v664 = vld [vmem:[%s662 + $0x4] sm:$0xf]
        %v665 = vld [vmem:[%s662 + $0x8] sm:$0xf]
        %v666 = vld [vmem:[%s662 + $0xc] sm:$0xf]
        %v667 = vld [vmem:[%s662 + $0x10] sm:$0xf]
        %v668 = vld [vmem:[%s662 + $0x14] sm:$0xf]
        %v669 = vld [vmem:[%s662 + $0x18] sm:$0xf]
        %v670 = vld [vmem:[%s662 + $0x1c] sm:$0xf]
        %v671 = vld [vmem:[%s662 + $0x20] sm:$0xf]
        %v672 = vld [vmem:[%s662 + $0x24] sm:$0xf]
        %v673 = vld [vmem:[%s662 + $0x28] sm:$0xf]
        %v674 = vld [vmem:[%s662 + $0x2c] sm:$0xf]
        %v675 = vld [vmem:[%s662 + $0x30] sm:$0xf]
        %v676 = vld [vmem:[%s662 + $0x34] sm:$0xf]
        %v677 = vld [vmem:[%s662 + $0x38] sm:$0xf]
        %v678 = vld [vmem:[%s662 + $0x3c] sm:$0xf]
        %s679 = scalar_lea.vmem %s2, 8
        %v680 = vld [vmem:[%s679] sm:$0x1]
        %v681 = vld [vmem:[%s679 + $0x1] sm:$0x1]
        %v682 = vld [vmem:[%s679 + $0x2] sm:$0x1]
        %v683 = vld [vmem:[%s679 + $0x3] sm:$0x1]
        %v688 = vperm.slane %v680, 0
        %v689 = vperm.slane %v681, 0
        %v690 = vperm.slane %v682, 0
        %v691 = vperm.slane %v683, 0
        %v700 = vunpack.c.l.b16 %v663
        %v701 = vunpack.c.l.b16 %v664
        %v702 = vunpack.c.l.b16 %v665
        %v703 = vunpack.c.l.b16 %v666
        %v704 = vpack.c.b16 %v701, %v700
        %v705 = vpack.c.b16 %v703, %v702
        %708 = vmatpush.bf16.msra.mxu0 0
        %709 = vmatpush.bf16.msra.mxu0 0
        %710 = vmatpush.bf16.msra.mxu0 0
        %711 = vmatpush.bf16.msra.mxu0 0
        %712 = vmatpush.bf16.msra.mxu0 0
        %713 = vmatpush.bf16.msra.mxu0 0
        %714 = vmatpush.bf16.msra.mxu0 %v705
        %715 = vmatpush.bf16.msra.mxu0 %v704
        %716 = vmatmul.bf16.gmra.mxu0 %v430
        %v717 = vpop.f32.mrf.mxu0
        %v718 = vadd.f32 %v688, %v717
        %v719 = vpop.f32.mrf.mxu0
        %720 = vdwg.mxu0
        %v725 = vunpack.c.l.b16 %v667
        %v726 = vunpack.c.l.b16 %v668
        %v727 = vunpack.c.l.b16 %v669
        %v728 = vunpack.c.l.b16 %v670
        %v729 = vpack.c.b16 %v726, %v725
        %v730 = vpack.c.b16 %v728, %v727
        %733 = vmatpush.bf16.msra.mxu0 0
        %734 = vmatpush.bf16.msra.mxu0 0
        %735 = vmatpush.bf16.msra.mxu0 0
        %736 = vmatpush.bf16.msra.mxu0 0
        %737 = vmatpush.bf16.msra.mxu0 0
        %738 = vmatpush.bf16.msra.mxu0 0
        %739 = vmatpush.bf16.msra.mxu0 %v730
        %740 = vmatpush.bf16.msra.mxu0 %v729
        %741 = vmatmul.bf16.gmra.mxu0 %v430
        %v742 = vpop.f32.mrf.mxu0
        %v743 = vadd.f32 %v689, %v742
        %v744 = vpop.f32.mrf.mxu0
        %745 = vdwg.mxu0
        %v750 = vunpack.c.l.b16 %v671
        %v751 = vunpack.c.l.b16 %v672
        %v752 = vunpack.c.l.b16 %v673
        %v753 = vunpack.c.l.b16 %v674
        %v754 = vpack.c.b16 %v751, %v750
        %v755 = vpack.c.b16 %v753, %v752
        %758 = vmatpush.bf16.msra.mxu0 0
        %759 = vmatpush.bf16.msra.mxu0 0
        %760 = vmatpush.bf16.msra.mxu0 0
        %761 = vmatpush.bf16.msra.mxu0 0
        %762 = vmatpush.bf16.msra.mxu0 0
        %763 = vmatpush.bf16.msra.mxu0 0
        %764 = vmatpush.bf16.msra.mxu0 %v755
        %765 = vmatpush.bf16.msra.mxu0 %v754
        %766 = vmatmul.bf16.gmra.mxu0 %v430
        %v767 = vpop.f32.mrf.mxu0
        %v768 = vadd.f32 %v690, %v767
        %v769 = vpop.f32.mrf.mxu0
        %770 = vdwg.mxu0
        %v775 = vunpack.c.l.b16 %v675
        %v776 = vunpack.c.l.b16 %v676
        %v777 = vunpack.c.l.b16 %v677
        %v778 = vunpack.c.l.b16 %v678
        %v779 = vpack.c.b16 %v776, %v775
        %v780 = vpack.c.b16 %v778, %v777
        %783 = vmatpush.bf16.msra.mxu0 0
        %784 = vmatpush.bf16.msra.mxu0 0
        %785 = vmatpush.bf16.msra.mxu0 0
        %786 = vmatpush.bf16.msra.mxu0 0
        %787 = vmatpush.bf16.msra.mxu0 0
        %788 = vmatpush.bf16.msra.mxu0 0
        %789 = vmatpush.bf16.msra.mxu0 %v780
        %790 = vmatpush.bf16.msra.mxu0 %v779
        %791 = vmatmul.bf16.gmra.mxu0 %v430
        %v792 = vpop.f32.mrf.mxu0
        %v793 = vadd.f32 %v691, %v792
        %v794 = vpop.f32.mrf.mxu0
        %795 = vdwg.mxu0
        %v796 = vpack.c.bf16 %v718, %v718
        %v797 = vpack.c.bf16 %v743, %v743
        %v798 = vpack.c.bf16 %v768, %v768
        %v799 = vpack.c.bf16 %v793, %v793
        %vm800 = vcmask 64512
        %v802 = vsel %vm800, %v520, 0
        %v805 = vsel %vm800, %v658, 0
        %807 = vmatpush.bf16.xpose.msra.mxu0 0
        %808 = vmatpush.bf16.xpose.msra.mxu0 0
        %809 = vmatpush.bf16.xpose.msra.mxu0 0
        %810 = vmatpush.bf16.xpose.msra.mxu0 0
        %811 = vmatpush.bf16.xpose.msra.mxu0 0
        %812 = vmatpush.bf16.xpose.msra.mxu0 0
        %813 = vmatpush.bf16.xpose.msra.mxu0 0
        %814 = vmatpush.bf16.xpose.msra.mxu0 %v805
        %815 = vmatmul.bf16.gmra.mxu0 %v802
        %v816 = vpop.f32.mrf.mxu0
        %v817 = vadd.f32 0.0, %v816
        %v818 = vpop.f32.mrf.mxu0
        %819 = vdwg.mxu0
        %v821 = vsel %vm800, %v521, 0
        %v824 = vsel %vm800, %v659, 0
        %826 = vmatpush.bf16.xpose.msra.mxu0 0
        %827 = vmatpush.bf16.xpose.msra.mxu0 0
        %828 = vmatpush.bf16.xpose.msra.mxu0 0
        %829 = vmatpush.bf16.xpose.msra.mxu0 0
        %830 = vmatpush.bf16.xpose.msra.mxu0 0
        %831 = vmatpush.bf16.xpose.msra.mxu0 0
        %832 = vmatpush.bf16.xpose.msra.mxu0 0
        %833 = vmatpush.bf16.xpose.msra.mxu0 %v824
        %834 = vmatmul.bf16.gmra.mxu0 %v821
        %v835 = vpop.f32.mrf.mxu0
        %v836 = vadd.f32 0.0, %v835
        %v837 = vpop.f32.mrf.mxu0
        %838 = vdwg.mxu0
        %v840 = vsel %vm800, %v522, 0
        %v843 = vsel %vm800, %v660, 0
        %845 = vmatpush.bf16.xpose.msra.mxu0 0
        %846 = vmatpush.bf16.xpose.msra.mxu0 0
        %847 = vmatpush.bf16.xpose.msra.mxu0 0
        %848 = vmatpush.bf16.xpose.msra.mxu0 0
        %849 = vmatpush.bf16.xpose.msra.mxu0 0
        %850 = vmatpush.bf16.xpose.msra.mxu0 0
        %851 = vmatpush.bf16.xpose.msra.mxu0 0
        %852 = vmatpush.bf16.xpose.msra.mxu0 %v843
        %853 = vmatmul.bf16.gmra.mxu0 %v840
        %v854 = vpop.f32.mrf.mxu0
        %v855 = vadd.f32 0.0, %v854
        %v856 = vpop.f32.mrf.mxu0
        %857 = vdwg.mxu0
        %v859 = vsel %vm800, %v523, 0
        %v862 = vsel %vm800, %v661, 0
        %864 = vmatpush.bf16.xpose.msra.mxu0 0
        %865 = vmatpush.bf16.xpose.msra.mxu0 0
        %866 = vmatpush.bf16.xpose.msra.mxu0 0
        %867 = vmatpush.bf16.xpose.msra.mxu0 0
        %868 = vmatpush.bf16.xpose.msra.mxu0 0
        %869 = vmatpush.bf16.xpose.msra.mxu0 0
        %870 = vmatpush.bf16.xpose.msra.mxu0 0
        %871 = vmatpush.bf16.xpose.msra.mxu0 %v862
        %872 = vmatmul.bf16.gmra.mxu0 %v859
        %v873 = vpop.f32.mrf.mxu0
        %v874 = vadd.f32 0.0, %v873
        %v875 = vpop.f32.mrf.mxu0
        %876 = vdwg.mxu0
        %v877 = vsel %vm800, %v817, -inf
        %878 = vmax.xlane.f32.xlu0 %v877
        %v879 = vpop.xlane.xlu0 %878
        %v880 = vsel %vm800, %v836, -inf
        %881 = vmax.xlane.f32.xlu0 %v880
        %v882 = vpop.xlane.xlu0 %881
        %v883 = vsel %vm800, %v855, -inf
        %884 = vmax.xlane.f32.xlu0 %v883
        %v885 = vpop.xlane.xlu0 %884
        %v886 = vsel %vm800, %v874, -inf
        %887 = vmax.xlane.f32.xlu0 %v886
        %v888 = vpop.xlane.xlu0 %887
        %v889 = vsub.f32 %v817, %v879
        %v890 = vsub.f32 %v836, %v882
        %v891 = vsub.f32 %v855, %v885
        %v892 = vsub.f32 %v874, %v888
        %v893 = vmul.f32 %v889, 1.442695
        %v894 = vpow.pop %v893
        %v895 = vmul.f32 %v890, 1.442695
        %v896 = vpow.pop %v895
        %v897 = vmul.f32 %v891, 1.442695
        %v898 = vpow.pop %v897
        %v899 = vmul.f32 %v892, 1.442695
        %v900 = vpow.pop %v899
        %v901 = vsel %vm800, %v894, 0.0
        %902 = vadd.xlane.f32.xlu0 %v901
        %v903 = vpop.xlane.xlu0 %902
        %v904 = vsel %vm800, %v896, 0.0
        %905 = vadd.xlane.f32.xlu0 %v904
        %v906 = vpop.xlane.xlu0 %905
        %v907 = vsel %vm800, %v898, 0.0
        %908 = vadd.xlane.f32.xlu0 %v907
        %v909 = vpop.xlane.xlu0 %908
        %v910 = vsel %vm800, %v900, 0.0
        %911 = vadd.xlane.f32.xlu0 %v910
        %v912 = vpop.xlane.xlu0 %911
        %v913 = vrcp.pop %v903
        %v914 = vrcp.pop %v906
        %v915 = vrcp.pop %v909
        %v916 = vrcp.pop %v912
        %v917 = vmul.f32 %v894, %v913
        %v918 = vmul.f32 %v896, %v914
        %v919 = vmul.f32 %v898, %v915
        %v920 = vmul.f32 %v900, %v916
        %v921 = vpack.c.bf16 %v917, %v917
        %v922 = vpack.c.bf16 %v918, %v918
        %v923 = vpack.c.bf16 %v919, %v919
        %v924 = vpack.c.bf16 %v920, %v920
        %v926 = vsel %vm800, %v921, 0
        %vm928 = vcmask 1043456
        %v930 = vsel %vm928, %v796, 0
        %932 = vmatpush.bf16.msra.mxu0 0
        %933 = vmatpush.bf16.msra.mxu0 0
        %934 = vmatpush.bf16.msra.mxu0 0
        %935 = vmatpush.bf16.msra.mxu0 0
        %936 = vmatpush.bf16.msra.mxu0 0
        %937 = vmatpush.bf16.msra.mxu0 0
        %938 = vmatpush.bf16.msra.mxu0 0
        %939 = vmatpush.bf16.msra.mxu0 %v930
        %940 = vmatmul.bf16.gmra.mxu0 %v926
        %v941 = vpop.f32.mrf.mxu0
        %v942 = vadd.f32 0.0, %v941
        %v943 = vpop.f32.mrf.mxu0
        %944 = vdwg.mxu0
        %v946 = vsel %vm800, %v922, 0
        %v949 = vsel %vm928, %v797, 0
        %951 = vmatpush.bf16.msra.mxu0 0
        %952 = vmatpush.bf16.msra.mxu0 0
        %953 = vmatpush.bf16.msra.mxu0 0
        %954 = vmatpush.bf16.msra.mxu0 0
        %955 = vmatpush.bf16.msra.mxu0 0
        %956 = vmatpush.bf16.msra.mxu0 0
        %957 = vmatpush.bf16.msra.mxu0 0
        %958 = vmatpush.bf16.msra.mxu0 %v949
        %959 = vmatmul.bf16.gmra.mxu0 %v946
        %v960 = vpop.f32.mrf.mxu0
        %v961 = vadd.f32 0.0, %v960
        %v962 = vpop.f32.mrf.mxu0
        %963 = vdwg.mxu0
        %v965 = vsel %vm800, %v923, 0
        %v968 = vsel %vm928, %v798, 0
        %970 = vmatpush.bf16.msra.mxu0 0
        %971 = vmatpush.bf16.msra.mxu0 0
        %972 = vmatpush.bf16.msra.mxu0 0
        %973 = vmatpush.bf16.msra.mxu0 0
        %974 = vmatpush.bf16.msra.mxu0 0
        %975 = vmatpush.bf16.msra.mxu0 0
        %976 = vmatpush.bf16.msra.mxu0 0
        %977 = vmatpush.bf16.msra.mxu0 %v968
        %978 = vmatmul.bf16.gmra.mxu0 %v965
        %v979 = vpop.f32.mrf.mxu0
        %v980 = vadd.f32 0.0, %v979
        %v981 = vpop.f32.mrf.mxu0
        %982 = vdwg.mxu0
        %v984 = vsel %vm800, %v924, 0
        %v987 = vsel %vm928, %v799, 0
        %989 = vmatpush.bf16.msra.mxu0 0
        %990 = vmatpush.bf16.msra.mxu0 0
        %991 = vmatpush.bf16.msra.mxu0 0
        %992 = vmatpush.bf16.msra.mxu0 0
        %993 = vmatpush.bf16.msra.mxu0 0
        %994 = vmatpush.bf16.msra.mxu0 0
        %995 = vmatpush.bf16.msra.mxu0 0
        %996 = vmatpush.bf16.msra.mxu0 %v987
        %997 = vmatmul.bf16.gmra.mxu0 %v984
        %v998 = vpop.f32.mrf.mxu0
        %v999 = vadd.f32 0.0, %v998
        %v1000 = vpop.f32.mrf.mxu0
        %1001 = vdwg.mxu0
        %v1002 = vpack.c.bf16 %v942, %v942
        %v1003 = vpack.c.bf16 %v961, %v961
        %v1004 = vpack.c.bf16 %v980, %v980
        %v1005 = vpack.c.bf16 %v999, %v999
        %v1006 = vld [vmem:[%s3] sm:$0xf]
        %s1007 = scalar_lea.vmem %s3, 4
        %v1008 = vld [vmem:[%s1007] sm:$0xf]
        %v1010 = vsel %vm800, %v1003, 0
        %v1013 = vsel %vm928, %v1008, 0
        %1015 = vmatpush.bf16.msra.mxu0 0
        %1016 = vmatpush.bf16.msra.mxu0 0
        %1017 = vmatpush.bf16.msra.mxu0 0
        %1018 = vmatpush.bf16.msra.mxu0 0
        %1019 = vmatpush.bf16.msra.mxu0 0
        %1020 = vmatpush.bf16.msra.mxu0 0
        %1021 = vmatpush.bf16.msra.mxu0 0
        %1022 = vmatpush.bf16.msra.mxu0 %v1013
        %1023 = vmatmul.bf16.gmra.mxu0 %v1010
        %v1024 = vpop.f32.mrf.mxu0
        %v1025 = vadd.f32 0.0, %v1024
        %v1026 = vpop.f32.mrf.mxu0
        %1027 = vdwg.mxu0
        %v1029 = vsel %vm800, %v1002, 0
        %v1032 = vsel %vm928, %v1006, 0
        %1034 = vmatpush.bf16.msra.mxu0 0
        %1035 = vmatpush.bf16.msra.mxu0 0
        %1036 = vmatpush.bf16.msra.mxu0 0
        %1037 = vmatpush.bf16.msra.mxu0 0
        %1038 = vmatpush.bf16.msra.mxu0 0
        %1039 = vmatpush.bf16.msra.mxu0 0
        %1040 = vmatpush.bf16.msra.mxu0 0
        %1041 = vmatpush.bf16.msra.mxu0 %v1032
        %1042 = vmatmul.bf16.gmra.mxu0 %v1029
        %v1043 = vpop.f32.mrf.mxu0
        %v1044 = vadd.f32 %v1025, %v1043
        %v1045 = vpop.f32.mrf.mxu0
        %1046 = vdwg.mxu0
        %s1047 = scalar_lea.vmem %s3, 8
        %v1048 = vld [vmem:[%s1047] sm:$0xf]
        %v1050 = vsel %vm800, %v1004, 0
        %v1053 = vsel %vm928, %v1048, 0
        %1055 = vmatpush.bf16.msra.mxu0 0
        %1056 = vmatpush.bf16.msra.mxu0 0
        %1057 = vmatpush.bf16.msra.mxu0 0
        %1058 = vmatpush.bf16.msra.mxu0 0
        %1059 = vmatpush.bf16.msra.mxu0 0
        %1060 = vmatpush.bf16.msra.mxu0 0
        %1061 = vmatpush.bf16.msra.mxu0 0
        %1062 = vmatpush.bf16.msra.mxu0 %v1053
        %1063 = vmatmul.bf16.gmra.mxu0 %v1050
        %v1064 = vpop.f32.mrf.mxu0
        %v1065 = vadd.f32 0.0, %v1064
        %v1066 = vpop.f32.mrf.mxu0
        %1067 = vdwg.mxu0
        %v1068 = vadd.f32 %v1044, %v1065
        %s1069 = scalar_lea.vmem %s3, 12
        %v1070 = vld [vmem:[%s1069] sm:$0xf]
        %v1072 = vsel %vm800, %v1005, 0
        %v1075 = vsel %vm928, %v1070, 0
        %1077 = vmatpush.bf16.msra.mxu0 0
        %1078 = vmatpush.bf16.msra.mxu0 0
        %1079 = vmatpush.bf16.msra.mxu0 0
        %1080 = vmatpush.bf16.msra.mxu0 0
        %1081 = vmatpush.bf16.msra.mxu0 0
        %1082 = vmatpush.bf16.msra.mxu0 0
        %1083 = vmatpush.bf16.msra.mxu0 0
        %1084 = vmatpush.bf16.msra.mxu0 %v1075
        %1085 = vmatmul.bf16.gmra.mxu0 %v1072
        %v1086 = vpop.f32.mrf.mxu0
        %v1087 = vadd.f32 0.0, %v1086
        %v1088 = vpop.f32.mrf.mxu0
        %1089 = vdwg.mxu0
        %v1090 = vadd.f32 %v1068, %v1087
        %v1091 = vld [vmem:[%s4] sm:$0x1]
        %v1093 = vperm.slane %v1091, 0
        %v1095 = vadd.f32 %v1090, %v1093
        %v1096 = vld [vmem:[%s5] sm:$0x1]
        %v1097 = vld [vmem:[%s6] sm:$0x1]
        %v1098 = vunpack.c.l.bf16 %v383
        %v1099 = vadd.f32 %v1098, %v1095
        %v1100 = vsel %vm428, %v1099, 0.0
        %1101 = vadd.xlane.f32.xlu0 %v1100
        %v1102 = vpop.xlane.xlu0 %1101
        %v1103 = vrcp.pop 32.0
        %v1104 = vmul.f32 32.0, %v1103
        %v1105 = vsub.f32 1.0, %v1104
        %v1106 = vmul.f32 %v1103, %v1105
        %v1107 = vadd.f32 %v1103, %v1106
        %vm1108 = vweird.f32 %v1103
        %v1109 = vsel %vm1108, %v1103, %v1107
        %v1110 = vmul.f32 %v1102, %v1109
        %v1111 = vsub.f32 %v1099, %v1110
        %v1112 = vmul.f32 %v1111, %v1111
        %v1113 = vsel %vm428, %v1112, 0.0
        %1114 = vadd.xlane.f32.xlu0 %v1113
        %v1115 = vpop.xlane.xlu0 %1114
        %v1116 = vmul.f32 %v1115, %v1109
        %v1117 = vadd.f32 %v1116, 1e-05
        %v1118 = vrsqrt.pop %v1117
        %v1119 = vmul.f32 %v1118, %v1117
        %v1120 = vmul.f32 %v1119, %v1118
        %v1121 = vmul.f32 0.5, %v1120
        %v1122 = vsub.f32 1.5, %v1121
        %v1123 = vmul.f32 %v1118, %v1122
        %vm1124 = vweird.f32 %v1117
        %vm1125 = vweird.f32 %v1118
        %vm1126 = vmor %vm1124, %vm1125
        %v1127 = vsel %vm1126, %v1118, %v1123
        %v1128 = vmul.f32 %v1111, %v1127
        %v1130 = vperm.slane %v1096, 0
        %v1132 = vmul.f32 %v1128, %v1130
        %v1134 = vperm.slane %v1097, 0
        %v1136 = vadd.f32 %v1132, %v1134
        %v1137 = vpack.c.bf16 %v1136, %v1136
        %v1138 = vld [vmem:[%s7] sm:$0xf]
        %v1139 = vld [vmem:[%s7 + $0x4] sm:$0xf]
        %v1140 = vld [vmem:[%s7 + $0x8] sm:$0xf]
        %v1141 = vld [vmem:[%s7 + $0xc] sm:$0xf]
        %v1142 = vld [vmem:[%s8] sm:$0x1]
        %v1144 = vperm.slane %v1142, 0
        %v1150 = vunpack.c.l.b16 %v1138
        %v1151 = vunpack.c.l.b16 %v1139
        %v1152 = vunpack.c.l.b16 %v1140
        %v1153 = vunpack.c.l.b16 %v1141
        %v1154 = vpack.c.b16 %v1151, %v1150
        %v1155 = vpack.c.b16 %v1153, %v1152
        %v1159 = vsel %vm428, %v1137, 0
        %1161 = vmatpush.bf16.msra.mxu0 0
        %1162 = vmatpush.bf16.msra.mxu0 0
        %1163 = vmatpush.bf16.msra.mxu0 0
        %1164 = vmatpush.bf16.msra.mxu0 0
        %1165 = vmatpush.bf16.msra.mxu0 0
        %1166 = vmatpush.bf16.msra.mxu0 0
        %1167 = vmatpush.bf16.msra.mxu0 %v1155
        %1168 = vmatpush.bf16.msra.mxu0 %v1154
        %1169 = vmatmul.bf16.gmra.mxu0 %v1159
        %v1170 = vpop.f32.mrf.mxu0
        %v1171 = vadd.f32 %v1144, %v1170
        %v1172 = vpop.f32.mrf.mxu0
        %1173 = vdwg.mxu0
        %v1174 = vmax.f32 %v1171, 0.0
        %v1175 = vpack.c.bf16 %v1174, %v1174
        %v1176 = vld [vmem:[%s9] sm:$0xf]
        %v1177 = vld [vmem:[%s9 + $0x4] sm:$0xf]
        %v1178 = vld [vmem:[%s9 + $0x8] sm:$0xf]
        %v1179 = vld [vmem:[%s9 + $0xc] sm:$0xf]
        %v1180 = vld [vmem:[%s9 + $0x10] sm:$0xf]
        %v1181 = vld [vmem:[%s9 + $0x14] sm:$0xf]
        %v1182 = vld [vmem:[%s9 + $0x18] sm:$0xf]
        %v1183 = vld [vmem:[%s9 + $0x1c] sm:$0xf]
        %v1184 = vld [vmem:[%s10] sm:$0x1]
        %v1186 = vperm.slane %v1184, 0
        %v1196 = vunpack.c.l.b16 %v1176
        %v1197 = vunpack.c.l.b16 %v1177
        %v1198 = vunpack.c.l.b16 %v1178
        %v1199 = vunpack.c.l.b16 %v1179
        %v1200 = vunpack.c.l.b16 %v1180
        %v1201 = vunpack.c.l.b16 %v1181
        %v1202 = vunpack.c.l.b16 %v1182
        %v1203 = vunpack.c.l.b16 %v1183
        %v1204 = vpack.c.b16 %v1197, %v1196
        %v1205 = vpack.c.b16 %v1199, %v1198
        %v1206 = vpack.c.b16 %v1201, %v1200
        %v1207 = vpack.c.b16 %v1203, %v1202
        %vm1212 = vcmask 523264
        %v1214 = vsel %vm1212, %v1175, 0
        %1216 = vmatpush.bf16.msra.mxu0 0
        %1217 = vmatpush.bf16.msra.mxu0 0
        %1218 = vmatpush.bf16.msra.mxu0 0
        %1219 = vmatpush.bf16.msra.mxu0 0
        %1220 = vmatpush.bf16.msra.mxu0 %v1207
        %1221 = vmatpush.bf16.msra.mxu0 %v1206
        %1222 = vmatpush.bf16.msra.mxu0 %v1205
        %1223 = vmatpush.bf16.msra.mxu0 %v1204
        %1224 = vmatmul.bf16.gmra.mxu0 %v1214
        %v1225 = vpop.f32.mrf.mxu0
        %v1226 = vadd.f32 %v1186, %v1225
        %v1227 = vpop.f32.mrf.mxu0
        %1228 = vdwg.mxu0
        %v1229 = vadd.f32 %v1136, %v1226
        %v1230 = vsel %vm428, %v1229, 0.0
        %1231 = vadd.xlane.f32.xlu0 %v1230
        %v1232 = vpop.xlane.xlu0 %1231
        %v1233 = vmul.f32 %v1232, %v1109
        %v1234 = vsub.f32 %v1229, %v1233
        %v1235 = vmul.f32 %v1234, %v1234
        %v1236 = vsel %vm428, %v1235, 0.0
        %1237 = vadd.xlane.f32.xlu0 %v1236
        %v1238 = vpop.xlane.xlu0 %1237
        %v1239 = vmul.f32 %v1238, %v1109
        %v1240 = vadd.f32 %v1239, 1e-05
        %v1241 = vrsqrt.pop %v1240
        %v1242 = vmul.f32 %v1241, %v1240
        %v1243 = vmul.f32 %v1242, %v1241
        %v1244 = vmul.f32 0.5, %v1243
        %v1245 = vsub.f32 1.5, %v1244
        %v1246 = vmul.f32 %v1241, %v1245
        %vm1247 = vweird.f32 %v1240
        %vm1248 = vweird.f32 %v1241
        %vm1249 = vmor %vm1247, %vm1248
        %v1250 = vsel %vm1249, %v1241, %v1246
        %v1251 = vmul.f32 %v1234, %v1250
        %v1252 = vmul.f32 %v1251, %v1130
        %v1253 = vadd.f32 %v1252, %v1134
        %v1254 = vpack.c.bf16 %v1253, %v1253
        %vm1255 = vcmask 257024
        %1256 = vst.msk [vmem:[%s377] sm:$0xf] %vm1255, %v1254
        %s1257 = sand.u32 %s269, 1
        %s1258 = scalar_lea.sflag [#allocation3], %s1257
        %s1259 = sand.u32 %s269, 1
        %s1260 = smul.addr %s1259, 4
        %s1261 = scalar_lea.vmem [#allocation2], %s1260
        // Predicated region
        $region65: #{tpu_custom_call.1} parent=63 // pred_check
          %p1262 = pneg %p279
        $region66: #{tpu_custom_call.1} parent=63 // pred_check_branch
          %1264 = sbr.rel (%p1262) target = $region68
        $region67: #{tpu_custom_call.1} parent=63 // pred_region
          %1266 = vsyncadd %s1258, 0
          %s1267 = smul.addr %s25, 4
          %s1268 = scalar_lea.hbm %s11, %s1267
          %s1270 = sshll.u32 %s1261, 4
          %s1271 = int_to_ptr.vmem [resolvable:$true] %s1270
          %s1272 = sshll.u32 %s1268, 4
          %s1273 = int_to_ptr.hbm [resolvable:$true] %s1272
          %1275 = dma.vmem_to_hbm [thread:$0]  %s1271, 64, %s1273, %s1258
        $region68: #{tpu_custom_call.1} parent=63 // pred_fallthru
          _
      $region64: #{tpu_custom_call.1} parent=5 // pred_fallthru
        _
      %p1276 = scmp.le.s32.totalorder 2, %s20
      // Predicated region
      $region69: #{tpu_custom_call.1} parent=5 // pred_check
        %p1277 = pneg %p1276
      $region70: #{tpu_custom_call.1} parent=5 // pred_check_branch
        %1279 = sbr.rel (%p1277) target = $region72
      $region71: #{tpu_custom_call.1} parent=5 // pred_region
        %s1280 = ssub.s32 %s20, 2
        // Predicated region
        $region73: #{tpu_custom_call.1} parent=71 // pred_check
          %p1281 = pneg %p285
        $region74: #{tpu_custom_call.1} parent=71 // pred_check_branch
          %1283 = sbr.rel (%p1281) target = $region76
        $region75: #{tpu_custom_call.1} parent=71 // pred_region
          %s1284 = sand.u32 %s270, 1
          %s1285 = scalar_lea.sflag [#allocation3], %s1284
          %s1286 = sand.u32 %s270, 1
          %s1287 = smul.addr %s1286, 4
          %s1288 = scalar_lea.vmem [#allocation2], %s1287
          %1290 = dma.done %s1285, 64
        $region76: #{tpu_custom_call.1} parent=71 // pred_fallthru
          _
      $region72: #{tpu_custom_call.1} parent=5 // pred_fallthru
        _
    $region6: #{tpu_custom_call.1} parent=1 // loop_footer
      %s24 = sadd.s32 1, %s20
    $region7: #{tpu_custom_call.1} parent=1 // loop_footer_branch
      %19 = sbr.rel target = $region3
    $region8: #{tpu_custom_call.1} parent=1 // loop_exit
      _
    %1291 = vsyncpa [#allocation3], 1
    %s1292 = scalar_lea.sflag [#allocation3], 1
    %1293 = vsyncpa %s1292, 1

// kernel: tpu_custom_call.1
$region0: #{tpu_custom_call.1}
  #allocation0 [shape = 'u32[]', space=smem, size = 0x4, offset = 0x4, fixed_abs, tag = 'smem constant byte address 0x4 - core index']
  #allocation1 [shape = 'u32[72,128]{1,0:T(1,128)}', space=vmem, size = 0x9000, scoped, tag = 'internal scratch']
  %s0 = inlined_call_operand.vmem [shape: bf16[2,8,32], index: 0, kind: input, shape index: {}]
  %s1 = inlined_call_operand.vmem [shape: bf16[3,4,32,8], index: 1, kind: input, shape index: {}]
  %s2 = inlined_call_operand.vmem [shape: f32[3,4,1,8], index: 2, kind: input, shape index: {}]
  %s3 = inlined_call_operand.vmem [shape: bf16[4,8,32], index: 3, kind: input, shape index: {}]
  %s4 = inlined_call_operand.vmem [shape: f32[1,32], index: 4, kind: input, shape index: {}]
  %s5 = inlined_call_operand.vmem [shape: f32[1,32], index: 5, kind: input, shape index: {}]
  %s6 = inlined_call_operand.vmem [shape: f32[1,32], index: 6, kind: input, shape index: {}]
  %s7 = inlined_call_operand.vmem [shape: bf16[32,64], index: 7, kind: input, shape index: {}]
  %s8 = inlined_call_operand.vmem [shape: f32[1,64], index: 8, kind: input, shape index: {}]
  %s9 = inlined_call_operand.vmem [shape: bf16[64,32], index: 9, kind: input, shape index: {}]
  %s10 = inlined_call_operand.vmem [shape: f32[1,32], index: 10, kind: input, shape index: {}]
  %s11 = inlined_call_operand.hbm [shape: bf16[2,8,32], index: 11, kind: output, shape index: {}]
  %s12 = sld [smem:[#allocation0]]
  $region77: #{tpu_custom_call.1} parent=0
    _
  %s14 = ssub.s32 1, %s12
  %s15 = scalar_select 0, %s14, %s12
  $region1: #{tpu_custom_call.1} parent=0
    #allocation2 [shape = 'u8[4096]{0}', space=vmem, size = 0x1000, scoped, tag = 'output window, operand 0']
    #allocation3 [shape = 's32[2]{0}', space=sflag, size = 0x8, scoped, tag = 'scoped memory for tpu_custom_call.1']
    %16 = vsyncpa [#allocation3], 0
    %s17 = scalar_lea.sflag [#allocation3], 1
    %18 = vsyncpa %s17, 0
    loop: start=0, step=1, limit=4
    $region2: #{tpu_custom_call.1} parent=1 // loop_pre_header
      _
    $region3: #{tpu_custom_call.1} parent=1 // loop_header
      %s20 = sphi 0, %s24
      %p21 = scmp.ge.s32.totalorder %s20, 4
      %s30 = sphi 0, %s32
      %s33 = sphi 0, %s30
      %s34 = sphi 0, %s33
      %s50 = sphi 0, %s34
      %s54 = sphi 0, %s54
      %s56 = sphi 0, %s54
      %s57 = sphi 0, %s56
      %s71 = sphi 0, %s57
      %s75 = sphi 0, %s75
      %s77 = sphi 0, %s75
      %s78 = sphi 0, %s77
      %s92 = sphi 0, %s78
      %s96 = sphi 0, %s96
      %s98 = sphi 0, %s96
      %s99 = sphi 0, %s98
      %s113 = sphi 0, %s99
      %s117 = sphi 0, %s117
      %s119 = sphi 0, %s117
      %s120 = sphi 0, %s119
      %s134 = sphi 0, %s120
      %s138 = sphi 0, %s138
      %s140 = sphi 0, %s138
      %s141 = sphi 0, %s140
      %s155 = sphi 0, %s141
      %s159 = sphi 0, %s159
      %s161 = sphi 0, %s159
      %s162 = sphi 0, %s161
      %s176 = sphi 0, %s162
      %s180 = sphi 0, %s180
      %s182 = sphi 0, %s180
      %s183 = sphi 0, %s182
      %s197 = sphi 0, %s183
      %s201 = sphi 0, %s201
      %s203 = sphi 0, %s201
      %s204 = sphi 0, %s203
      %s218 = sphi 0, %s204
      %s222 = sphi 0, %s222
      %s224 = sphi 0, %s222
      %s225 = sphi 0, %s224
      %s239 = sphi 0, %s225
      %s243 = sphi 0, %s243
      %s245 = sphi 0, %s243
      %s246 = sphi 0, %s245
      %s260 = sphi 0, %s246
      %s266 = sphi 0, %s268
      %s269 = sphi 0, %s266
      %s270 = sphi 0, %s269
      %s286 = sphi 0, %s270
    $region4: #{tpu_custom_call.1} parent=1 // loop_header_branch
      %23 = sbr.rel (%p21) target = $region8
    $region5: #{tpu_custom_call.1} parent=1 // loop_body
      %s25 = ssub.s32 %s20, 1
      %s26 = ssub.s32 %s20, 2
      %s27 = sadd.s32 %s20, 1
      %s28 = ssub.s32 %s20, %s27
      %p29 = scmp.eq.s32.totalorder %s28, 0
      %s31 = sadd.s32 %s30, 1
      %s32 = scalar_select %p29, %s30, %s31
      %p35 = pneg %p29
      %p36 = scmp.eq.s32.totalorder %s20, 1
      %p37 = por %p35, %p36
      %p38 = scmp.ne.s32.totalorder %s30, %s33
      %p39 = scmp.eq.s32.totalorder %s20, 0
      %p40 = por %p38, %p39
      %p41 = scmp.ne.s32.totalorder %s30, %s33
      %p42 = scmp.eq.s32.totalorder %s25, 1
      %p43 = por %p41, %p42
      %p44 = scmp.ne.s32.totalorder %s33, %s34
      %p45 = scmp.eq.s32.totalorder %s25, 0
      %p46 = por %p44, %p45
      %p47 = scmp.ne.s32.totalorder %s33, %s34
      %p48 = scmp.eq.s32.totalorder %s26, 1
      %p49 = por %p47, %p48
      %p51 = scmp.ne.s32.totalorder %s34, %s50
      %p52 = scmp.eq.s32.totalorder %s26, 0
      %p53 = por %p51, %p52
      %s55 = sadd.s32 %s54, 1
      %p58 = scmp.eq.s32.totalorder %s20, 1
      %p59 = scmp.ne.s32.totalorder %s54, %s56
      %p60 = scmp.eq.s32.totalorder %s20, 0
      %p61 = por %p59, %p60
      %p62 = scmp.ne.s32.totalorder %s54, %s56
      %p63 = scmp.eq.s32.totalorder %s25, 1
      %p64 = por %p62, %p63
      %p65 = scmp.ne.s32.totalorder %s56, %s57
      %p66 = scmp.eq.s32.totalorder %s25, 0
      %p67 = por %p65, %p66
      %p68 = scmp.ne.s32.totalorder %s56, %s57
      %p69 = scmp.eq.s32.totalorder %s26, 1
      %p70 = por %p68, %p69
      %p72 = scmp.ne.s32.totalorder %s57, %s71
      %p73 = scmp.eq.s32.totalorder %s26, 0
      %p74 = por %p72, %p73
      %s76 = sadd.s32 %s75, 1
      %p79 = scmp.eq.s32.totalorder %s20, 1
      %p80 = scmp.ne.s32.totalorder %s75, %s77
      %p81 = scmp.eq.s32.totalorder %s20, 0
      %p82 = por %p80, %p81
      %p83 = scmp.ne.s32.totalorder %s75, %s77
      %p84 = scmp.eq.s32.totalorder %s25, 1
      %p85 = por %p83, %p84
      %p86 = scmp.ne.s32.totalorder %s77, %s78
      %p87 = scmp.eq.s32.totalorder %s25, 0
      %p88 = por %p86, %p87
      %p89 = scmp.ne.s32.totalorder %s77, %s78
      %p90 = scmp.eq.s32.totalorder %s26, 1
      %p91 = por %p89, %p90
      %p93 = scmp.ne.s32.totalorder %s78, %s92
      %p94 = scmp.eq.s32.totalorder %s26, 0
      %p95 = por %p93, %p94
      %s97 = sadd.s32 %s96, 1
      %p100 = scmp.eq.s32.totalorder %s20, 1
      %p101 = scmp.ne.s32.totalorder %s96, %s98
      %p102 = scmp.eq.s32.totalorder %s20, 0
      %p103 = por %p101, %p102
      %p104 = scmp.ne.s32.totalorder %s96, %s98
      %p105 = scmp.eq.s32.totalorder %s25, 1
      %p106 = por %p104, %p105
      %p107 = scmp.ne.s32.totalorder %s98, %s99
      %p108 = scmp.eq.s32.totalorder %s25, 0
      %p109 = por %p107, %p108
      %p110 = scmp.ne.s32.totalorder %s98, %s99
      %p111 = scmp.eq.s32.totalorder %s26, 1
      %p112 = por %p110, %p111
      %p114 = scmp.ne.s32.totalorder %s99, %s113
      %p115 = scmp.eq.s32.totalorder %s26, 0
      %p116 = por %p114, %p115
      %s118 = sadd.s32 %s117, 1
      %p121 = scmp.eq.s32.totalorder %s20, 1
      %p122 = scmp.ne.s32.totalorder %s117, %s119
      %p123 = scmp.eq.s32.totalorder %s20, 0
      %p124 = por %p122, %p123
      %p125 = scmp.ne.s32.totalorder %s117, %s119
      %p126 = scmp.eq.s32.totalorder %s25, 1
      %p127 = por %p125, %p126
      %p128 = scmp.ne.s32.totalorder %s119, %s120
      %p129 = scmp.eq.s32.totalorder %s25, 0
      %p130 = por %p128, %p129
      %p131 = scmp.ne.s32.totalorder %s119, %s120
      %p132 = scmp.eq.s32.totalorder %s26, 1
      %p133 = por %p131, %p132
      %p135 = scmp.ne.s32.totalorder %s120, %s134
      %p136 = scmp.eq.s32.totalorder %s26, 0
      %p137 = por %p135, %p136
      %s139 = sadd.s32 %s138, 1
      %p142 = scmp.eq.s32.totalorder %s20, 1
      %p143 = scmp.ne.s32.totalorder %s138, %s140
      %p144 = scmp.eq.s32.totalorder %s20, 0
      %p145 = por %p143, %p144
      %p146 = scmp.ne.s32.totalorder %s138, %s140
      %p147 = scmp.eq.s32.totalorder %s25, 1
      %p148 = por %p146, %p147
      %p149 = scmp.ne.s32.totalorder %s140, %s141
      %p150 = scmp.eq.s32.totalorder %s25, 0
      %p151 = por %p149, %p150
      %p152 = scmp.ne.s32.totalorder %s140, %s141
      %p153 = scmp.eq.s32.totalorder %s26, 1
      %p154 = por %p152, %p153
      %p156 = scmp.ne.s32.totalorder %s141, %s155
      %p157 = scmp.eq.s32.totalorder %s26, 0
      %p158 = por %p156, %p157
      %s160 = sadd.s32 %s159, 1
      %p163 = scmp.eq.s32.totalorder %s20, 1
      %p164 = scmp.ne.s32.totalorder %s159, %s161
      %p165 = scmp.eq.s32.totalorder %s20, 0
      %p166 = por %p164, %p165
      %p167 = scmp.ne.s32.totalorder %s159, %s161
      %p168 = scmp.eq.s32.totalorder %s25, 1
      %p169 = por %p167, %p168
      %p170 = scmp.ne.s32.totalorder %s161, %s162
      %p171 = scmp.eq.s32.totalorder %s25, 0
      %p172 = por %p170, %p171
      %p173 = scmp.ne.s32.totalorder %s161, %s162
      %p174 = scmp.eq.s32.totalorder %s26, 1
      %p175 = por %p173, %p174
      %p177 = scmp.ne.s32.totalorder %s162, %s176
      %p178 = scmp.eq.s32.totalorder %s26, 0
      %p179 = por %p177, %p178
      %s181 = sadd.s32 %s180, 1
      %p184 = scmp.eq.s32.totalorder %s20, 1
      %p185 = scmp.ne.s32.totalorder %s180, %s182
      %p186 = scmp.eq.s32.totalorder %s20, 0
      %p187 = por %p185, %p186
      %p188 = scmp.ne.s32.totalorder %s180, %s182
      %p189 = scmp.eq.s32.totalorder %s25, 1
      %p190 = por %p188, %p189
      %p191 = scmp.ne.s32.totalorder %s182, %s183
      %p192 = scmp.eq.s32.totalorder %s25, 0
      %p193 = por %p191, %p192
      %p194 = scmp.ne.s32.totalorder %s182, %s183
      %p195 = scmp.eq.s32.totalorder %s26, 1
      %p196 = por %p194, %p195
      %p198 = scmp.ne.s32.totalorder %s183, %s197
      %p199 = scmp.eq.s32.totalorder %s26, 0
      %p200 = por %p198, %p199
      %s202 = sadd.s32 %s201, 1
      %p205 = scmp.eq.s32.totalorder %s20, 1
      %p206 = scmp.ne.s32.totalorder %s201, %s203
      %p207 = scmp.eq.s32.totalorder %s20, 0
      %p208 = por %p206, %p207
      %p209 = scmp.ne.s32.totalorder %s201, %s203
      %p210 = scmp.eq.s32.totalorder %s25, 1
      %p211 = por %p209, %p210
      %p212 = scmp.ne.s32.totalorder %s203, %s204
      %p213 = scmp.eq.s32.totalorder %s25, 0
      %p214 = por %p212, %p213
      %p215 = scmp.ne.s32.totalorder %s203, %s204
      %p216 = scmp.eq.s32.totalorder %s26, 1
      %p217 = por %p215, %p216
      %p219 = scmp.ne.s32.totalorder %s204, %s218
      %p220 = scmp.eq.s32.totalorder %s26, 0
      %p221 = por %p219, %p220
      %s223 = sadd.s32 %s222, 1
      %p226 = scmp.eq.s32.totalorder %s20, 1
      %p227 = scmp.ne.s32.totalorder %s222, %s224
      %p228 = scmp.eq.s32.totalorder %s20, 0
      %p229 = por %p227, %p228
      %p230 = scmp.ne.s32.totalorder %s222, %s224
      %p231 = scmp.eq.s32.totalorder %s25, 1
      %p232 = por %p230, %p231
      %p233 = scmp.ne.s32.totalorder %s224, %s225
      %p234 = scmp.eq.s32.totalorder %s25, 0
      %p235 = por %p233, %p234
      %p236 = scmp.ne.s32.totalorder %s224, %s225
      %p237 = scmp.eq.s32.totalorder %s26, 1
      %p238 = por %p236, %p237
      %p240 = scmp.ne.s32.totalorder %s225, %s239
      %p241 = scmp.eq.s32.totalorder %s26, 0
      %p242 = por %p240, %p241
      %s244 = sadd.s32 %s243, 1
      %p247 = scmp.eq.s32.totalorder %s20, 1
      %p248 = scmp.ne.s32.totalorder %s243, %s245
      %p249 = scmp.eq.s32.totalorder %s20, 0
      %p250 = por %p248, %p249
      %p251 = scmp.ne.s32.totalorder %s243, %s245
      %p252 = scmp.eq.s32.totalorder %s25, 1
      %p253 = por %p251, %p252
      %p254 = scmp.ne.s32.totalorder %s245, %s246
      %p255 = scmp.eq.s32.totalorder %s25, 0
      %p256 = por %p254, %p255
      %p257 = scmp.ne.s32.totalorder %s245, %s246
      %p258 = scmp.eq.s32.totalorder %s26, 1
      %p259 = por %p257, %p258
      %p261 = scmp.ne.s32.totalorder %s246, %s260
      %p262 = scmp.eq.s32.totalorder %s26, 0
      %p263 = por %p261, %p262
      %s264 = ssub.s32 %s20, %s27
      %p265 = scmp.eq.s32.totalorder %s264, 0
      %s267 = sadd.s32 %s266, 1
      %s268 = scalar_select %p265, %s266, %s267
      %p271 = pneg %p265
      %p272 = scmp.eq.s32.totalorder %s20, 1
      %p273 = por %p271, %p272
      %p274 = scmp.ne.s32.totalorder %s266, %s269
      %p275 = scmp.eq.s32.totalorder %s20, 0
      %p276 = por %p274, %p275
      %p277 = scmp.ne.s32.totalorder %s266, %s269
      %p278 = scmp.eq.s32.totalorder %s25, 1
      %p279 = por %p277, %p278
      %p280 = scmp.ne.s32.totalorder %s269, %s270
      %p281 = scmp.eq.s32.totalorder %s25, 0
      %p282 = por %p280, %p281
      %p283 = scmp.ne.s32.totalorder %s269, %s270
      %p284 = scmp.eq.s32.totalorder %s26, 1
      %p285 = por %p283, %p284
      %p287 = scmp.ne.s32.totalorder %s270, %s286
      %p288 = scmp.eq.s32.totalorder %s26, 0
      %p289 = por %p287, %p288
      %p290 = scmp.le.s32.totalorder 1, %s20
      %p291 = scmp.lt.s32.totalorder %s20, 3
      %p292 = pnand %p290, %p291
      %p293 = pneg %p292
      // Predicated region
      $region9: #{tpu_custom_call.1} parent=5 // pred_check
        _
      $region10: #{tpu_custom_call.1} parent=5 // pred_check_branch
        %295 = sbr.rel (%p292) target = $region12
      $region11: #{tpu_custom_call.1} parent=5 // pred_region
        %s296 = ssub.s32 %s20, 1
        // Predicated region
        $region13: #{tpu_custom_call.1} parent=11 // pred_check
          %p297 = pneg %p67
        $region14: #{tpu_custom_call.1} parent=11 // pred_check_branch
          %299 = sbr.rel (%p297) target = $region16
        $region15: #{tpu_custom_call.1} parent=11 // pred_region
          _
        $region16: #{tpu_custom_call.1} parent=11 // pred_fallthru
          _
        // Predicated region
        $region17: #{tpu_custom_call.1} parent=11 // pred_check
          %p300 = pneg %p88
        $region18: #{tpu_custom_call.1} parent=11 // pred_check_branch
          %302 = sbr.rel (%p300) target = $region20
        $region19: #{tpu_custom_call.1} parent=11 // pred_region
          _
        $region20: #{tpu_custom_call.1} parent=11 // pred_fallthru
          _
        // Predicated region
        $region21: #{tpu_custom_call.1} parent=11 // pred_check
          %p303 = pneg %p109
        $region22: #{tpu_custom_call.1} parent=11 // pred_check_branch
          %305 = sbr.rel (%p303) target = $region24
        $region23: #{tpu_custom_call.1} parent=11 // pred_region
          _
        $region24: #{tpu_custom_call.1} parent=11 // pred_fallthru
          _
        // Predicated region
        $region25: #{tpu_custom_call.1} parent=11 // pred_check
          %p306 = pneg %p130
        $region26: #{tpu_custom_call.1} parent=11 // pred_check_branch
          %308 = sbr.rel (%p306) target = $region28
        $region27: #{tpu_custom_call.1} parent=11 // pred_region
          _
        $region28: #{tpu_custom_call.1} parent=11 // pred_fallthru
          _
        // Predicated region
        $region29: #{tpu_custom_call.1} parent=11 // pred_check
          %p309 = pneg %p151
        $region30: #{tpu_custom_call.1} parent=11 // pred_check_branch
          %311 = sbr.rel (%p309) target = $region32
        $region31: #{tpu_custom_call.1} parent=11 // pred_region
          _
        $region32: #{tpu_custom_call.1} parent=11 // pred_fallthru
          _
        // Predicated region
        $region33: #{tpu_custom_call.1} parent=11 // pred_check
          %p312 = pneg %p172
        $region34: #{tpu_custom_call.1} parent=11 // pred_check_branch
          %314 = sbr.rel (%p312) target = $region36
        $region35: #{tpu_custom_call.1} parent=11 // pred_region
          _
        $region36: #{tpu_custom_call.1} parent=11 // pred_fallthru
          _
        // Predicated region
        $region37: #{tpu_custom_call.1} parent=11 // pred_check
          %p315 = pneg %p193
        $region38: #{tpu_custom_call.1} parent=11 // pred_check_branch
          %317 = sbr.rel (%p315) target = $region40
        $region39: #{tpu_custom_call.1} parent=11 // pred_region
          _
        $region40: #{tpu_custom_call.1} parent=11 // pred_fallthru
          _
        // Predicated region
        $region41: #{tpu_custom_call.1} parent=11 // pred_check
          %p318 = pneg %p214
        $region42: #{tpu_custom_call.1} parent=11 // pred_check_branch
          %320 = sbr.rel (%p318) target = $region44
        $region43: #{tpu_custom_call.1} parent=11 // pred_region
          _
        $region44: #{tpu_custom_call.1} parent=11 // pred_fallthru
          _
        // Predicated region
        $region45: #{tpu_custom_call.1} parent=11 // pred_check
          %p321 = pneg %p235
        $region46: #{tpu_custom_call.1} parent=11 // pred_check_branch
          %323 = sbr.rel (%p321) target = $region48
        $region47: #{tpu_custom_call.1} parent=11 // pred_region
          _
        $region48: #{tpu_custom_call.1} parent=11 // pred_fallthru
          _
        // Predicated region
        $region49: #{tpu_custom_call.1} parent=11 // pred_check
          %p324 = pneg %p256
        $region50: #{tpu_custom_call.1} parent=11 // pred_check_branch
          %326 = sbr.rel (%p324) target = $region52
        $region51: #{tpu_custom_call.1} parent=11 // pred_region
          _
        $region52: #{tpu_custom_call.1} parent=11 // pred_fallthru
          _
      $region12: #{tpu_custom_call.1} parent=5 // pred_fallthru
        _
      %p327 = scmp.lt.s32.totalorder %s20, 2
      // Predicated region
      $region53: #{tpu_custom_call.1} parent=5 // pred_check
        %p328 = pneg %p327
      $region54: #{tpu_custom_call.1} parent=5 // pred_check_branch
        %330 = sbr.rel (%p328) target = $region56
      $region55: #{tpu_custom_call.1} parent=5 // pred_region
        // Predicated region
        $region57: #{tpu_custom_call.1} parent=55 // pred_check
          %p331 = pneg %p40
        $region58: #{tpu_custom_call.1} parent=55 // pred_check_branch
          %333 = sbr.rel (%p331) target = $region60
        $region59: #{tpu_custom_call.1} parent=55 // pred_region
          %p334 = scmp.lt.s32.totalorder %s20, 1
          %s335 = scalar_select %p334, %s20, 1
          %s336 = smul.addr %s335, 4
          %s337 = scalar_lea.vmem %s0, %s336
        $region60: #{tpu_custom_call.1} parent=55 // pred_fallthru
          _
      $region56: #{tpu_custom_call.1} parent=5 // pred_fallthru
        _
      %p338 = scmp.le.s32.totalorder 1, %s20
      %p339 = scmp.lt.s32.totalorder %s20, 3
      %p340 = pnand %p338, %p339
      %p341 = pneg %p340
      // Predicated region
      $region61: #{tpu_custom_call.1} parent=5 // pred_check
        _
      $region62: #{tpu_custom_call.1} parent=5 // pred_check_branch
        %343 = sbr.rel (%p340) target = $region64
      $region63: #{tpu_custom_call.1} parent=5 // pred_region
        %s344 = ssub.s32 %s20, 1
        %p345 = scmp.lt.s32.totalorder %s25, 1
        %s346 = scalar_select %p345, %s25, 1
        %s347 = smul.addr %s346, 4
        %s348 = scalar_lea.vmem %s0, %s347
        %p349 = pneg %p46
        %p350 = pneg %p43
        %p351 = pneg %p67
        %p352 = pneg %p64
        %p353 = pneg %p88
        %p354 = pneg %p85
        %p355 = pneg %p109
        %p356 = pneg %p106
        %p357 = pneg %p130
        %p358 = pneg %p127
        %p359 = pneg %p151
        %p360 = pneg %p148
        %p361 = pneg %p172
        %p362 = pneg %p169
        %p363 = pneg %p193
        %p364 = pneg %p190
        %p365 = pneg %p214
        %p366 = pneg %p211
        %p367 = pneg %p235
        %p368 = pneg %p232
        %p369 = pneg %p256
        %p370 = pneg %p253
        %p371 = pneg %p282
        %p372 = pneg %p279
        %s373 = sand.u32 %s269, 1
        %s374 = scalar_lea.sflag [#allocation3], %s373
        %s375 = sand.u32 %s269, 1
        %s376 = smul.addr %s375, 4
        %s377 = scalar_lea.vmem [#allocation2], %s376
        %p378 = scmp.lt.s32.totalorder %s25, 1
        %s379 = scalar_select %p378, %s25, 1
        %s380 = smul.addr %s379, 4
        %s381 = scalar_lea.vmem %s0, %s380
        %v383 = vld [vmem:[%s381] sm:$0xf]
        %v384 = vld [vmem:[%s1] sm:$0xf]
        %v385 = vld [vmem:[%s1 + $0x4] sm:$0xf]
        %v386 = vld [vmem:[%s1 + $0x8] sm:$0xf]
        %v387 = vld [vmem:[%s1 + $0xc] sm:$0xf]
        %v388 = vld [vmem:[%s1 + $0x10] sm:$0xf]
        %v389 = vld [vmem:[%s1 + $0x14] sm:$0xf]
        %v390 = vld [vmem:[%s1 + $0x18] sm:$0xf]
        %v391 = vld [vmem:[%s1 + $0x1c] sm:$0xf]
        %v392 = vld [vmem:[%s1 + $0x20] sm:$0xf]
        %v393 = vld [vmem:[%s1 + $0x24] sm:$0xf]
        %v394 = vld [vmem:[%s1 + $0x28] sm:$0xf]
        %v395 = vld [vmem:[%s1 + $0x2c] sm:$0xf]
        %v396 = vld [vmem:[%s1 + $0x30] sm:$0xf]
        %v397 = vld [vmem:[%s1 + $0x34] sm:$0xf]
        %v398 = vld [vmem:[%s1 + $0x38] sm:$0xf]
        %v399 = vld [vmem:[%s1 + $0x3c] sm:$0xf]
        %v400 = vld [vmem:[%s2] sm:$0x1]
        %v401 = vld [vmem:[%s2 + $0x1] sm:$0x1]
        %v402 = vld [vmem:[%s2 + $0x2] sm:$0x1]
        %v403 = vld [vmem:[%s2 + $0x3] sm:$0x1]
        %v408 = vperm.slane %v400, 0
        %v409 = vperm.slane %v401, 0
        %v410 = vperm.slane %v402, 0
        %v411 = vperm.slane %v403, 0
        %v420 = vunpack.c.l.b16 %v384
        %v421 = vunpack.c.l.b16 %v385
        %v422 = vunpack.c.l.b16 %v386
        %v423 = vunpack.c.l.b16 %v387
        %v424 = vpack.c.b16 %v421, %v420
        %v425 = vpack.c.b16 %v423, %v422
        %vm428 = vcmask 261120
        %v430 = vsel %vm428, %v383, 0
        %432 = vmatpush.bf16.msra.mxu0 0
        %433 = vmatpush.bf16.msra.mxu0 0
        %434 = vmatpush.bf16.msra.mxu0 0
        %435 = vmatpush.bf16.msra.mxu0 0
        %436 = vmatpush.bf16.msra.mxu0 0
        %437 = vmatpush.bf16.msra.mxu0 0
        %438 = vmatpush.bf16.msra.mxu0 %v425
        %439 = vmatpush.bf16.msra.mxu0 %v424
        %440 = vmatmul.bf16.gmra.mxu0 %v430
        %v441 = vpop.f32.mrf.mxu0
        %v442 = vadd.f32 %v408, %v441
        %v443 = vpop.f32.mrf.mxu0
        %444 = vdwg.mxu0
        %v449 = vunpack.c.l.b16 %v388
        %v450 = vunpack.c.l.b16 %v389
        %v451 = vunpack.c.l.b16 %v390
        %v452 = vunpack.c.l.b16 %v391
        %v453 = vpack.c.b16 %v450, %v449
        %v454 = vpack.c.b16 %v452, %v451
        %457 = vmatpush.bf16.msra.mxu0 0
        %458 = vmatpush.bf16.msra.mxu0 0
        %459 = vmatpush.bf16.msra.mxu0 0
        %460 = vmatpush.bf16.msra.mxu0 0
        %461 = vmatpush.bf16.msra.mxu0 0
        %462 = vmatpush.bf16.msra.mxu0 0
        %463 = vmatpush.bf16.msra.mxu0 %v454
        %464 = vmatpush.bf16.msra.mxu0 %v453
        %465 = vmatmul.bf16.gmra.mxu0 %v430
        %v466 = vpop.f32.mrf.mxu0
        %v467 = vadd.f32 %v409, %v466
        %v468 = vpop.f32.mrf.mxu0
        %469 = vdwg.mxu0
        %v474 = vunpack.c.l.b16 %v392
        %v475 = vunpack.c.l.b16 %v393
        %v476 = vunpack.c.l.b16 %v394
        %v477 = vunpack.c.l.b16 %v395
        %v478 = vpack.c.b16 %v475, %v474
        %v479 = vpack.c.b16 %v477, %v476
        %482 = vmatpush.bf16.msra.mxu0 0
        %483 = vmatpush.bf16.msra.mxu0 0
        %484 = vmatpush.bf16.msra.mxu0 0
        %485 = vmatpush.bf16.msra.mxu0 0
        %486 = vmatpush.bf16.msra.mxu0 0
        %487 = vmatpush.bf16.msra.mxu0 0
        %488 = vmatpush.bf16.msra.mxu0 %v479
        %489 = vmatpush.bf16.msra.mxu0 %v478
        %490 = vmatmul.bf16.gmra.mxu0 %v430
        %v491 = vpop.f32.mrf.mxu0
        %v492 = vadd.f32 %v410, %v491
        %v493 = vpop.f32.mrf.mxu0
        %494 = vdwg.mxu0
        %v499 = vunpack.c.l.b16 %v396
        %v500 = vunpack.c.l.b16 %v397
        %v501 = vunpack.c.l.b16 %v398
        %v502 = vunpack.c.l.b16 %v399
        %v503 = vpack.c.b16 %v500, %v499
        %v504 = vpack.c.b16 %v502, %v501
        %507 = vmatpush.bf16.msra.mxu0 0
        %508 = vmatpush.bf16.msra.mxu0 0
        %509 = vmatpush.bf16.msra.mxu0 0
        %510 = vmatpush.bf16.msra.mxu0 0
        %511 = vmatpush.bf16.msra.mxu0 0
        %512 = vmatpush.bf16.msra.mxu0 0
        %513 = vmatpush.bf16.msra.mxu0 %v504
        %514 = vmatpush.bf16.msra.mxu0 %v503
        %515 = vmatmul.bf16.gmra.mxu0 %v430
        %v516 = vpop.f32.mrf.mxu0
        %v517 = vadd.f32 %v411, %v516
        %v518 = vpop.f32.mrf.mxu0
        %519 = vdwg.mxu0
        %v520 = vpack.c.bf16 %v442, %v442
        %v521 = vpack.c.bf16 %v467, %v467
        %v522 = vpack.c.bf16 %v492, %v492
        %v523 = vpack.c.bf16 %v517, %v517
        %s524 = scalar_lea.vmem %s1, 64
        %v525 = vld [vmem:[%s524] sm:$0xf]
        %v526 = vld [vmem:[%s524 + $0x4] sm:$0xf]
        %v527 = vld [vmem:[%s524 + $0x8] sm:$0xf]
        %v528 = vld [vmem:[%s524 + $0xc] sm:$0xf]
        %v529 = vld [vmem:[%s524 + $0x10] sm:$0xf]
        %v530 = vld [vmem:[%s524 + $0x14] sm:$0xf]
        %v531 = vld [vmem:[%s524 + $0x18] sm:$0xf]
        %v532 = vld [vmem:[%s524 + $0x1c] sm:$0xf]
        %v533 = vld [vmem:[%s524 + $0x20] sm:$0xf]
        %v534 = vld [vmem:[%s524 + $0x24] sm:$0xf]
        %v535 = vld [vmem:[%s524 + $0x28] sm:$0xf]
        %v536 = vld [vmem:[%s524 + $0x2c] sm:$0xf]
        %v537 = vld [vmem:[%s524 + $0x30] sm:$0xf]
        %v538 = vld [vmem:[%s524 + $0x34] sm:$0xf]
        %v539 = vld [vmem:[%s524 + $0x38] sm:$0xf]
        %v540 = vld [vmem:[%s524 + $0x3c] sm:$0xf]
        %s541 = scalar_lea.vmem %s2, 4
        %v542 = vld [vmem:[%s541] sm:$0x1]
        %v543 = vld [vmem:[%s541 + $0x1] sm:$0x1]
        %v544 = vld [vmem:[%s541 + $0x2] sm:$0x1]
        %v545 = vld [vmem:[%s541 + $0x3] sm:$0x1]
        %v550 = vperm.slane %v542, 0
        %v551 = vperm.slane %v543, 0
        %v552 = vperm.slane %v544, 0
        %v553 = vperm.slane %v545, 0
        %v562 = vunpack.c.l.b16 %v525
        %v563 = vunpack.c.l.b16 %v526
        %v564 = vunpack.c.l.b16 %v527
        %v565 = vunpack.c.l.b16 %v528
        %v566 = vpack.c.b16 %v563, %v562
        %v567 = vpack.c.b16 %v565, %v564
        %570 = vmatpush.bf16.msra.mxu0 0
        %571 = vmatpush.bf16.msra.mxu0 0
        %572 = vmatpush.bf16.msra.mxu0 0
        %573 = vmatpush.bf16.msra.mxu0 0
        %574 = vmatpush.bf16.msra.mxu0 0
        %575 = vmatpush.bf16.msra.mxu0 0
        %576 = vmatpush.bf16.msra.mxu0 %v567
        %577 = vmatpush.bf16.msra.mxu0 %v566
        %578 = vmatmul.bf16.gmra.mxu0 %v430
        %v579 = vpop.f32.mrf.mxu0
        %v580 = vadd.f32 %v550, %v579
        %v581 = vpop.f32.mrf.mxu0
        %582 = vdwg.mxu0
        %v587 = vunpack.c.l.b16 %v529
        %v588 = vunpack.c.l.b16 %v530
        %v589 = vunpack.c.l.b16 %v531
        %v590 = vunpack.c.l.b16 %v532
        %v591 = vpack.c.b16 %v588, %v587
        %v592 = vpack.c.b16 %v590, %v589
        %595 = vmatpush.bf16.msra.mxu0 0
        %596 = vmatpush.bf16.msra.mxu0 0
        %597 = vmatpush.bf16.msra.mxu0 0
        %598 = vmatpush.bf16.msra.mxu0 0
        %599 = vmatpush.bf16.msra.mxu0 0
        %600 = vmatpush.bf16.msra.mxu0 0
        %601 = vmatpush.bf16.msra.mxu0 %v592
        %602 = vmatpush.bf16.msra.mxu0 %v591
        %603 = vmatmul.bf16.gmra.mxu0 %v430
        %v604 = vpop.f32.mrf.mxu0
        %v605 = vadd.f32 %v551, %v604
        %v606 = vpop.f32.mrf.mxu0
        %607 = vdwg.mxu0
        %v612 = vunpack.c.l.b16 %v533
        %v613 = vunpack.c.l.b16 %v534
        %v614 = vunpack.c.l.b16 %v535
        %v615 = vunpack.c.l.b16 %v536
        %v616 = vpack.c.b16 %v613, %v612
        %v617 = vpack.c.b16 %v615, %v614
        %620 = vmatpush.bf16.msra.mxu0 0
        %621 = vmatpush.bf16.msra.mxu0 0
        %622 = vmatpush.bf16.msra.mxu0 0
        %623 = vmatpush.bf16.msra.mxu0 0
        %624 = vmatpush.bf16.msra.mxu0 0
        %625 = vmatpush.bf16.msra.mxu0 0
        %626 = vmatpush.bf16.msra.mxu0 %v617
        %627 = vmatpush.bf16.msra.mxu0 %v616
        %628 = vmatmul.bf16.gmra.mxu0 %v430
        %v629 = vpop.f32.mrf.mxu0
        %v630 = vadd.f32 %v552, %v629
        %v631 = vpop.f32.mrf.mxu0
        %632 = vdwg.mxu0
        %v637 = vunpack.c.l.b16 %v537
        %v638 = vunpack.c.l.b16 %v538
        %v639 = vunpack.c.l.b16 %v539
        %v640 = vunpack.c.l.b16 %v540
        %v641 = vpack.c.b16 %v638, %v637
        %v642 = vpack.c.b16 %v640, %v639
        %645 = vmatpush.bf16.msra.mxu0 0
        %646 = vmatpush.bf16.msra.mxu0 0
        %647 = vmatpush.bf16.msra.mxu0 0
        %648 = vmatpush.bf16.msra.mxu0 0
        %649 = vmatpush.bf16.msra.mxu0 0
        %650 = vmatpush.bf16.msra.mxu0 0
        %651 = vmatpush.bf16.msra.mxu0 %v642
        %652 = vmatpush.bf16.msra.mxu0 %v641
        %653 = vmatmul.bf16.gmra.mxu0 %v430
        %v654 = vpop.f32.mrf.mxu0
        %v655 = vadd.f32 %v553, %v654
        %v656 = vpop.f32.mrf.mxu0
        %657 = vdwg.mxu0
        %v658 = vpack.c.bf16 %v580, %v580
        %v659 = vpack.c.bf16 %v605, %v605
        %v660 = vpack.c.bf16 %v630, %v630
        %v661 = vpack.c.bf16 %v655, %v655
        %s662 = scalar_lea.vmem %s1, 128
        %v663 = vld [vmem:[%s662] sm:$0xf]
        %v664 = vld [vmem:[%s662 + $0x4] sm:$0xf]
        %v665 = vld [vmem:[%s662 + $0x8] sm:$0xf]
        %v666 = vld [vmem:[%s662 + $0xc] sm:$0xf]
        %v667 = vld [vmem:[%s662 + $0x10] sm:$0xf]
        %v668 = vld [vmem:[%s662 + $0x14] sm:$0xf]
        %v669 = vld [vmem:[%s662 + $0x18] sm:$0xf]
        %v670 = vld [vmem:[%s662 + $0x1c] sm:$0xf]
        %v671 = vld [vmem:[%s662 + $0x20] sm:$0xf]
        %v672 = vld [vmem:[%s662 + $0x24] sm:$0xf]
        %v673 = vld [vmem:[%s662 + $0x28] sm:$0xf]
        %v674 = vld [vmem:[%s662 + $0x2c] sm:$0xf]
        %v675 = vld [vmem:[%s662 + $0x30] sm:$0xf]
        %v676 = vld [vmem:[%s662 + $0x34] sm:$0xf]
        %v677 = vld [vmem:[%s662 + $0x38] sm:$0xf]
        %v678 = vld [vmem:[%s662 + $0x3c] sm:$0xf]
        %s679 = scalar_lea.vmem %s2, 8
        %v680 = vld [vmem:[%s679] sm:$0x1]
        %v681 = vld [vmem:[%s679 + $0x1] sm:$0x1]
        %v682 = vld [vmem:[%s679 + $0x2] sm:$0x1]
        %v683 = vld [vmem:[%s679 + $0x3] sm:$0x1]
        %v688 = vperm.slane %v680, 0
        %v689 = vperm.slane %v681, 0
        %v690 = vperm.slane %v682, 0
        %v691 = vperm.slane %v683, 0
        %v700 = vunpack.c.l.b16 %v663
        %v701 = vunpack.c.l.b16 %v664
        %v702 = vunpack.c.l.b16 %v665
        %v703 = vunpack.c.l.b16 %v666
        %v704 = vpack.c.b16 %v701, %v700
        %v705 = vpack.c.b16 %v703, %v702
        %708 = vmatpush.bf16.msra.mxu0 0
        %709 = vmatpush.bf16.msra.mxu0 0
        %710 = vmatpush.bf16.msra.mxu0 0
        %711 = vmatpush.bf16.msra.mxu0 0
        %712 = vmatpush.bf16.msra.mxu0 0
        %713 = vmatpush.bf16.msra.mxu0 0
        %714 = vmatpush.bf16.msra.mxu0 %v705
        %715 = vmatpush.bf16.msra.mxu0 %v704
        %716 = vmatmul.bf16.gmra.mxu0 %v430
        %v717 = vpop.f32.mrf.mxu0
        %v718 = vadd.f32 %v688, %v717
        %v719 = vpop.f32.mrf.mxu0
        %720 = vdwg.mxu0
        %v725 = vunpack.c.l.b16 %v667
        %v726 = vunpack.c.l.b16 %v668
        %v727 = vunpack.c.l.b16 %v669
        %v728 = vunpack.c.l.b16 %v670
        %v729 = vpack.c.b16 %v726, %v725
        %v730 = vpack.c.b16 %v728, %v727
        %733 = vmatpush.bf16.msra.mxu0 0
        %734 = vmatpush.bf16.msra.mxu0 0
        %735 = vmatpush.bf16.msra.mxu0 0
        %736 = vmatpush.bf16.msra.mxu0 0
        %737 = vmatpush.bf16.msra.mxu0 0
        %738 = vmatpush.bf16.msra.mxu0 0
        %739 = vmatpush.bf16.msra.mxu0 %v730
        %740 = vmatpush.bf16.msra.mxu0 %v729
        %741 = vmatmul.bf16.gmra.mxu0 %v430
        %v742 = vpop.f32.mrf.mxu0
        %v743 = vadd.f32 %v689, %v742
        %v744 = vpop.f32.mrf.mxu0
        %745 = vdwg.mxu0
        %v750 = vunpack.c.l.b16 %v671
        %v751 = vunpack.c.l.b16 %v672
        %v752 = vunpack.c.l.b16 %v673
        %v753 = vunpack.c.l.b16 %v674
        %v754 = vpack.c.b16 %v751, %v750
        %v755 = vpack.c.b16 %v753, %v752
        %758 = vmatpush.bf16.msra.mxu0 0
        %759 = vmatpush.bf16.msra.mxu0 0
        %760 = vmatpush.bf16.msra.mxu0 0
        %761 = vmatpush.bf16.msra.mxu0 0
        %762 = vmatpush.bf16.msra.mxu0 0
        %763 = vmatpush.bf16.msra.mxu0 0
        %764 = vmatpush.bf16.msra.mxu0 %v755
        %765 = vmatpush.bf16.msra.mxu0 %v754
        %766 = vmatmul.bf16.gmra.mxu0 %v430
        %v767 = vpop.f32.mrf.mxu0
        %v768 = vadd.f32 %v690, %v767
        %v769 = vpop.f32.mrf.mxu0
        %770 = vdwg.mxu0
        %v775 = vunpack.c.l.b16 %v675
        %v776 = vunpack.c.l.b16 %v676
        %v777 = vunpack.c.l.b16 %v677
        %v778 = vunpack.c.l.b16 %v678
        %v779 = vpack.c.b16 %v776, %v775
        %v780 = vpack.c.b16 %v778, %v777
        %783 = vmatpush.bf16.msra.mxu0 0
        %784 = vmatpush.bf16.msra.mxu0 0
        %785 = vmatpush.bf16.msra.mxu0 0
        %786 = vmatpush.bf16.msra.mxu0 0
        %787 = vmatpush.bf16.msra.mxu0 0
        %788 = vmatpush.bf16.msra.mxu0 0
        %789 = vmatpush.bf16.msra.mxu0 %v780
        %790 = vmatpush.bf16.msra.mxu0 %v779
        %791 = vmatmul.bf16.gmra.mxu0 %v430
        %v792 = vpop.f32.mrf.mxu0
        %v793 = vadd.f32 %v691, %v792
        %v794 = vpop.f32.mrf.mxu0
        %795 = vdwg.mxu0
        %v796 = vpack.c.bf16 %v718, %v718
        %v797 = vpack.c.bf16 %v743, %v743
        %v798 = vpack.c.bf16 %v768, %v768
        %v799 = vpack.c.bf16 %v793, %v793
        %vm800 = vcmask 64512
        %v802 = vsel %vm800, %v520, 0
        %v805 = vsel %vm800, %v658, 0
        %807 = vmatpush.bf16.xpose.msra.mxu0 0
        %808 = vmatpush.bf16.xpose.msra.mxu0 0
        %809 = vmatpush.bf16.xpose.msra.mxu0 0
        %810 = vmatpush.bf16.xpose.msra.mxu0 0
        %811 = vmatpush.bf16.xpose.msra.mxu0 0
        %812 = vmatpush.bf16.xpose.msra.mxu0 0
        %813 = vmatpush.bf16.xpose.msra.mxu0 0
        %814 = vmatpush.bf16.xpose.msra.mxu0 %v805
        %815 = vmatmul.bf16.gmra.mxu0 %v802
        %v816 = vpop.f32.mrf.mxu0
        %v817 = vadd.f32 0.0, %v816
        %v818 = vpop.f32.mrf.mxu0
        %819 = vdwg.mxu0
        %v821 = vsel %vm800, %v521, 0
        %v824 = vsel %vm800, %v659, 0
        %826 = vmatpush.bf16.xpose.msra.mxu0 0
        %827 = vmatpush.bf16.xpose.msra.mxu0 0
        %828 = vmatpush.bf16.xpose.msra.mxu0 0
        %829 = vmatpush.bf16.xpose.msra.mxu0 0
        %830 = vmatpush.bf16.xpose.msra.mxu0 0
        %831 = vmatpush.bf16.xpose.msra.mxu0 0
        %832 = vmatpush.bf16.xpose.msra.mxu0 0
        %833 = vmatpush.bf16.xpose.msra.mxu0 %v824
        %834 = vmatmul.bf16.gmra.mxu0 %v821
        %v835 = vpop.f32.mrf.mxu0
        %v836 = vadd.f32 0.0, %v835
        %v837 = vpop.f32.mrf.mxu0
        %838 = vdwg.mxu0
        %v840 = vsel %vm800, %v522, 0
        %v843 = vsel %vm800, %v660, 0
        %845 = vmatpush.bf16.xpose.msra.mxu0 0
        %846 = vmatpush.bf16.xpose.msra.mxu0 0
        %847 = vmatpush.bf16.xpose.msra.mxu0 0
        %848 = vmatpush.bf16.xpose.msra.mxu0 0
        %849 = vmatpush.bf16.xpose.msra.mxu0 0
        %850 = vmatpush.bf16.xpose.msra.mxu0 0
        %851 = vmatpush.bf16.xpose.msra.mxu0 0
        %852 = vmatpush.bf16.xpose.msra.mxu0 %v843
        %853 = vmatmul.bf16.gmra.mxu0 %v840
        %v854 = vpop.f32.mrf.mxu0
        %v855 = vadd.f32 0.0, %v854
        %v856 = vpop.f32.mrf.mxu0
        %857 = vdwg.mxu0
        %v859 = vsel %vm800, %v523, 0
        %v862 = vsel %vm800, %v661, 0
        %864 = vmatpush.bf16.xpose.msra.mxu0 0
        %865 = vmatpush.bf16.xpose.msra.mxu0 0
        %866 = vmatpush.bf16.xpose.msra.mxu0 0
        %867 = vmatpush.bf16.xpose.msra.mxu0 0
        %868 = vmatpush.bf16.xpose.msra.mxu0 0
        %869 = vmatpush.bf16.xpose.msra.mxu0 0
        %870 = vmatpush.bf16.xpose.msra.mxu0 0
        %871 = vmatpush.bf16.xpose.msra.mxu0 %v862
        %872 = vmatmul.bf16.gmra.mxu0 %v859
        %v873 = vpop.f32.mrf.mxu0
        %v874 = vadd.f32 0.0, %v873
        %v875 = vpop.f32.mrf.mxu0
        %876 = vdwg.mxu0
        %v877 = vsel %vm800, %v817, -inf
        %878 = vmax.xlane.f32.xlu0 %v877
        %v879 = vpop.xlane.xlu0 %878
        %v880 = vsel %vm800, %v836, -inf
        %881 = vmax.xlane.f32.xlu0 %v880
        %v882 = vpop.xlane.xlu0 %881
        %v883 = vsel %vm800, %v855, -inf
        %884 = vmax.xlane.f32.xlu0 %v883
        %v885 = vpop.xlane.xlu0 %884
        %v886 = vsel %vm800, %v874, -inf
        %887 = vmax.xlane.f32.xlu0 %v886
        %v888 = vpop.xlane.xlu0 %887
        %v889 = vsub.f32 %v817, %v879
        %v890 = vsub.f32 %v836, %v882
        %v891 = vsub.f32 %v855, %v885
        %v892 = vsub.f32 %v874, %v888
        %v893 = vmul.f32 %v889, 1.442695
        %v894 = vpow.pop %v893
        %v895 = vmul.f32 %v890, 1.442695
        %v896 = vpow.pop %v895
        %v897 = vmul.f32 %v891, 1.442695
        %v898 = vpow.pop %v897
        %v899 = vmul.f32 %v892, 1.442695
        %v900 = vpow.pop %v899
        %v901 = vsel %vm800, %v894, 0.0
        %902 = vadd.xlane.f32.xlu0 %v901
        %v903 = vpop.xlane.xlu0 %902
        %v904 = vsel %vm800, %v896, 0.0
        %905 = vadd.xlane.f32.xlu0 %v904
        %v906 = vpop.xlane.xlu0 %905
        %v907 = vsel %vm800, %v898, 0.0
        %908 = vadd.xlane.f32.xlu0 %v907
        %v909 = vpop.xlane.xlu0 %908
        %v910 = vsel %vm800, %v900, 0.0
        %911 = vadd.xlane.f32.xlu0 %v910
        %v912 = vpop.xlane.xlu0 %911
        %v913 = vrcp.pop %v903
        %v914 = vrcp.pop %v906
        %v915 = vrcp.pop %v909
        %v916 = vrcp.pop %v912
        %v917 = vmul.f32 %v894, %v913
        %v918 = vmul.f32 %v896, %v914
        %v919 = vmul.f32 %v898, %v915
        %v920 = vmul.f32 %v900, %v916
        %v921 = vpack.c.bf16 %v917, %v917
        %v922 = vpack.c.bf16 %v918, %v918
        %v923 = vpack.c.bf16 %v919, %v919
        %v924 = vpack.c.bf16 %v920, %v920
        %v926 = vsel %vm800, %v921, 0
        %vm928 = vcmask 1043456
        %v930 = vsel %vm928, %v796, 0
        %932 = vmatpush.bf16.msra.mxu0 0
        %933 = vmatpush.bf16.msra.mxu0 0
        %934 = vmatpush.bf16.msra.mxu0 0
        %935 = vmatpush.bf16.msra.mxu0 0
        %936 = vmatpush.bf16.msra.mxu0 0
        %937 = vmatpush.bf16.msra.mxu0 0
        %938 = vmatpush.bf16.msra.mxu0 0
        %939 = vmatpush.bf16.msra.mxu0 %v930
        %940 = vmatmul.bf16.gmra.mxu0 %v926
        %v941 = vpop.f32.mrf.mxu0
        %v942 = vadd.f32 0.0, %v941
        %v943 = vpop.f32.mrf.mxu0
        %944 = vdwg.mxu0
        %v946 = vsel %vm800, %v922, 0
        %v949 = vsel %vm928, %v797, 0
        %951 = vmatpush.bf16.msra.mxu0 0
        %952 = vmatpush.bf16.msra.mxu0 0
        %953 = vmatpush.bf16.msra.mxu0 0
        %954 = vmatpush.bf16.msra.mxu0 0
        %955 = vmatpush.bf16.msra.mxu0 0
        %956 = vmatpush.bf16.msra.mxu0 0
        %957 = vmatpush.bf16.msra.mxu0 0
        %958 = vmatpush.bf16.msra.mxu0 %v949
        %959 = vmatmul.bf16.gmra.mxu0 %v946
        %v960 = vpop.f32.mrf.mxu0
        %v961 = vadd.f32 0.0, %v960
        %v962 = vpop.f32.mrf.mxu0
        %963 = vdwg.mxu0
        %v965 = vsel %vm800, %v923, 0
        %v968 = vsel %vm928, %v798, 0
        %970 = vmatpush.bf16.msra.mxu0 0
        %971 = vmatpush.bf16.msra.mxu0 0
        %972 = vmatpush.bf16.msra.mxu0 0
        %973 = vmatpush.bf16.msra.mxu0 0
        %974 = vmatpush.bf16.msra.mxu0 0
        %975 = vmatpush.bf16.msra.mxu0 0
        %976 = vmatpush.bf16.msra.mxu0 0
        %977 = vmatpush.bf16.msra.mxu0 %v968
        %978 = vmatmul.bf16.gmra.mxu0 %v965
        %v979 = vpop.f32.mrf.mxu0
        %v980 = vadd.f32 0.0, %v979
        %v981 = vpop.f32.mrf.mxu0
        %982 = vdwg.mxu0
        %v984 = vsel %vm800, %v924, 0
        %v987 = vsel %vm928, %v799, 0
        %989 = vmatpush.bf16.msra.mxu0 0
        %990 = vmatpush.bf16.msra.mxu0 0
        %991 = vmatpush.bf16.msra.mxu0 0
        %992 = vmatpush.bf16.msra.mxu0 0
        %993 = vmatpush.bf16.msra.mxu0 0
        %994 = vmatpush.bf16.msra.mxu0 0
        %995 = vmatpush.bf16.msra.mxu0 0
        %996 = vmatpush.bf16.msra.mxu0 %v987
        %997 = vmatmul.bf16.gmra.mxu0 %v984
        %v998 = vpop.f32.mrf.mxu0
        %v999 = vadd.f32 0.0, %v998
        %v1000 = vpop.f32.mrf.mxu0
        %1001 = vdwg.mxu0
        %v1002 = vpack.c.bf16 %v942, %v942
        %v1003 = vpack.c.bf16 %v961, %v961
        %v1004 = vpack.c.bf16 %v980, %v980
        %v1005 = vpack.c.bf16 %v999, %v999
        %v1006 = vld [vmem:[%s3] sm:$0xf]
        %s1007 = scalar_lea.vmem %s3, 4
        %v1008 = vld [vmem:[%s1007] sm:$0xf]
        %v1010 = vsel %vm800, %v1003, 0
        %v1013 = vsel %vm928, %v1008, 0
        %1015 = vmatpush.bf16.msra.mxu0 0
        %1016 = vmatpush.bf16.msra.mxu0 0
        %1017 = vmatpush.bf16.msra.mxu0 0
        %1018 = vmatpush.bf16.msra.mxu0 0
        %1019 = vmatpush.bf16.msra.mxu0 0
        %1020 = vmatpush.bf16.msra.mxu0 0
        %1021 = vmatpush.bf16.msra.mxu0 0
        %1022 = vmatpush.bf16.msra.mxu0 %v1013
        %1023 = vmatmul.bf16.gmra.mxu0 %v1010
        %v1024 = vpop.f32.mrf.mxu0
        %v1025 = vadd.f32 0.0, %v1024
        %v1026 = vpop.f32.mrf.mxu0
        %1027 = vdwg.mxu0
        %v1029 = vsel %vm800, %v1002, 0
        %v1032 = vsel %vm928, %v1006, 0
        %1034 = vmatpush.bf16.msra.mxu0 0
        %1035 = vmatpush.bf16.msra.mxu0 0
        %1036 = vmatpush.bf16.msra.mxu0 0
        %1037 = vmatpush.bf16.msra.mxu0 0
        %1038 = vmatpush.bf16.msra.mxu0 0
        %1039 = vmatpush.bf16.msra.mxu0 0
        %1040 = vmatpush.bf16.msra.mxu0 0
        %1041 = vmatpush.bf16.msra.mxu0 %v1032
        %1042 = vmatmul.bf16.gmra.mxu0 %v1029
        %v1043 = vpop.f32.mrf.mxu0
        %v1044 = vadd.f32 %v1025, %v1043
        %v1045 = vpop.f32.mrf.mxu0
        %1046 = vdwg.mxu0
        %s1047 = scalar_lea.vmem %s3, 8
        %v1048 = vld [vmem:[%s1047] sm:$0xf]
        %v1050 = vsel %vm800, %v1004, 0
        %v1053 = vsel %vm928, %v1048, 0
        %1055 = vmatpush.bf16.msra.mxu0 0
        %1056 = vmatpush.bf16.msra.mxu0 0
        %1057 = vmatpush.bf16.msra.mxu0 0
        %1058 = vmatpush.bf16.msra.mxu0 0
        %1059 = vmatpush.bf16.msra.mxu0 0
        %1060 = vmatpush.bf16.msra.mxu0 0
        %1061 = vmatpush.bf16.msra.mxu0 0
        %1062 = vmatpush.bf16.msra.mxu0 %v1053
        %1063 = vmatmul.bf16.gmra.mxu0 %v1050
        %v1064 = vpop.f32.mrf.mxu0
        %v1065 = vadd.f32 0.0, %v1064
        %v1066 = vpop.f32.mrf.mxu0
        %1067 = vdwg.mxu0
        %v1068 = vadd.f32 %v1044, %v1065
        %s1069 = scalar_lea.vmem %s3, 12
        %v1070 = vld [vmem:[%s1069] sm:$0xf]
        %v1072 = vsel %vm800, %v1005, 0
        %v1075 = vsel %vm928, %v1070, 0
        %1077 = vmatpush.bf16.msra.mxu0 0
        %1078 = vmatpush.bf16.msra.mxu0 0
        %1079 = vmatpush.bf16.msra.mxu0 0
        %1080 = vmatpush.bf16.msra.mxu0 0
        %1081 = vmatpush.bf16.msra.mxu0 0
        %1082 = vmatpush.bf16.msra.mxu0 0
        %1083 = vmatpush.bf16.msra.mxu0 0
        %1084 = vmatpush.bf16.msra.mxu0 %v1075
        %1085 = vmatmul.bf16.gmra.mxu0 %v1072
        %v1086 = vpop.f32.mrf.mxu0
        %v1087 = vadd.f32 0.0, %v1086
        %v1088 = vpop.f32.mrf.mxu0
        %1089 = vdwg.mxu0
        %v1090 = vadd.f32 %v1068, %v1087
        %v1091 = vld [vmem:[%s4] sm:$0x1]
        %v1093 = vperm.slane %v1091, 0
        %v1095 = vadd.f32 %v1090, %v1093
        %v1096 = vld [vmem:[%s5] sm:$0x1]
        %v1097 = vld [vmem:[%s6] sm:$0x1]
        %v1098 = vunpack.c.l.bf16 %v383
        %v1099 = vadd.f32 %v1098, %v1095
        %v1100 = vsel %vm428, %v1099, 0.0
        %1101 = vadd.xlane.f32.xlu0 %v1100
        %v1102 = vpop.xlane.xlu0 %1101
        %v1103 = vrcp.pop 32.0
        %v1104 = vmul.f32 32.0, %v1103
        %v1105 = vsub.f32 1.0, %v1104
        %v1106 = vmul.f32 %v1103, %v1105
        %v1107 = vadd.f32 %v1103, %v1106
        %vm1108 = vweird.f32 %v1103
        %v1109 = vsel %vm1108, %v1103, %v1107
        %v1110 = vmul.f32 %v1102, %v1109
        %v1111 = vsub.f32 %v1099, %v1110
        %v1112 = vmul.f32 %v1111, %v1111
        %v1113 = vsel %vm428, %v1112, 0.0
        %1114 = vadd.xlane.f32.xlu0 %v1113
        %v1115 = vpop.xlane.xlu0 %1114
        %v1116 = vmul.f32 %v1115, %v1109
        %v1117 = vadd.f32 %v1116, 1e-05
        %v1118 = vrsqrt.pop %v1117
        %v1119 = vmul.f32 %v1118, %v1117
        %v1120 = vmul.f32 %v1119, %v1118
        %v1121 = vmul.f32 0.5, %v1120
        %v1122 = vsub.f32 1.5, %v1121
        %v1123 = vmul.f32 %v1118, %v1122
        %vm1124 = vweird.f32 %v1117
        %vm1125 = vweird.f32 %v1118
        %vm1126 = vmor %vm1124, %vm1125
        %v1127 = vsel %vm1126, %v1118, %v1123
        %v1128 = vmul.f32 %v1111, %v1127
        %v1130 = vperm.slane %v1096, 0
        %v1132 = vmul.f32 %v1128, %v1130
        %v1134 = vperm.slane %v1097, 0
        %v1136 = vadd.f32 %v1132, %v1134
        %v1137 = vpack.c.bf16 %v1136, %v1136
        %v1138 = vld [vmem:[%s7] sm:$0xf]
        %v1139 = vld [vmem:[%s7 + $0x4] sm:$0xf]
        %v1140 = vld [vmem:[%s7 + $0x8] sm:$0xf]
        %v1141 = vld [vmem:[%s7 + $0xc] sm:$0xf]
        %v1142 = vld [vmem:[%s8] sm:$0x1]
        %v1144 = vperm.slane %v1142, 0
        %v1150 = vunpack.c.l.b16 %v1138
        %v1151 = vunpack.c.l.b16 %v1139
        %v1152 = vunpack.c.l.b16 %v1140
        %v1153 = vunpack.c.l.b16 %v1141
        %v1154 = vpack.c.b16 %v1151, %v1150
        %v1155 = vpack.c.b16 %v1153, %v1152
        %v1159 = vsel %vm428, %v1137, 0
        %1161 = vmatpush.bf16.msra.mxu0 0
        %1162 = vmatpush.bf16.msra.mxu0 0
        %1163 = vmatpush.bf16.msra.mxu0 0
        %1164 = vmatpush.bf16.msra.mxu0 0
        %1165 = vmatpush.bf16.msra.mxu0 0
        %1166 = vmatpush.bf16.msra.mxu0 0
        %1167 = vmatpush.bf16.msra.mxu0 %v1155
        %1168 = vmatpush.bf16.msra.mxu0 %v1154
        %1169 = vmatmul.bf16.gmra.mxu0 %v1159
        %v1170 = vpop.f32.mrf.mxu0
        %v1171 = vadd.f32 %v1144, %v1170
        %v1172 = vpop.f32.mrf.mxu0
        %1173 = vdwg.mxu0
        %v1174 = vmax.f32 %v1171, 0.0
        %v1175 = vpack.c.bf16 %v1174, %v1174
        %v1176 = vld [vmem:[%s9] sm:$0xf]
        %v1177 = vld [vmem:[%s9 + $0x4] sm:$0xf]
        %v1178 = vld [vmem:[%s9 + $0x8] sm:$0xf]
        %v1179 = vld [vmem:[%s9 + $0xc] sm:$0xf]
        %v1180 = vld [vmem:[%s9 + $0x10] sm:$0xf]
        %v1181 = vld [vmem:[%s9 + $0x14] sm:$0xf]
        %v1182 = vld [vmem:[%s9 + $0x18] sm:$0xf]
        %v1183 = vld [vmem:[%s9 + $0x1c] sm:$0xf]
        %v1184 = vld [vmem:[%s10] sm:$0x1]
        %v1186 = vperm.slane %v1184, 0
        %v1196 = vunpack.c.l.b16 %v1176
        %v1197 = vunpack.c.l.b16 %v1177
        %v1198 = vunpack.c.l.b16 %v1178
        %v1199 = vunpack.c.l.b16 %v1179
        %v1200 = vunpack.c.l.b16 %v1180
        %v1201 = vunpack.c.l.b16 %v1181
        %v1202 = vunpack.c.l.b16 %v1182
        %v1203 = vunpack.c.l.b16 %v1183
        %v1204 = vpack.c.b16 %v1197, %v1196
        %v1205 = vpack.c.b16 %v1199, %v1198
        %v1206 = vpack.c.b16 %v1201, %v1200
        %v1207 = vpack.c.b16 %v1203, %v1202
        %vm1212 = vcmask 523264
        %v1214 = vsel %vm1212, %v1175, 0
        %1216 = vmatpush.bf16.msra.mxu0 0
        %1217 = vmatpush.bf16.msra.mxu0 0
        %1218 = vmatpush.bf16.msra.mxu0 0
        %1219 = vmatpush.bf16.msra.mxu0 0
        %1220 = vmatpush.bf16.msra.mxu0 %v1207
        %1221 = vmatpush.bf16.msra.mxu0 %v1206
        %1222 = vmatpush.bf16.msra.mxu0 %v1205
        %1223 = vmatpush.bf16.msra.mxu0 %v1204
        %1224 = vmatmul.bf16.gmra.mxu0 %v1214
        %v1225 = vpop.f32.mrf.mxu0
        %v1226 = vadd.f32 %v1186, %v1225
        %v1227 = vpop.f32.mrf.mxu0
        %1228 = vdwg.mxu0
        %v1229 = vadd.f32 %v1136, %v1226
        %v1230 = vsel %vm428, %v1229, 0.0
        %1231 = vadd.xlane.f32.xlu0 %v1230
        %v1232 = vpop.xlane.xlu0 %1231
        %v1233 = vmul.f32 %v1232, %v1109
        %v1234 = vsub.f32 %v1229, %v1233
        %v1235 = vmul.f32 %v1234, %v1234
        %v1236 = vsel %vm428, %v1235, 0.0
        %1237 = vadd.xlane.f32.xlu0 %v1236
        %v1238 = vpop.xlane.xlu0 %1237
        %v1239 = vmul.f32 %v1238, %v1109
        %v1240 = vadd.f32 %v1239, 1e-05
        %v1241 = vrsqrt.pop %v1240
        %v1242 = vmul.f32 %v1241, %v1240
        %v1243 = vmul.f32 %v1242, %v1241
        %v1244 = vmul.f32 0.5, %v1243
        %v1245 = vsub.f32 1.5, %v1244
        %v1246 = vmul.f32 %v1241, %v1245
        %vm1247 = vweird.f32 %v1240
        %vm1248 = vweird.f32 %v1241
        %vm1249 = vmor %vm1247, %vm1248
        %v1250 = vsel %vm1249, %v1241, %v1246
        %v1251 = vmul.f32 %v1234, %v1250
        %v1252 = vmul.f32 %v1251, %v1130
        %v1253 = vadd.f32 %v1252, %v1134
        %v1254 = vpack.c.bf16 %v1253, %v1253
        %vm1255 = vcmask 257024
        %1256 = vst.msk [vmem:[%s377] sm:$0xf] %vm1255, %v1254
        %s1257 = sand.u32 %s269, 1
        %s1258 = scalar_lea.sflag [#allocation3], %s1257
        %s1259 = sand.u32 %s269, 1
        %s1260 = smul.addr %s1259, 4
        %s1261 = scalar_lea.vmem [#allocation2], %s1260
        // Predicated region
        $region65: #{tpu_custom_call.1} parent=63 // pred_check
          %p1262 = pneg %p279
        $region66: #{tpu_custom_call.1} parent=63 // pred_check_branch
          %1264 = sbr.rel (%p1262) target = $region68
        $region67: #{tpu_custom_call.1} parent=63 // pred_region
          %1266 = vsyncadd %s1258, 0
          %s1267 = smul.addr %s25, 4
          %s1268 = scalar_lea.hbm %s11, %s1267
          %s1270 = sshll.u32 %s1261, 4
          %s1271 = int_to_ptr.vmem [resolvable:$true] %s1270
          %s1272 = sshll.u32 %s1268, 4
          %s1273 = int_to_ptr.hbm [resolvable:$true] %s1272
          %1275 = dma.vmem_to_hbm [thread:$0]  %s1271, 64, %s1273, %s1258
        $region68: #{tpu_custom_call.1} parent=63 // pred_fallthru
          _
      $region64: #{tpu_custom_call.1} parent=5 // pred_fallthru
        _
      %p1276 = scmp.le.s32.totalorder 2, %s20
      // Predicated region
      $region69: #{tpu_custom_call.1} parent=5 // pred_check
        %p1277 = pneg %p1276
      $region70: #{tpu_custom_call.1} parent=5 // pred_check_branch
        %1279 = sbr.rel (%p1277) target = $region72
      $region71: #{tpu_custom_call.1} parent=5 // pred_region
        %s1280 = ssub.s32 %s20, 2
        // Predicated region
        $region73: #{tpu_custom_call.1} parent=71 // pred_check
          %p1281 = pneg %p285
        $region74: #{tpu_custom_call.1} parent=71 // pred_check_branch
          %1283 = sbr.rel (%p1281) target = $region76
        $region75: #{tpu_custom_call.1} parent=71 // pred_region
          %s1284 = sand.u32 %s270, 1
          %s1285 = scalar_lea.sflag [#allocation3], %s1284
          %s1286 = sand.u32 %s270, 1
          %s1287 = smul.addr %s1286, 4
          %s1288 = scalar_lea.vmem [#allocation2], %s1287
          %1290 = dma.done %s1285, 64
        $region76: #{tpu_custom_call.1} parent=71 // pred_fallthru
          _
      $region72: #{tpu_custom_call.1} parent=5 // pred_fallthru
        _
    $region6: #{tpu_custom_call.1} parent=1 // loop_footer
      %s24 = sadd.s32 1, %s20
    $region7: #{tpu_custom_call.1} parent=1 // loop_footer_branch
      %19 = sbr.rel target = $region3
    $region8: #{tpu_custom_call.1} parent=1 // loop_exit
      _
    %1291 = vsyncpa [#allocation3], 1
    %s1292 = scalar_lea.sflag [#allocation3], 1
    %1293 = vsyncpa %s1292, 1

</llo_original>
